<compile_context>
chip_gen: v7x
topology: tpu7x:2x2x1
jax: 0.10.0
libtpu: 0.0.40
codegen_flags: <defaults>
</compile_context>

<pallas_src>
import math
import functools

import jax
import jax.numpy as jnp
from jax.experimental import pallas as pl
from jax.experimental.pallas import tpu as pltpu

EPS_BN = 1e-5


def _vmem():
    return pl.BlockSpec(memory_space=pltpu.MemorySpace.VMEM)


# ----------------------------- shared math helpers ----------------------------

def _batchnorm(h, gamma, beta):
    # training-mode BatchNorm1d, single-pass stats: E[h] and E[h^2] are
    # independent reductions (shorter serial chain than mean -> (h-mean)^2).
    mean = jnp.mean(h, axis=0, keepdims=True)
    msq = jnp.mean(h * h, axis=0, keepdims=True)
    var = jnp.maximum(msq - mean * mean, 0.0)
    return (h - mean) * jax.lax.rsqrt(var + EPS_BN) * gamma + beta


def _sparsemax(z, tie):
    # Sort-free sparsemax, identical in exact arithmetic to the sort/cumsum
    # reference formulation.  `tie` is the precomputed (B, D, D) "j <= i"
    # tie-break mask, hoisted out of the unrolled step loop.
    z = z - jnp.max(z, axis=-1, keepdims=True)
    zi = z[:, :, None]                       # (B, D, 1)
    zj = z[:, None, :]                       # (B, 1, D)
    prec = jnp.logical_or(zj > zi, jnp.logical_and(zj == zi, tie))
    precf = prec.astype(jnp.float32)
    rank = jnp.sum(precf, axis=2)            # 1-based rank of element i
    csum = jnp.sum(precf * zj, axis=2)       # cumulative sorted sum at rank_i
    is_gt = ((1.0 + rank * z) > csum).astype(jnp.float32)
    k = jnp.max(is_gt * rank, axis=-1, keepdims=True)
    ssum = jnp.sum(is_gt * z, axis=-1, keepdims=True)
    tau = (ssum - 1.0) / k
    return jnp.maximum(z - tau, 0.0)


# ------------------------------ fused TabNet kernel ----------------------------

def _tabnet_kernel(n_d, n_a, n_ind, n_steps, relax,
                   x_ref, wglu_ref, watt_ref, wfc_ref, prm_ref,
                   logits_ref, loss_ref):
    f32 = jnp.float32
    bf16 = jnp.bfloat16
    scale = f32(math.sqrt(0.5))
    od = n_d + n_a
    two_od = 2 * od
    n_glu = 2 + n_ind
    batch, inp_dim = x_ref.shape
    final_out_dim = wfc_ref.shape[1]

    # ---- row layout of the packed bias / BN-parameter slab (prm_ref) ----
    R_XG = 0                               # input-BN gamma        (inp_dim)
    R_XB = 1                               # input-BN beta
    R_SB0 = 2                              # shared GLU-0 bias     (2*od)
    R_SB1 = 3                              # shared GLU-1 bias
    R_IB = 4                               # ind GLU biases        (S*n_ind rows)
    R_G = R_IB + n_steps * n_ind           # FT GLU BN gammas      (S*n_glu rows)
    R_BE = R_G + n_steps * n_glu           # FT GLU BN betas
    R_AB = R_BE + n_steps * n_glu          # attention biases      (S-1 rows)
    R_AG = R_AB + (n_steps - 1)            # attention BN gammas
    R_ABE = R_AG + (n_steps - 1)           # attention BN betas
    R_FCB = R_ABE + (n_steps - 1)          # final Linear bias     (final_out_dim)

    def prow(r, width):                    # one (1, width) row of the slab
        return prm_ref[pl.ds(r, 1), :][:, :width]

    def glu(x, w_idx, b_row, g_row, be_row):
        # single (din, 2*od) bf16 dot, single BN pass over all 2*od columns,
        # gate half via a static value lane-slice (XLU, has slack).
        w = wglu_ref[w_idx]                                  # bf16, static index
        h = jnp.dot(x.astype(bf16), w, preferred_element_type=f32) + b_row
        h = _batchnorm(h, g_row, be_row)
        return h[:, :od] * jax.nn.sigmoid(h[:, od:])

    def feature_transform(s, x):
        g0 = s * n_glu                     # first BN row of this FT's GLU stack
        x = glu(x, 0, prow(R_SB0, two_od),
                prow(R_G + g0, two_od), prow(R_BE + g0, two_od))
        x = (x + glu(x, 1, prow(R_SB1, two_od),
                     prow(R_G + g0 + 1, two_od),
                     prow(R_BE + g0 + 1, two_od))) * scale
        for i in range(n_ind):
            wi = 2 + s * n_ind + i
            gi = g0 + 2 + i
            x = (x + glu(x, wi, prow(R_IB + s * n_ind + i, two_od),
                         prow(R_G + gi, two_od),
                         prow(R_BE + gi, two_od))) * scale
        return x

    x_bn = _batchnorm(x_ref[...], prow(R_XG, inp_dim), prow(R_XB, inp_dim))

    # sparsemax tie-break structure, hoisted out of the unrolled step loop
    i_idx = jax.lax.broadcasted_iota(jnp.int32, (batch, inp_dim, inp_dim), 1)
    j_idx = jax.lax.broadcasted_iota(jnp.int32, (batch, inp_dim, inp_dim), 2)
    tie = j_idx <= i_idx

    x_a = feature_transform(0, x_bn)[:, n_d:]

    out = jnp.zeros((batch, n_d), f32)
    priors = jnp.ones_like(x_bn)
    loss = jnp.zeros((1, 1), f32)
    inv_bd = f32(1.0 / (batch * inp_dim))

    for s in range(n_steps - 1):
        # AttentionTransformer
        h = (jnp.dot(x_a.astype(bf16), watt_ref[s], preferred_element_type=f32)
             + prow(R_AB + s, inp_dim))
        h = _batchnorm(h, prow(R_AG + s, inp_dim), prow(R_ABE + s, inp_dim))
        mask = _sparsemax(h * priors, tie)
        # sparse-entropy loss (mean over all batch * inp_dim elements)
        neg_ent = -mask * jnp.log(mask + 1e-10)
        loss = loss + jnp.sum(jnp.sum(neg_ent, axis=1, keepdims=True),
                              axis=0, keepdims=True) * inv_bd
        priors = priors * (relax - mask)
        # FeatureTransformer on the masked (in-VMEM) input
        x_te = feature_transform(s + 1, x_bn * mask)
        out = out + jax.nn.relu(x_te[:, :n_d])
        x_a = x_te[:, n_d:]

    logits_ref[...] = (jnp.dot(out.astype(bf16), wfc_ref[...],
                               preferred_element_type=f32)
                       + prow(R_FCB, final_out_dim))
    loss_ref[...] = loss


# ------------------------------- pallas wrapper --------------------------------

def tabnet_forward(packed, x, *, n_d, n_a, n_ind, n_steps, relax):
    B, inp_dim = x.shape
    final_out_dim = packed["wfc"].shape[1]
    od = n_d + n_a
    kernel = functools.partial(_tabnet_kernel, n_d, n_a, n_ind, n_steps,
                               float(relax))
    args = (x, packed["wglu"], packed["watt"], packed["wfc"], packed["prm"])

    # advisory cost estimate for XLA's scheduler (kernel is latency-bound)
    flops = (2 * B * od * 2 * od * (2 + n_ind) * n_steps
             + 2 * B * n_a * inp_dim * (n_steps - 1)
             + 2 * B * n_d * final_out_dim
             + 20 * B * inp_dim * inp_dim * (n_steps - 1))
    transc = (B * 2 * od * (2 + n_ind) * n_steps        # sigmoid
              + B * inp_dim * (n_steps - 1)             # log
              + 64)                                     # rsqrt
    nbytes = (sum(int(a.size) * a.dtype.itemsize for a in args)
              + B * final_out_dim * 4 + 4)

    logits, loss = pl.pallas_call(
        kernel,
        out_shape=(jax.ShapeDtypeStruct((B, final_out_dim), jnp.float32),
                   jax.ShapeDtypeStruct((1, 1), jnp.float32)),
        in_specs=[_vmem()] * len(args),
        out_specs=(_vmem(), _vmem()),
        cost_estimate=pl.CostEstimate(flops=int(flops),
                                      transcendentals=int(transc),
                                      bytes_accessed=int(nbytes)),
    )(*args)
    return logits, loss.reshape(1)


# ------------------------------- parameters -----------------------------------

def init_tabnet_params(key, inp_dim, final_out_dim, n_d, n_a,
                       n_shared, n_ind, n_steps):
    assert n_shared == 2, "kernel structure is fixed to the default n_shared=2"
    assert n_steps >= 2
    od = n_d + n_a
    keys = iter(jax.random.split(key, 64))

    def lin(k, din, dout):
        bound = 1.0 / math.sqrt(din)
        kw, kb = jax.random.split(k)
        w = jax.random.uniform(kw, (din, dout), jnp.float32, -bound, bound)
        b = jax.random.uniform(kb, (1, dout), jnp.float32, -bound, bound)
        return w, b

    params = {
        "bn_g": jnp.ones((1, inp_dim), jnp.float32),
        "bn_b": jnp.zeros((1, inp_dim), jnp.float32),
    }
    # shared Linear weights (reused by every FeatureTransformer)
    params["shared_w0"], params["shared_b0"] = lin(next(keys), inp_dim, 2 * od)
    params["shared_w1"], params["shared_b1"] = lin(next(keys), od, 2 * od)

    fts = []
    for _ in range(n_steps):          # first_step + (n_steps-1) decision steps
        iw, ib = [], []
        for _ in range(n_ind):
            w, b = lin(next(keys), od, 2 * od)
            iw.append(w)
            ib.append(b[0])
        fts.append(dict(
            ind_w=jnp.stack(iw),                                   # (n_ind, od, 2od)
            ind_b=jnp.stack(ib),                                   # (n_ind, 2od)
            bn_g=jnp.ones((2 + n_ind, 2 * od), jnp.float32),       # per-GLU BN gamma
            bn_b=jnp.zeros((2 + n_ind, 2 * od), jnp.float32),      # per-GLU BN beta
        ))
    params["ft"] = fts

    atts = []
    for _ in range(n_steps - 1):
        w, b = lin(next(keys), n_a, inp_dim)
        atts.append(dict(w=w, b=b,
                         bn_g=jnp.ones((1, inp_dim), jnp.float32),
                         bn_b=jnp.zeros((1, inp_dim), jnp.float32)))
    params["att"] = atts

    params["fc_w"], params["fc_b"] = lin(next(keys), n_d, final_out_dim)
    return params


def pack_params(params, *, n_d, n_a, n_ind, n_steps, inp_dim, final_out_dim):
    """Pack all TabNet parameters into 4 kernel slabs (+ the input x = 5 DMAs).

    prm : (R, 2*od) f32  — every bias / BN gamma,beta as zero-padded rows.
    wglu: (2 + n_steps*n_ind, od, 2*od) bf16 — all GLU Linear weights.
    watt: (n_steps-1, n_a, inp_dim)      bf16 — attention Linear weights.
    wfc : (n_d, final_out_dim)           bf16 — final Linear weight.
    """
    od = n_d + n_a
    W = 2 * od
    assert inp_dim <= W and final_out_dim <= W
    assert inp_dim == od, "weight-slab packing assumes inp_dim == n_d + n_a"
    # TODO(synk): generalize the weight-slab packing to inp_dim != n_d + n_a
    #             (zero-pad GLU-0's weight rows and the masked activation).

    def pad_row(v):
        v = jnp.reshape(jnp.asarray(v, jnp.float32), (-1,))
        return jnp.pad(v, (0, W - v.shape[0]))

    rows = [pad_row(params["bn_g"]), pad_row(params["bn_b"]),
            pad_row(params["shared_b0"]), pad_row(params["shared_b1"])]
    for ftp in params["ft"]:
        for i in range(n_ind):
            rows.append(pad_row(ftp["ind_b"][i]))
    for ftp in params["ft"]:
        for g in range(2 + n_ind):
            rows.append(pad_row(ftp["bn_g"][g]))
    for ftp in params["ft"]:
        for g in range(2 + n_ind):
            rows.append(pad_row(ftp["bn_b"][g]))
    for a in params["att"]:
        rows.append(pad_row(a["b"]))
    for a in params["att"]:
        rows.append(pad_row(a["bn_g"]))
    for a in params["att"]:
        rows.append(pad_row(a["bn_b"]))
    rows.append(pad_row(params["fc_b"]))
    prm = jnp.stack(rows, axis=0)                          # (R, 2*od) f32

    wglu = jnp.stack(
        [params["shared_w0"], params["shared_w1"]]
        + [ftp["ind_w"][i] for ftp in params["ft"] for i in range(n_ind)],
        axis=0).astype(jnp.bfloat16)                       # (2+S*n_ind, od, 2od)
    watt = jnp.stack([a["w"] for a in params["att"]],
                     axis=0).astype(jnp.bfloat16)          # (S-1, n_a, inp_dim)
    wfc = params["fc_w"].astype(jnp.bfloat16)              # (n_d, final_out_dim)
    return dict(prm=prm, wglu=wglu, watt=watt, wfc=wfc)


# ------------------------- pure-JAX reference (for checking) -------------------

def reference_forward(params, x, *, n_d, n_a, n_ind, n_steps, relax):
    od = n_d + n_a
    scale = jnp.float32(math.sqrt(0.5))

    def bn(h, g, b):
        mean = jnp.mean(h, axis=0, keepdims=True)
        var = jnp.mean((h - mean) ** 2, axis=0, keepdims=True)
        return (h - mean) * jax.lax.rsqrt(var + EPS_BN) * g + b

    def sparsemax_sort(z):
        z = z - jnp.max(z, axis=-1, keepdims=True)
        zs = jnp.sort(z, axis=-1)[:, ::-1]
        rng = jnp.arange(1, z.shape[-1] + 1, dtype=z.dtype)[None, :]
        bound = 1.0 + rng * zs
        cs = jnp.cumsum(zs, axis=-1)
        is_gt = (bound > cs).astype(z.dtype)
        k = jnp.max(is_gt * rng, axis=-1, keepdims=True)
        tau = (jnp.sum(is_gt * zs, axis=-1, keepdims=True) - 1.0) / k
        return jnp.maximum(z - tau, 0.0)

    def glu(x, w, b, g, be):
        h = bn(x @ w + b, g, be)
        return h[:, :od] * jax.nn.sigmoid(h[:, od:])

    def ft(ftp, x):
        g, be = ftp["bn_g"], ftp["bn_b"]
        x = glu(x, params["shared_w0"], params["shared_b0"], g[0:1], be[0:1])
        x = (x + glu(x, params["shared_w1"], params["shared_b1"],
                     g[1:2], be[1:2])) * scale
        for i in range(n_ind):
            x = (x + glu(x, ftp["ind_w"][i], ftp["ind_b"][i][None, :],
                         g[2 + i:3 + i], be[2 + i:3 + i])) * scale
        return x

    x_bn = bn(x, params["bn_g"], params["bn_b"])
    x_a = ft(params["ft"][0], x_bn)[:, n_d:]
    out = jnp.zeros((x.shape[0], n_d), jnp.float32)
    priors = jnp.ones_like(x_bn)
    loss = jnp.zeros((1,), jnp.float32)
    for s in range(n_steps - 1):
        ap = params["att"][s]
        h = bn(x_a @ ap["w"] + ap["b"], ap["bn_g"], ap["bn_b"])
        mask = sparsemax_sort(h * priors)
        loss = loss + jnp.mean(-mask * jnp.log(mask + 1e-10)).reshape(1)
        priors = priors * (relax - mask)
        x_te = ft(params["ft"][s + 1], x_bn * mask)
        out = out + jax.nn.relu(x_te[:, :n_d])
        x_a = x_te[:, n_d:]
    return out @ params["fc_w"] + params["fc_b"], loss


# ----------------------------------- main --------------------------------------

if __name__ == "__main__":
    B = 8
    inp_dim = 16
    final_out_dim = 4
    n_d, n_a = 8, 8
    n_shared, n_ind, n_steps = 2, 2, 3
    relax = 1.2

    key = jax.random.PRNGKey(0)
    kp, kx = jax.random.split(key)
    params = init_tabnet_params(kp, inp_dim, final_out_dim,
                                n_d, n_a, n_shared, n_ind, n_steps)
    packed = pack_params(params, n_d=n_d, n_a=n_a, n_ind=n_ind, n_steps=n_steps,
                         inp_dim=inp_dim, final_out_dim=final_out_dim)
    x = jax.random.normal(kx, (B, inp_dim), jnp.float32)

    fwd = jax.jit(functools.partial(tabnet_forward, n_d=n_d, n_a=n_a,
                                    n_ind=n_ind, n_steps=n_steps, relax=relax))
    logits, sparse_loss = fwd(packed, x)
    jax.block_until_ready((logits, sparse_loss))

    # correctness check against a pure-JAX f32 (XLA) reference of the same
    # training-mode forward; tolerance slightly relaxed because the kernel
    # uses bf16 MXU inputs (f32 accumulation / f32 elementwise everywhere).
    ref_logits, ref_loss = jax.jit(functools.partial(
        reference_forward, n_d=n_d, n_a=n_a, n_ind=n_ind,
        n_steps=n_steps, relax=relax))(params, x)
    jax.block_until_ready((ref_logits, ref_loss))

    assert logits.shape == (B, final_out_dim)
    assert sparse_loss.shape == (1,)
    assert jnp.allclose(logits, ref_logits, rtol=5e-2, atol=5e-2)
    assert jnp.allclose(sparse_loss, ref_loss, rtol=5e-2, atol=5e-2)
    print("KERNEL_OK")
</pallas_src>

<mosaic_0001>
module attributes {stable_mosaic.version = 11 : i64} {
  func.func @_tabnet_kernel(%arg0: memref<8x16xf32, #tpu.memory_space<vmem>>, %arg1: memref<8x16x32xbf16, #tpu.memory_space<vmem>>, %arg2: memref<2x8x16xbf16, #tpu.memory_space<vmem>>, %arg3: memref<8x4xbf16, #tpu.memory_space<vmem>>, %arg4: memref<41x32xf32, #tpu.memory_space<vmem>>, %arg5: memref<8x4xf32, #tpu.memory_space<vmem>>, %arg6: memref<1x1xf32, #tpu.memory_space<vmem>>) attributes {dimension_semantics = [], scalar_prefetch = 0 : i64, scratch_operands = 0 : i64, tpu.core_type = #tpu.core_type<tc>} {
    %c0 = arith.constant 0 : index
    %c0_0 = arith.constant 0 : index
    %0 = vector.load %arg0[%c0, %c0_0] : memref<8x16xf32, #tpu.memory_space<vmem>>, vector<8x16xf32>
    %c0_1 = arith.constant 0 : index
    %c0_2 = arith.constant 0 : index
    %1 = vector.load %arg4[%c0_1, %c0_2] : memref<41x32xf32, #tpu.memory_space<vmem>>, vector<1x32xf32>
    %2 = vector.extract_strided_slice %1 {offsets = [0, 0], sizes = [1, 16], strides = [1, 1]} : vector<1x32xf32> to vector<1x16xf32>
    %c1 = arith.constant 1 : index
    %c0_3 = arith.constant 0 : index
    %3 = vector.load %arg4[%c1, %c0_3] : memref<41x32xf32, #tpu.memory_space<vmem>>, vector<1x32xf32>
    %4 = vector.extract_strided_slice %3 {offsets = [0, 0], sizes = [1, 16], strides = [1, 1]} : vector<1x32xf32> to vector<1x16xf32>
    %cst = arith.constant dense<0.000000e+00> : vector<16xf32>
    %5 = vector.multi_reduction <add>, %0, %cst [0] : vector<8x16xf32> to vector<16xf32>
    %6 = vector.shape_cast %5 : vector<16xf32> to vector<1x16xf32>
    %cst_4 = arith.constant 8.000000e+00 : f32
    %7 = vector.broadcast %cst_4 : f32 to vector<1x16xf32>
    %8 = arith.divf %6, %7 : vector<1x16xf32>
    %9 = arith.mulf %0, %0 : vector<8x16xf32>
    %cst_5 = arith.constant dense<0.000000e+00> : vector<16xf32>
    %10 = vector.multi_reduction <add>, %9, %cst_5 [0] : vector<8x16xf32> to vector<16xf32>
    %11 = vector.shape_cast %10 : vector<16xf32> to vector<1x16xf32>
    %cst_6 = arith.constant 8.000000e+00 : f32
    %12 = vector.broadcast %cst_6 : f32 to vector<1x16xf32>
    %13 = arith.divf %11, %12 : vector<1x16xf32>
    %14 = arith.mulf %8, %8 : vector<1x16xf32>
    %15 = arith.subf %13, %14 : vector<1x16xf32>
    %cst_7 = arith.constant 0.000000e+00 : f32
    %16 = vector.broadcast %cst_7 : f32 to vector<1x16xf32>
    %17 = arith.maximumf %15, %16 : vector<1x16xf32>
    %18 = vector.broadcast %8 : vector<1x16xf32> to vector<8x16xf32>
    %19 = arith.subf %0, %18 : vector<8x16xf32>
    %cst_8 = arith.constant 9.99999974E-6 : f32
    %20 = vector.broadcast %cst_8 : f32 to vector<1x16xf32>
    %21 = arith.addf %17, %20 : vector<1x16xf32>
    %22 = math.rsqrt %21 : vector<1x16xf32>
    %23 = vector.broadcast %22 : vector<1x16xf32> to vector<8x16xf32>
    %24 = arith.mulf %19, %23 : vector<8x16xf32>
    %25 = vector.broadcast %2 : vector<1x16xf32> to vector<8x16xf32>
    %26 = arith.mulf %24, %25 : vector<8x16xf32>
    %27 = vector.broadcast %4 : vector<1x16xf32> to vector<8x16xf32>
    %28 = arith.addf %26, %27 : vector<8x16xf32>
    %29 = tpu.iota {dimensions = array<i32: 1>} : vector<8x16x16xi32>
    %30 = tpu.iota {dimensions = array<i32: 2>} : vector<8x16x16xi32>
    %31 = arith.cmpi sle, %30, %29 : vector<8x16x16xi32>
    %c2 = arith.constant 2 : index
    %c0_9 = arith.constant 0 : index
    %32 = vector.load %arg4[%c2, %c0_9] : memref<41x32xf32, #tpu.memory_space<vmem>>, vector<1x32xf32>
    %c10 = arith.constant 10 : index
    %c0_10 = arith.constant 0 : index
    %33 = vector.load %arg4[%c10, %c0_10] : memref<41x32xf32, #tpu.memory_space<vmem>>, vector<1x32xf32>
    %c22 = arith.constant 22 : index
    %c0_11 = arith.constant 0 : index
    %34 = vector.load %arg4[%c22, %c0_11] : memref<41x32xf32, #tpu.memory_space<vmem>>, vector<1x32xf32>
    %c0_12 = arith.constant 0 : index
    %c0_13 = arith.constant 0 : index
    %c0_14 = arith.constant 0 : index
    %35 = vector.load %arg1[%c0_12, %c0_13, %c0_14] : memref<8x16x32xbf16, #tpu.memory_space<vmem>>, vector<1x16x32xbf16>
    %36 = vector.shape_cast %35 : vector<1x16x32xbf16> to vector<16x32xbf16>
    %37 = arith.truncf %28 : vector<8x16xf32> to vector<8x16xbf16>
    %cst_15 = arith.constant dense<0.000000e+00> : vector<8x32xf32>
    %38 = tpu.matmul %37, %36, %cst_15 {dimension_numbers = #tpu.dot_dimension_numbers<[1], [0], [0], [1], [0, 0, 1, 1], [], []>} : vector<8x16xbf16>, vector<16x32xbf16>, vector<8x32xf32> -> vector<8x32xf32>
    %39 = vector.broadcast %32 : vector<1x32xf32> to vector<8x32xf32>
    %40 = arith.addf %38, %39 : vector<8x32xf32>
    %cst_16 = arith.constant dense<0.000000e+00> : vector<32xf32>
    %41 = vector.multi_reduction <add>, %40, %cst_16 [0] : vector<8x32xf32> to vector<32xf32>
    %42 = vector.shape_cast %41 : vector<32xf32> to vector<1x32xf32>
    %cst_17 = arith.constant 8.000000e+00 : f32
    %43 = vector.broadcast %cst_17 : f32 to vector<1x32xf32>
    %44 = arith.divf %42, %43 : vector<1x32xf32>
    %45 = arith.mulf %40, %40 : vector<8x32xf32>
    %cst_18 = arith.constant dense<0.000000e+00> : vector<32xf32>
    %46 = vector.multi_reduction <add>, %45, %cst_18 [0] : vector<8x32xf32> to vector<32xf32>
    %47 = vector.shape_cast %46 : vector<32xf32> to vector<1x32xf32>
    %cst_19 = arith.constant 8.000000e+00 : f32
    %48 = vector.broadcast %cst_19 : f32 to vector<1x32xf32>
    %49 = arith.divf %47, %48 : vector<1x32xf32>
    %50 = arith.mulf %44, %44 : vector<1x32xf32>
    %51 = arith.subf %49, %50 : vector<1x32xf32>
    %cst_20 = arith.constant 0.000000e+00 : f32
    %52 = vector.broadcast %cst_20 : f32 to vector<1x32xf32>
    %53 = arith.maximumf %51, %52 : vector<1x32xf32>
    %54 = vector.broadcast %44 : vector<1x32xf32> to vector<8x32xf32>
    %55 = arith.subf %40, %54 : vector<8x32xf32>
    %cst_21 = arith.constant 9.99999974E-6 : f32
    %56 = vector.broadcast %cst_21 : f32 to vector<1x32xf32>
    %57 = arith.addf %53, %56 : vector<1x32xf32>
    %58 = math.rsqrt %57 : vector<1x32xf32>
    %59 = vector.broadcast %58 : vector<1x32xf32> to vector<8x32xf32>
    %60 = arith.mulf %55, %59 : vector<8x32xf32>
    %61 = vector.broadcast %33 : vector<1x32xf32> to vector<8x32xf32>
    %62 = arith.mulf %60, %61 : vector<8x32xf32>
    %63 = vector.broadcast %34 : vector<1x32xf32> to vector<8x32xf32>
    %64 = arith.addf %62, %63 : vector<8x32xf32>
    %65 = vector.extract_strided_slice %64 {offsets = [0, 0], sizes = [8, 16], strides = [1, 1]} : vector<8x32xf32> to vector<8x16xf32>
    %66 = vector.extract_strided_slice %64 {offsets = [0, 16], sizes = [8, 16], strides = [1, 1]} : vector<8x32xf32> to vector<8x16xf32>
    %67 = arith.negf %66 : vector<8x16xf32>
    %68 = math.exp %67 : vector<8x16xf32>
    %cst_22 = arith.constant 1.000000e+00 : f32
    %69 = vector.broadcast %cst_22 : f32 to vector<8x16xf32>
    %70 = arith.addf %69, %68 : vector<8x16xf32>
    %71 = arith.divf %69, %70 : vector<8x16xf32>
    %72 = arith.mulf %65, %71 : vector<8x16xf32>
    %c3 = arith.constant 3 : index
    %c0_23 = arith.constant 0 : index
    %73 = vector.load %arg4[%c3, %c0_23] : memref<41x32xf32, #tpu.memory_space<vmem>>, vector<1x32xf32>
    %c11 = arith.constant 11 : index
    %c0_24 = arith.constant 0 : index
    %74 = vector.load %arg4[%c11, %c0_24] : memref<41x32xf32, #tpu.memory_space<vmem>>, vector<1x32xf32>
    %c23 = arith.constant 23 : index
    %c0_25 = arith.constant 0 : index
    %75 = vector.load %arg4[%c23, %c0_25] : memref<41x32xf32, #tpu.memory_space<vmem>>, vector<1x32xf32>
    %c1_26 = arith.constant 1 : index
    %c0_27 = arith.constant 0 : index
    %c0_28 = arith.constant 0 : index
    %76 = vector.load %arg1[%c1_26, %c0_27, %c0_28] : memref<8x16x32xbf16, #tpu.memory_space<vmem>>, vector<1x16x32xbf16>
    %77 = vector.shape_cast %76 : vector<1x16x32xbf16> to vector<16x32xbf16>
    %78 = arith.truncf %72 : vector<8x16xf32> to vector<8x16xbf16>
    %cst_29 = arith.constant dense<0.000000e+00> : vector<8x32xf32>
    %79 = tpu.matmul %78, %77, %cst_29 {dimension_numbers = #tpu.dot_dimension_numbers<[1], [0], [0], [1], [0, 0, 1, 1], [], []>} : vector<8x16xbf16>, vector<16x32xbf16>, vector<8x32xf32> -> vector<8x32xf32>
    %80 = vector.broadcast %73 : vector<1x32xf32> to vector<8x32xf32>
    %81 = arith.addf %79, %80 : vector<8x32xf32>
    %cst_30 = arith.constant dense<0.000000e+00> : vector<32xf32>
    %82 = vector.multi_reduction <add>, %81, %cst_30 [0] : vector<8x32xf32> to vector<32xf32>
    %83 = vector.shape_cast %82 : vector<32xf32> to vector<1x32xf32>
    %cst_31 = arith.constant 8.000000e+00 : f32
    %84 = vector.broadcast %cst_31 : f32 to vector<1x32xf32>
    %85 = arith.divf %83, %84 : vector<1x32xf32>
    %86 = arith.mulf %81, %81 : vector<8x32xf32>
    %cst_32 = arith.constant dense<0.000000e+00> : vector<32xf32>
    %87 = vector.multi_reduction <add>, %86, %cst_32 [0] : vector<8x32xf32> to vector<32xf32>
    %88 = vector.shape_cast %87 : vector<32xf32> to vector<1x32xf32>
    %cst_33 = arith.constant 8.000000e+00 : f32
    %89 = vector.broadcast %cst_33 : f32 to vector<1x32xf32>
    %90 = arith.divf %88, %89 : vector<1x32xf32>
    %91 = arith.mulf %85, %85 : vector<1x32xf32>
    %92 = arith.subf %90, %91 : vector<1x32xf32>
    %cst_34 = arith.constant 0.000000e+00 : f32
    %93 = vector.broadcast %cst_34 : f32 to vector<1x32xf32>
    %94 = arith.maximumf %92, %93 : vector<1x32xf32>
    %95 = vector.broadcast %85 : vector<1x32xf32> to vector<8x32xf32>
    %96 = arith.subf %81, %95 : vector<8x32xf32>
    %cst_35 = arith.constant 9.99999974E-6 : f32
    %97 = vector.broadcast %cst_35 : f32 to vector<1x32xf32>
    %98 = arith.addf %94, %97 : vector<1x32xf32>
    %99 = math.rsqrt %98 : vector<1x32xf32>
    %100 = vector.broadcast %99 : vector<1x32xf32> to vector<8x32xf32>
    %101 = arith.mulf %96, %100 : vector<8x32xf32>
    %102 = vector.broadcast %74 : vector<1x32xf32> to vector<8x32xf32>
    %103 = arith.mulf %101, %102 : vector<8x32xf32>
    %104 = vector.broadcast %75 : vector<1x32xf32> to vector<8x32xf32>
    %105 = arith.addf %103, %104 : vector<8x32xf32>
    %106 = vector.extract_strided_slice %105 {offsets = [0, 0], sizes = [8, 16], strides = [1, 1]} : vector<8x32xf32> to vector<8x16xf32>
    %107 = vector.extract_strided_slice %105 {offsets = [0, 16], sizes = [8, 16], strides = [1, 1]} : vector<8x32xf32> to vector<8x16xf32>
    %108 = arith.negf %107 : vector<8x16xf32>
    %109 = math.exp %108 : vector<8x16xf32>
    %cst_36 = arith.constant 1.000000e+00 : f32
    %110 = vector.broadcast %cst_36 : f32 to vector<8x16xf32>
    %111 = arith.addf %110, %109 : vector<8x16xf32>
    %112 = arith.divf %110, %111 : vector<8x16xf32>
    %113 = arith.mulf %106, %112 : vector<8x16xf32>
    %114 = arith.addf %72, %113 : vector<8x16xf32>
    %cst_37 = arith.constant 0.707106769 : f32
    %115 = vector.broadcast %cst_37 : f32 to vector<8x16xf32>
    %116 = arith.mulf %114, %115 : vector<8x16xf32>
    %c4 = arith.constant 4 : index
    %c0_38 = arith.constant 0 : index
    %117 = vector.load %arg4[%c4, %c0_38] : memref<41x32xf32, #tpu.memory_space<vmem>>, vector<1x32xf32>
    %c12 = arith.constant 12 : index
    %c0_39 = arith.constant 0 : index
    %118 = vector.load %arg4[%c12, %c0_39] : memref<41x32xf32, #tpu.memory_space<vmem>>, vector<1x32xf32>
    %c24 = arith.constant 24 : index
    %c0_40 = arith.constant 0 : index
    %119 = vector.load %arg4[%c24, %c0_40] : memref<41x32xf32, #tpu.memory_space<vmem>>, vector<1x32xf32>
    %c2_41 = arith.constant 2 : index
    %c0_42 = arith.constant 0 : index
    %c0_43 = arith.constant 0 : index
    %120 = vector.load %arg1[%c2_41, %c0_42, %c0_43] : memref<8x16x32xbf16, #tpu.memory_space<vmem>>, vector<1x16x32xbf16>
    %121 = vector.shape_cast %120 : vector<1x16x32xbf16> to vector<16x32xbf16>
    %122 = arith.truncf %116 : vector<8x16xf32> to vector<8x16xbf16>
    %cst_44 = arith.constant dense<0.000000e+00> : vector<8x32xf32>
    %123 = tpu.matmul %122, %121, %cst_44 {dimension_numbers = #tpu.dot_dimension_numbers<[1], [0], [0], [1], [0, 0, 1, 1], [], []>} : vector<8x16xbf16>, vector<16x32xbf16>, vector<8x32xf32> -> vector<8x32xf32>
    %124 = vector.broadcast %117 : vector<1x32xf32> to vector<8x32xf32>
    %125 = arith.addf %123, %124 : vector<8x32xf32>
    %cst_45 = arith.constant dense<0.000000e+00> : vector<32xf32>
    %126 = vector.multi_reduction <add>, %125, %cst_45 [0] : vector<8x32xf32> to vector<32xf32>
    %127 = vector.shape_cast %126 : vector<32xf32> to vector<1x32xf32>
    %cst_46 = arith.constant 8.000000e+00 : f32
    %128 = vector.broadcast %cst_46 : f32 to vector<1x32xf32>
    %129 = arith.divf %127, %128 : vector<1x32xf32>
    %130 = arith.mulf %125, %125 : vector<8x32xf32>
    %cst_47 = arith.constant dense<0.000000e+00> : vector<32xf32>
    %131 = vector.multi_reduction <add>, %130, %cst_47 [0] : vector<8x32xf32> to vector<32xf32>
    %132 = vector.shape_cast %131 : vector<32xf32> to vector<1x32xf32>
    %cst_48 = arith.constant 8.000000e+00 : f32
    %133 = vector.broadcast %cst_48 : f32 to vector<1x32xf32>
    %134 = arith.divf %132, %133 : vector<1x32xf32>
    %135 = arith.mulf %129, %129 : vector<1x32xf32>
    %136 = arith.subf %134, %135 : vector<1x32xf32>
    %cst_49 = arith.constant 0.000000e+00 : f32
    %137 = vector.broadcast %cst_49 : f32 to vector<1x32xf32>
    %138 = arith.maximumf %136, %137 : vector<1x32xf32>
    %139 = vector.broadcast %129 : vector<1x32xf32> to vector<8x32xf32>
    %140 = arith.subf %125, %139 : vector<8x32xf32>
    %cst_50 = arith.constant 9.99999974E-6 : f32
    %141 = vector.broadcast %cst_50 : f32 to vector<1x32xf32>
    %142 = arith.addf %138, %141 : vector<1x32xf32>
    %143 = math.rsqrt %142 : vector<1x32xf32>
    %144 = vector.broadcast %143 : vector<1x32xf32> to vector<8x32xf32>
    %145 = arith.mulf %140, %144 : vector<8x32xf32>
    %146 = vector.broadcast %118 : vector<1x32xf32> to vector<8x32xf32>
    %147 = arith.mulf %145, %146 : vector<8x32xf32>
    %148 = vector.broadcast %119 : vector<1x32xf32> to vector<8x32xf32>
    %149 = arith.addf %147, %148 : vector<8x32xf32>
    %150 = vector.extract_strided_slice %149 {offsets = [0, 0], sizes = [8, 16], strides = [1, 1]} : vector<8x32xf32> to vector<8x16xf32>
    %151 = vector.extract_strided_slice %149 {offsets = [0, 16], sizes = [8, 16], strides = [1, 1]} : vector<8x32xf32> to vector<8x16xf32>
    %152 = arith.negf %151 : vector<8x16xf32>
    %153 = math.exp %152 : vector<8x16xf32>
    %cst_51 = arith.constant 1.000000e+00 : f32
    %154 = vector.broadcast %cst_51 : f32 to vector<8x16xf32>
    %155 = arith.addf %154, %153 : vector<8x16xf32>
    %156 = arith.divf %154, %155 : vector<8x16xf32>
    %157 = arith.mulf %150, %156 : vector<8x16xf32>
    %158 = arith.addf %116, %157 : vector<8x16xf32>
    %cst_52 = arith.constant 0.707106769 : f32
    %159 = vector.broadcast %cst_52 : f32 to vector<8x16xf32>
    %160 = arith.mulf %158, %159 : vector<8x16xf32>
    %c5 = arith.constant 5 : index
    %c0_53 = arith.constant 0 : index
    %161 = vector.load %arg4[%c5, %c0_53] : memref<41x32xf32, #tpu.memory_space<vmem>>, vector<1x32xf32>
    %c13 = arith.constant 13 : index
    %c0_54 = arith.constant 0 : index
    %162 = vector.load %arg4[%c13, %c0_54] : memref<41x32xf32, #tpu.memory_space<vmem>>, vector<1x32xf32>
    %c25 = arith.constant 25 : index
    %c0_55 = arith.constant 0 : index
    %163 = vector.load %arg4[%c25, %c0_55] : memref<41x32xf32, #tpu.memory_space<vmem>>, vector<1x32xf32>
    %c3_56 = arith.constant 3 : index
    %c0_57 = arith.constant 0 : index
    %c0_58 = arith.constant 0 : index
    %164 = vector.load %arg1[%c3_56, %c0_57, %c0_58] : memref<8x16x32xbf16, #tpu.memory_space<vmem>>, vector<1x16x32xbf16>
    %165 = vector.shape_cast %164 : vector<1x16x32xbf16> to vector<16x32xbf16>
    %166 = arith.truncf %160 : vector<8x16xf32> to vector<8x16xbf16>
    %cst_59 = arith.constant dense<0.000000e+00> : vector<8x32xf32>
    %167 = tpu.matmul %166, %165, %cst_59 {dimension_numbers = #tpu.dot_dimension_numbers<[1], [0], [0], [1], [0, 0, 1, 1], [], []>} : vector<8x16xbf16>, vector<16x32xbf16>, vector<8x32xf32> -> vector<8x32xf32>
    %168 = vector.broadcast %161 : vector<1x32xf32> to vector<8x32xf32>
    %169 = arith.addf %167, %168 : vector<8x32xf32>
    %cst_60 = arith.constant dense<0.000000e+00> : vector<32xf32>
    %170 = vector.multi_reduction <add>, %169, %cst_60 [0] : vector<8x32xf32> to vector<32xf32>
    %171 = vector.shape_cast %170 : vector<32xf32> to vector<1x32xf32>
    %cst_61 = arith.constant 8.000000e+00 : f32
    %172 = vector.broadcast %cst_61 : f32 to vector<1x32xf32>
    %173 = arith.divf %171, %172 : vector<1x32xf32>
    %174 = arith.mulf %169, %169 : vector<8x32xf32>
    %cst_62 = arith.constant dense<0.000000e+00> : vector<32xf32>
    %175 = vector.multi_reduction <add>, %174, %cst_62 [0] : vector<8x32xf32> to vector<32xf32>
    %176 = vector.shape_cast %175 : vector<32xf32> to vector<1x32xf32>
    %cst_63 = arith.constant 8.000000e+00 : f32
    %177 = vector.broadcast %cst_63 : f32 to vector<1x32xf32>
    %178 = arith.divf %176, %177 : vector<1x32xf32>
    %179 = arith.mulf %173, %173 : vector<1x32xf32>
    %180 = arith.subf %178, %179 : vector<1x32xf32>
    %cst_64 = arith.constant 0.000000e+00 : f32
    %181 = vector.broadcast %cst_64 : f32 to vector<1x32xf32>
    %182 = arith.maximumf %180, %181 : vector<1x32xf32>
    %183 = vector.broadcast %173 : vector<1x32xf32> to vector<8x32xf32>
    %184 = arith.subf %169, %183 : vector<8x32xf32>
    %cst_65 = arith.constant 9.99999974E-6 : f32
    %185 = vector.broadcast %cst_65 : f32 to vector<1x32xf32>
    %186 = arith.addf %182, %185 : vector<1x32xf32>
    %187 = math.rsqrt %186 : vector<1x32xf32>
    %188 = vector.broadcast %187 : vector<1x32xf32> to vector<8x32xf32>
    %189 = arith.mulf %184, %188 : vector<8x32xf32>
    %190 = vector.broadcast %162 : vector<1x32xf32> to vector<8x32xf32>
    %191 = arith.mulf %189, %190 : vector<8x32xf32>
    %192 = vector.broadcast %163 : vector<1x32xf32> to vector<8x32xf32>
    %193 = arith.addf %191, %192 : vector<8x32xf32>
    %194 = vector.extract_strided_slice %193 {offsets = [0, 0], sizes = [8, 16], strides = [1, 1]} : vector<8x32xf32> to vector<8x16xf32>
    %195 = vector.extract_strided_slice %193 {offsets = [0, 16], sizes = [8, 16], strides = [1, 1]} : vector<8x32xf32> to vector<8x16xf32>
    %196 = arith.negf %195 : vector<8x16xf32>
    %197 = math.exp %196 : vector<8x16xf32>
    %cst_66 = arith.constant 1.000000e+00 : f32
    %198 = vector.broadcast %cst_66 : f32 to vector<8x16xf32>
    %199 = arith.addf %198, %197 : vector<8x16xf32>
    %200 = arith.divf %198, %199 : vector<8x16xf32>
    %201 = arith.mulf %194, %200 : vector<8x16xf32>
    %202 = arith.addf %160, %201 : vector<8x16xf32>
    %cst_67 = arith.constant 0.707106769 : f32
    %203 = vector.broadcast %cst_67 : f32 to vector<8x16xf32>
    %204 = arith.mulf %202, %203 : vector<8x16xf32>
    %205 = vector.extract_strided_slice %204 {offsets = [0, 8], sizes = [8, 8], strides = [1, 1]} : vector<8x16xf32> to vector<8x8xf32>
    %cst_68 = arith.constant 0.000000e+00 : f32
    %206 = vector.broadcast %cst_68 : f32 to vector<8x8xf32>
    %cst_69 = arith.constant 1.000000e+00 : f32
    %207 = vector.broadcast %cst_69 : f32 to vector<8x16xf32>
    %cst_70 = arith.constant 0.000000e+00 : f32
    %208 = vector.broadcast %cst_70 : f32 to vector<1x1xf32>
    %209 = arith.truncf %205 : vector<8x8xf32> to vector<8x8xbf16>
    %c0_71 = arith.constant 0 : index
    %c0_72 = arith.constant 0 : index
    %c0_73 = arith.constant 0 : index
    %210 = vector.load %arg2[%c0_71, %c0_72, %c0_73] : memref<2x8x16xbf16, #tpu.memory_space<vmem>>, vector<1x8x16xbf16>
    %211 = vector.shape_cast %210 : vector<1x8x16xbf16> to vector<8x16xbf16>
    %cst_74 = arith.constant dense<0.000000e+00> : vector<8x16xf32>
    %212 = tpu.matmul %209, %211, %cst_74 {dimension_numbers = #tpu.dot_dimension_numbers<[1], [0], [0], [1], [0, 0, 1, 1], [], []>} : vector<8x8xbf16>, vector<8x16xbf16>, vector<8x16xf32> -> vector<8x16xf32>
    %c34 = arith.constant 34 : index
    %c0_75 = arith.constant 0 : index
    %213 = vector.load %arg4[%c34, %c0_75] : memref<41x32xf32, #tpu.memory_space<vmem>>, vector<1x32xf32>
    %214 = vector.extract_strided_slice %213 {offsets = [0, 0], sizes = [1, 16], strides = [1, 1]} : vector<1x32xf32> to vector<1x16xf32>
    %215 = vector.broadcast %214 : vector<1x16xf32> to vector<8x16xf32>
    %216 = arith.addf %212, %215 : vector<8x16xf32>
    %c36 = arith.constant 36 : index
    %c0_76 = arith.constant 0 : index
    %217 = vector.load %arg4[%c36, %c0_76] : memref<41x32xf32, #tpu.memory_space<vmem>>, vector<1x32xf32>
    %218 = vector.extract_strided_slice %217 {offsets = [0, 0], sizes = [1, 16], strides = [1, 1]} : vector<1x32xf32> to vector<1x16xf32>
    %c38 = arith.constant 38 : index
    %c0_77 = arith.constant 0 : index
    %219 = vector.load %arg4[%c38, %c0_77] : memref<41x32xf32, #tpu.memory_space<vmem>>, vector<1x32xf32>
    %220 = vector.extract_strided_slice %219 {offsets = [0, 0], sizes = [1, 16], strides = [1, 1]} : vector<1x32xf32> to vector<1x16xf32>
    %cst_78 = arith.constant dense<0.000000e+00> : vector<16xf32>
    %221 = vector.multi_reduction <add>, %216, %cst_78 [0] : vector<8x16xf32> to vector<16xf32>
    %222 = vector.shape_cast %221 : vector<16xf32> to vector<1x16xf32>
    %cst_79 = arith.constant 8.000000e+00 : f32
    %223 = vector.broadcast %cst_79 : f32 to vector<1x16xf32>
    %224 = arith.divf %222, %223 : vector<1x16xf32>
    %225 = arith.mulf %216, %216 : vector<8x16xf32>
    %cst_80 = arith.constant dense<0.000000e+00> : vector<16xf32>
    %226 = vector.multi_reduction <add>, %225, %cst_80 [0] : vector<8x16xf32> to vector<16xf32>
    %227 = vector.shape_cast %226 : vector<16xf32> to vector<1x16xf32>
    %cst_81 = arith.constant 8.000000e+00 : f32
    %228 = vector.broadcast %cst_81 : f32 to vector<1x16xf32>
    %229 = arith.divf %227, %228 : vector<1x16xf32>
    %230 = arith.mulf %224, %224 : vector<1x16xf32>
    %231 = arith.subf %229, %230 : vector<1x16xf32>
    %cst_82 = arith.constant 0.000000e+00 : f32
    %232 = vector.broadcast %cst_82 : f32 to vector<1x16xf32>
    %233 = arith.maximumf %231, %232 : vector<1x16xf32>
    %234 = vector.broadcast %224 : vector<1x16xf32> to vector<8x16xf32>
    %235 = arith.subf %216, %234 : vector<8x16xf32>
    %cst_83 = arith.constant 9.99999974E-6 : f32
    %236 = vector.broadcast %cst_83 : f32 to vector<1x16xf32>
    %237 = arith.addf %233, %236 : vector<1x16xf32>
    %238 = math.rsqrt %237 : vector<1x16xf32>
    %239 = vector.broadcast %238 : vector<1x16xf32> to vector<8x16xf32>
    %240 = arith.mulf %235, %239 : vector<8x16xf32>
    %241 = vector.broadcast %218 : vector<1x16xf32> to vector<8x16xf32>
    %242 = arith.mulf %240, %241 : vector<8x16xf32>
    %243 = vector.broadcast %220 : vector<1x16xf32> to vector<8x16xf32>
    %244 = arith.addf %242, %243 : vector<8x16xf32>
    %245 = arith.mulf %244, %207 : vector<8x16xf32>
    %cst_84 = arith.constant dense<0xFF800000> : vector<8xf32>
    %246 = vector.multi_reduction <maximumf>, %245, %cst_84 [1] : vector<8x16xf32> to vector<8xf32>
    %247 = vector.shape_cast %246 : vector<8xf32> to vector<8x1xf32>
    %248 = vector.broadcast %247 : vector<8x1xf32> to vector<8x16xf32>
    %249 = arith.subf %245, %248 : vector<8x16xf32>
    %250 = vector.shape_cast %249 : vector<8x16xf32> to vector<8x16x1xf32>
    %251 = vector.shape_cast %249 : vector<8x16xf32> to vector<8x1x16xf32>
    %252 = vector.broadcast %251 : vector<8x1x16xf32> to vector<8x16x16xf32>
    %253 = vector.broadcast %250 : vector<8x16x1xf32> to vector<8x16x16xf32>
    %254 = arith.cmpf ogt, %252, %253 : vector<8x16x16xf32>
    %255 = vector.broadcast %251 : vector<8x1x16xf32> to vector<8x16x16xf32>
    %256 = vector.broadcast %250 : vector<8x16x1xf32> to vector<8x16x16xf32>
    %257 = arith.cmpf oeq, %255, %256 : vector<8x16x16xf32>
    %258 = arith.andi %257, %31 : vector<8x16x16xi1>
    %259 = arith.ori %254, %258 : vector<8x16x16xi1>
    %260 = arith.extui %259 : vector<8x16x16xi1> to vector<8x16x16xi32>
    %261 = arith.sitofp %260 : vector<8x16x16xi32> to vector<8x16x16xf32>
    %cst_85 = arith.constant dense<0.000000e+00> : vector<8x16xf32>
    %262 = vector.multi_reduction <add>, %261, %cst_85 [2] : vector<8x16x16xf32> to vector<8x16xf32>
    %263 = vector.broadcast %251 : vector<8x1x16xf32> to vector<8x16x16xf32>
    %264 = arith.mulf %261, %263 : vector<8x16x16xf32>
    %cst_86 = arith.constant dense<0.000000e+00> : vector<8x16xf32>
    %265 = vector.multi_reduction <add>, %264, %cst_86 [2] : vector<8x16x16xf32> to vector<8x16xf32>
    %266 = arith.mulf %262, %249 : vector<8x16xf32>
    %cst_87 = arith.constant 1.000000e+00 : f32
    %267 = vector.broadcast %cst_87 : f32 to vector<8x16xf32>
    %268 = arith.addf %267, %266 : vector<8x16xf32>
    %269 = arith.cmpf ogt, %268, %265 : vector<8x16xf32>
    %270 = arith.extui %269 : vector<8x16xi1> to vector<8x16xi32>
    %271 = arith.sitofp %270 : vector<8x16xi32> to vector<8x16xf32>
    %272 = arith.mulf %271, %262 : vector<8x16xf32>
    %cst_88 = arith.constant dense<0xFF800000> : vector<8xf32>
    %273 = vector.multi_reduction <maximumf>, %272, %cst_88 [1] : vector<8x16xf32> to vector<8xf32>
    %274 = vector.shape_cast %273 : vector<8xf32> to vector<8x1xf32>
    %275 = arith.mulf %271, %249 : vector<8x16xf32>
    %cst_89 = arith.constant dense<0.000000e+00> : vector<8xf32>
    %276 = vector.multi_reduction <add>, %275, %cst_89 [1] : vector<8x16xf32> to vector<8xf32>
    %277 = vector.shape_cast %276 : vector<8xf32> to vector<8x1xf32>
    %cst_90 = arith.constant 1.000000e+00 : f32
    %278 = vector.broadcast %cst_90 : f32 to vector<8x1xf32>
    %279 = arith.subf %277, %278 : vector<8x1xf32>
    %280 = arith.divf %279, %274 : vector<8x1xf32>
    %281 = vector.broadcast %280 : vector<8x1xf32> to vector<8x16xf32>
    %282 = arith.subf %249, %281 : vector<8x16xf32>
    %cst_91 = arith.constant 0.000000e+00 : f32
    %283 = vector.broadcast %cst_91 : f32 to vector<8x16xf32>
    %284 = arith.maximumf %282, %283 : vector<8x16xf32>
    %cst_92 = arith.constant 0.000000e+00 : f32
    %285 = vector.broadcast %cst_92 : f32 to vector<8x16xf32>
    %286 = arith.subf %285, %284 : vector<8x16xf32>
    %cst_93 = arith.constant 1.000000e-10 : f32
    %287 = vector.broadcast %cst_93 : f32 to vector<8x16xf32>
    %288 = arith.addf %284, %287 : vector<8x16xf32>
    %289 = math.log %288 : vector<8x16xf32>
    %290 = arith.mulf %286, %289 : vector<8x16xf32>
    %cst_94 = arith.constant dense<0.000000e+00> : vector<8xf32>
    %291 = vector.multi_reduction <add>, %290, %cst_94 [1] : vector<8x16xf32> to vector<8xf32>
    %292 = vector.shape_cast %291 : vector<8xf32> to vector<8x1xf32>
    %cst_95 = arith.constant dense<0.000000e+00> : vector<1xf32>
    %293 = vector.multi_reduction <add>, %292, %cst_95 [0] : vector<8x1xf32> to vector<1xf32>
    %294 = vector.shape_cast %293 : vector<1xf32> to vector<1x1xf32>
    %cst_96 = arith.constant 7.812500e-03 : f32
    %295 = vector.broadcast %cst_96 : f32 to vector<1x1xf32>
    %296 = arith.mulf %294, %295 : vector<1x1xf32>
    %297 = arith.addf %208, %296 : vector<1x1xf32>
    %cst_97 = arith.constant 1.200000e+00 : f32
    %298 = vector.broadcast %cst_97 : f32 to vector<8x16xf32>
    %299 = arith.subf %298, %284 : vector<8x16xf32>
    %300 = arith.mulf %207, %299 : vector<8x16xf32>
    %301 = arith.mulf %28, %284 : vector<8x16xf32>
    %c2_98 = arith.constant 2 : index
    %c0_99 = arith.constant 0 : index
    %302 = vector.load %arg4[%c2_98, %c0_99] : memref<41x32xf32, #tpu.memory_space<vmem>>, vector<1x32xf32>
    %c14 = arith.constant 14 : index
    %c0_100 = arith.constant 0 : index
    %303 = vector.load %arg4[%c14, %c0_100] : memref<41x32xf32, #tpu.memory_space<vmem>>, vector<1x32xf32>
    %c26 = arith.constant 26 : index
    %c0_101 = arith.constant 0 : index
    %304 = vector.load %arg4[%c26, %c0_101] : memref<41x32xf32, #tpu.memory_space<vmem>>, vector<1x32xf32>
    %c0_102 = arith.constant 0 : index
    %c0_103 = arith.constant 0 : index
    %c0_104 = arith.constant 0 : index
    %305 = vector.load %arg1[%c0_102, %c0_103, %c0_104] : memref<8x16x32xbf16, #tpu.memory_space<vmem>>, vector<1x16x32xbf16>
    %306 = vector.shape_cast %305 : vector<1x16x32xbf16> to vector<16x32xbf16>
    %307 = arith.truncf %301 : vector<8x16xf32> to vector<8x16xbf16>
    %cst_105 = arith.constant dense<0.000000e+00> : vector<8x32xf32>
    %308 = tpu.matmul %307, %306, %cst_105 {dimension_numbers = #tpu.dot_dimension_numbers<[1], [0], [0], [1], [0, 0, 1, 1], [], []>} : vector<8x16xbf16>, vector<16x32xbf16>, vector<8x32xf32> -> vector<8x32xf32>
    %309 = vector.broadcast %302 : vector<1x32xf32> to vector<8x32xf32>
    %310 = arith.addf %308, %309 : vector<8x32xf32>
    %cst_106 = arith.constant dense<0.000000e+00> : vector<32xf32>
    %311 = vector.multi_reduction <add>, %310, %cst_106 [0] : vector<8x32xf32> to vector<32xf32>
    %312 = vector.shape_cast %311 : vector<32xf32> to vector<1x32xf32>
    %cst_107 = arith.constant 8.000000e+00 : f32
    %313 = vector.broadcast %cst_107 : f32 to vector<1x32xf32>
    %314 = arith.divf %312, %313 : vector<1x32xf32>
    %315 = arith.mulf %310, %310 : vector<8x32xf32>
    %cst_108 = arith.constant dense<0.000000e+00> : vector<32xf32>
    %316 = vector.multi_reduction <add>, %315, %cst_108 [0] : vector<8x32xf32> to vector<32xf32>
    %317 = vector.shape_cast %316 : vector<32xf32> to vector<1x32xf32>
    %cst_109 = arith.constant 8.000000e+00 : f32
    %318 = vector.broadcast %cst_109 : f32 to vector<1x32xf32>
    %319 = arith.divf %317, %318 : vector<1x32xf32>
    %320 = arith.mulf %314, %314 : vector<1x32xf32>
    %321 = arith.subf %319, %320 : vector<1x32xf32>
    %cst_110 = arith.constant 0.000000e+00 : f32
    %322 = vector.broadcast %cst_110 : f32 to vector<1x32xf32>
    %323 = arith.maximumf %321, %322 : vector<1x32xf32>
    %324 = vector.broadcast %314 : vector<1x32xf32> to vector<8x32xf32>
    %325 = arith.subf %310, %324 : vector<8x32xf32>
    %cst_111 = arith.constant 9.99999974E-6 : f32
    %326 = vector.broadcast %cst_111 : f32 to vector<1x32xf32>
    %327 = arith.addf %323, %326 : vector<1x32xf32>
    %328 = math.rsqrt %327 : vector<1x32xf32>
    %329 = vector.broadcast %328 : vector<1x32xf32> to vector<8x32xf32>
    %330 = arith.mulf %325, %329 : vector<8x32xf32>
    %331 = vector.broadcast %303 : vector<1x32xf32> to vector<8x32xf32>
    %332 = arith.mulf %330, %331 : vector<8x32xf32>
    %333 = vector.broadcast %304 : vector<1x32xf32> to vector<8x32xf32>
    %334 = arith.addf %332, %333 : vector<8x32xf32>
    %335 = vector.extract_strided_slice %334 {offsets = [0, 0], sizes = [8, 16], strides = [1, 1]} : vector<8x32xf32> to vector<8x16xf32>
    %336 = vector.extract_strided_slice %334 {offsets = [0, 16], sizes = [8, 16], strides = [1, 1]} : vector<8x32xf32> to vector<8x16xf32>
    %337 = arith.negf %336 : vector<8x16xf32>
    %338 = math.exp %337 : vector<8x16xf32>
    %cst_112 = arith.constant 1.000000e+00 : f32
    %339 = vector.broadcast %cst_112 : f32 to vector<8x16xf32>
    %340 = arith.addf %339, %338 : vector<8x16xf32>
    %341 = arith.divf %339, %340 : vector<8x16xf32>
    %342 = arith.mulf %335, %341 : vector<8x16xf32>
    %c3_113 = arith.constant 3 : index
    %c0_114 = arith.constant 0 : index
    %343 = vector.load %arg4[%c3_113, %c0_114] : memref<41x32xf32, #tpu.memory_space<vmem>>, vector<1x32xf32>
    %c15 = arith.constant 15 : index
    %c0_115 = arith.constant 0 : index
    %344 = vector.load %arg4[%c15, %c0_115] : memref<41x32xf32, #tpu.memory_space<vmem>>, vector<1x32xf32>
    %c27 = arith.constant 27 : index
    %c0_116 = arith.constant 0 : index
    %345 = vector.load %arg4[%c27, %c0_116] : memref<41x32xf32, #tpu.memory_space<vmem>>, vector<1x32xf32>
    %c1_117 = arith.constant 1 : index
    %c0_118 = arith.constant 0 : index
    %c0_119 = arith.constant 0 : index
    %346 = vector.load %arg1[%c1_117, %c0_118, %c0_119] : memref<8x16x32xbf16, #tpu.memory_space<vmem>>, vector<1x16x32xbf16>
    %347 = vector.shape_cast %346 : vector<1x16x32xbf16> to vector<16x32xbf16>
    %348 = arith.truncf %342 : vector<8x16xf32> to vector<8x16xbf16>
    %cst_120 = arith.constant dense<0.000000e+00> : vector<8x32xf32>
    %349 = tpu.matmul %348, %347, %cst_120 {dimension_numbers = #tpu.dot_dimension_numbers<[1], [0], [0], [1], [0, 0, 1, 1], [], []>} : vector<8x16xbf16>, vector<16x32xbf16>, vector<8x32xf32> -> vector<8x32xf32>
    %350 = vector.broadcast %343 : vector<1x32xf32> to vector<8x32xf32>
    %351 = arith.addf %349, %350 : vector<8x32xf32>
    %cst_121 = arith.constant dense<0.000000e+00> : vector<32xf32>
    %352 = vector.multi_reduction <add>, %351, %cst_121 [0] : vector<8x32xf32> to vector<32xf32>
    %353 = vector.shape_cast %352 : vector<32xf32> to vector<1x32xf32>
    %cst_122 = arith.constant 8.000000e+00 : f32
    %354 = vector.broadcast %cst_122 : f32 to vector<1x32xf32>
    %355 = arith.divf %353, %354 : vector<1x32xf32>
    %356 = arith.mulf %351, %351 : vector<8x32xf32>
    %cst_123 = arith.constant dense<0.000000e+00> : vector<32xf32>
    %357 = vector.multi_reduction <add>, %356, %cst_123 [0] : vector<8x32xf32> to vector<32xf32>
    %358 = vector.shape_cast %357 : vector<32xf32> to vector<1x32xf32>
    %cst_124 = arith.constant 8.000000e+00 : f32
    %359 = vector.broadcast %cst_124 : f32 to vector<1x32xf32>
    %360 = arith.divf %358, %359 : vector<1x32xf32>
    %361 = arith.mulf %355, %355 : vector<1x32xf32>
    %362 = arith.subf %360, %361 : vector<1x32xf32>
    %cst_125 = arith.constant 0.000000e+00 : f32
    %363 = vector.broadcast %cst_125 : f32 to vector<1x32xf32>
    %364 = arith.maximumf %362, %363 : vector<1x32xf32>
    %365 = vector.broadcast %355 : vector<1x32xf32> to vector<8x32xf32>
    %366 = arith.subf %351, %365 : vector<8x32xf32>
    %cst_126 = arith.constant 9.99999974E-6 : f32
    %367 = vector.broadcast %cst_126 : f32 to vector<1x32xf32>
    %368 = arith.addf %364, %367 : vector<1x32xf32>
    %369 = math.rsqrt %368 : vector<1x32xf32>
    %370 = vector.broadcast %369 : vector<1x32xf32> to vector<8x32xf32>
    %371 = arith.mulf %366, %370 : vector<8x32xf32>
    %372 = vector.broadcast %344 : vector<1x32xf32> to vector<8x32xf32>
    %373 = arith.mulf %371, %372 : vector<8x32xf32>
    %374 = vector.broadcast %345 : vector<1x32xf32> to vector<8x32xf32>
    %375 = arith.addf %373, %374 : vector<8x32xf32>
    %376 = vector.extract_strided_slice %375 {offsets = [0, 0], sizes = [8, 16], strides = [1, 1]} : vector<8x32xf32> to vector<8x16xf32>
    %377 = vector.extract_strided_slice %375 {offsets = [0, 16], sizes = [8, 16], strides = [1, 1]} : vector<8x32xf32> to vector<8x16xf32>
    %378 = arith.negf %377 : vector<8x16xf32>
    %379 = math.exp %378 : vector<8x16xf32>
    %cst_127 = arith.constant 1.000000e+00 : f32
    %380 = vector.broadcast %cst_127 : f32 to vector<8x16xf32>
    %381 = arith.addf %380, %379 : vector<8x16xf32>
    %382 = arith.divf %380, %381 : vector<8x16xf32>
    %383 = arith.mulf %376, %382 : vector<8x16xf32>
    %384 = arith.addf %342, %383 : vector<8x16xf32>
    %cst_128 = arith.constant 0.707106769 : f32
    %385 = vector.broadcast %cst_128 : f32 to vector<8x16xf32>
    %386 = arith.mulf %384, %385 : vector<8x16xf32>
    %c6 = arith.constant 6 : index
    %c0_129 = arith.constant 0 : index
    %387 = vector.load %arg4[%c6, %c0_129] : memref<41x32xf32, #tpu.memory_space<vmem>>, vector<1x32xf32>
    %c16 = arith.constant 16 : index
    %c0_130 = arith.constant 0 : index
    %388 = vector.load %arg4[%c16, %c0_130] : memref<41x32xf32, #tpu.memory_space<vmem>>, vector<1x32xf32>
    %c28 = arith.constant 28 : index
    %c0_131 = arith.constant 0 : index
    %389 = vector.load %arg4[%c28, %c0_131] : memref<41x32xf32, #tpu.memory_space<vmem>>, vector<1x32xf32>
    %c4_132 = arith.constant 4 : index
    %c0_133 = arith.constant 0 : index
    %c0_134 = arith.constant 0 : index
    %390 = vector.load %arg1[%c4_132, %c0_133, %c0_134] : memref<8x16x32xbf16, #tpu.memory_space<vmem>>, vector<1x16x32xbf16>
    %391 = vector.shape_cast %390 : vector<1x16x32xbf16> to vector<16x32xbf16>
    %392 = arith.truncf %386 : vector<8x16xf32> to vector<8x16xbf16>
    %cst_135 = arith.constant dense<0.000000e+00> : vector<8x32xf32>
    %393 = tpu.matmul %392, %391, %cst_135 {dimension_numbers = #tpu.dot_dimension_numbers<[1], [0], [0], [1], [0, 0, 1, 1], [], []>} : vector<8x16xbf16>, vector<16x32xbf16>, vector<8x32xf32> -> vector<8x32xf32>
    %394 = vector.broadcast %387 : vector<1x32xf32> to vector<8x32xf32>
    %395 = arith.addf %393, %394 : vector<8x32xf32>
    %cst_136 = arith.constant dense<0.000000e+00> : vector<32xf32>
    %396 = vector.multi_reduction <add>, %395, %cst_136 [0] : vector<8x32xf32> to vector<32xf32>
    %397 = vector.shape_cast %396 : vector<32xf32> to vector<1x32xf32>
    %cst_137 = arith.constant 8.000000e+00 : f32
    %398 = vector.broadcast %cst_137 : f32 to vector<1x32xf32>
    %399 = arith.divf %397, %398 : vector<1x32xf32>
    %400 = arith.mulf %395, %395 : vector<8x32xf32>
    %cst_138 = arith.constant dense<0.000000e+00> : vector<32xf32>
    %401 = vector.multi_reduction <add>, %400, %cst_138 [0] : vector<8x32xf32> to vector<32xf32>
    %402 = vector.shape_cast %401 : vector<32xf32> to vector<1x32xf32>
    %cst_139 = arith.constant 8.000000e+00 : f32
    %403 = vector.broadcast %cst_139 : f32 to vector<1x32xf32>
    %404 = arith.divf %402, %403 : vector<1x32xf32>
    %405 = arith.mulf %399, %399 : vector<1x32xf32>
    %406 = arith.subf %404, %405 : vector<1x32xf32>
    %cst_140 = arith.constant 0.000000e+00 : f32
    %407 = vector.broadcast %cst_140 : f32 to vector<1x32xf32>
    %408 = arith.maximumf %406, %407 : vector<1x32xf32>
    %409 = vector.broadcast %399 : vector<1x32xf32> to vector<8x32xf32>
    %410 = arith.subf %395, %409 : vector<8x32xf32>
    %cst_141 = arith.constant 9.99999974E-6 : f32
    %411 = vector.broadcast %cst_141 : f32 to vector<1x32xf32>
    %412 = arith.addf %408, %411 : vector<1x32xf32>
    %413 = math.rsqrt %412 : vector<1x32xf32>
    %414 = vector.broadcast %413 : vector<1x32xf32> to vector<8x32xf32>
    %415 = arith.mulf %410, %414 : vector<8x32xf32>
    %416 = vector.broadcast %388 : vector<1x32xf32> to vector<8x32xf32>
    %417 = arith.mulf %415, %416 : vector<8x32xf32>
    %418 = vector.broadcast %389 : vector<1x32xf32> to vector<8x32xf32>
    %419 = arith.addf %417, %418 : vector<8x32xf32>
    %420 = vector.extract_strided_slice %419 {offsets = [0, 0], sizes = [8, 16], strides = [1, 1]} : vector<8x32xf32> to vector<8x16xf32>
    %421 = vector.extract_strided_slice %419 {offsets = [0, 16], sizes = [8, 16], strides = [1, 1]} : vector<8x32xf32> to vector<8x16xf32>
    %422 = arith.negf %421 : vector<8x16xf32>
    %423 = math.exp %422 : vector<8x16xf32>
    %cst_142 = arith.constant 1.000000e+00 : f32
    %424 = vector.broadcast %cst_142 : f32 to vector<8x16xf32>
    %425 = arith.addf %424, %423 : vector<8x16xf32>
    %426 = arith.divf %424, %425 : vector<8x16xf32>
    %427 = arith.mulf %420, %426 : vector<8x16xf32>
    %428 = arith.addf %386, %427 : vector<8x16xf32>
    %cst_143 = arith.constant 0.707106769 : f32
    %429 = vector.broadcast %cst_143 : f32 to vector<8x16xf32>
    %430 = arith.mulf %428, %429 : vector<8x16xf32>
    %c7 = arith.constant 7 : index
    %c0_144 = arith.constant 0 : index
    %431 = vector.load %arg4[%c7, %c0_144] : memref<41x32xf32, #tpu.memory_space<vmem>>, vector<1x32xf32>
    %c17 = arith.constant 17 : index
    %c0_145 = arith.constant 0 : index
    %432 = vector.load %arg4[%c17, %c0_145] : memref<41x32xf32, #tpu.memory_space<vmem>>, vector<1x32xf32>
    %c29 = arith.constant 29 : index
    %c0_146 = arith.constant 0 : index
    %433 = vector.load %arg4[%c29, %c0_146] : memref<41x32xf32, #tpu.memory_space<vmem>>, vector<1x32xf32>
    %c5_147 = arith.constant 5 : index
    %c0_148 = arith.constant 0 : index
    %c0_149 = arith.constant 0 : index
    %434 = vector.load %arg1[%c5_147, %c0_148, %c0_149] : memref<8x16x32xbf16, #tpu.memory_space<vmem>>, vector<1x16x32xbf16>
    %435 = vector.shape_cast %434 : vector<1x16x32xbf16> to vector<16x32xbf16>
    %436 = arith.truncf %430 : vector<8x16xf32> to vector<8x16xbf16>
    %cst_150 = arith.constant dense<0.000000e+00> : vector<8x32xf32>
    %437 = tpu.matmul %436, %435, %cst_150 {dimension_numbers = #tpu.dot_dimension_numbers<[1], [0], [0], [1], [0, 0, 1, 1], [], []>} : vector<8x16xbf16>, vector<16x32xbf16>, vector<8x32xf32> -> vector<8x32xf32>
    %438 = vector.broadcast %431 : vector<1x32xf32> to vector<8x32xf32>
    %439 = arith.addf %437, %438 : vector<8x32xf32>
    %cst_151 = arith.constant dense<0.000000e+00> : vector<32xf32>
    %440 = vector.multi_reduction <add>, %439, %cst_151 [0] : vector<8x32xf32> to vector<32xf32>
    %441 = vector.shape_cast %440 : vector<32xf32> to vector<1x32xf32>
    %cst_152 = arith.constant 8.000000e+00 : f32
    %442 = vector.broadcast %cst_152 : f32 to vector<1x32xf32>
    %443 = arith.divf %441, %442 : vector<1x32xf32>
    %444 = arith.mulf %439, %439 : vector<8x32xf32>
    %cst_153 = arith.constant dense<0.000000e+00> : vector<32xf32>
    %445 = vector.multi_reduction <add>, %444, %cst_153 [0] : vector<8x32xf32> to vector<32xf32>
    %446 = vector.shape_cast %445 : vector<32xf32> to vector<1x32xf32>
    %cst_154 = arith.constant 8.000000e+00 : f32
    %447 = vector.broadcast %cst_154 : f32 to vector<1x32xf32>
    %448 = arith.divf %446, %447 : vector<1x32xf32>
    %449 = arith.mulf %443, %443 : vector<1x32xf32>
    %450 = arith.subf %448, %449 : vector<1x32xf32>
    %cst_155 = arith.constant 0.000000e+00 : f32
    %451 = vector.broadcast %cst_155 : f32 to vector<1x32xf32>
    %452 = arith.maximumf %450, %451 : vector<1x32xf32>
    %453 = vector.broadcast %443 : vector<1x32xf32> to vector<8x32xf32>
    %454 = arith.subf %439, %453 : vector<8x32xf32>
    %cst_156 = arith.constant 9.99999974E-6 : f32
    %455 = vector.broadcast %cst_156 : f32 to vector<1x32xf32>
    %456 = arith.addf %452, %455 : vector<1x32xf32>
    %457 = math.rsqrt %456 : vector<1x32xf32>
    %458 = vector.broadcast %457 : vector<1x32xf32> to vector<8x32xf32>
    %459 = arith.mulf %454, %458 : vector<8x32xf32>
    %460 = vector.broadcast %432 : vector<1x32xf32> to vector<8x32xf32>
    %461 = arith.mulf %459, %460 : vector<8x32xf32>
    %462 = vector.broadcast %433 : vector<1x32xf32> to vector<8x32xf32>
    %463 = arith.addf %461, %462 : vector<8x32xf32>
    %464 = vector.extract_strided_slice %463 {offsets = [0, 0], sizes = [8, 16], strides = [1, 1]} : vector<8x32xf32> to vector<8x16xf32>
    %465 = vector.extract_strided_slice %463 {offsets = [0, 16], sizes = [8, 16], strides = [1, 1]} : vector<8x32xf32> to vector<8x16xf32>
    %466 = arith.negf %465 : vector<8x16xf32>
    %467 = math.exp %466 : vector<8x16xf32>
    %cst_157 = arith.constant 1.000000e+00 : f32
    %468 = vector.broadcast %cst_157 : f32 to vector<8x16xf32>
    %469 = arith.addf %468, %467 : vector<8x16xf32>
    %470 = arith.divf %468, %469 : vector<8x16xf32>
    %471 = arith.mulf %464, %470 : vector<8x16xf32>
    %472 = arith.addf %430, %471 : vector<8x16xf32>
    %cst_158 = arith.constant 0.707106769 : f32
    %473 = vector.broadcast %cst_158 : f32 to vector<8x16xf32>
    %474 = arith.mulf %472, %473 : vector<8x16xf32>
    %475 = vector.extract_strided_slice %474 {offsets = [0, 0], sizes = [8, 8], strides = [1, 1]} : vector<8x16xf32> to vector<8x8xf32>
    %cst_159 = arith.constant 0.000000e+00 : f32
    %476 = vector.broadcast %cst_159 : f32 to vector<8x8xf32>
    %477 = arith.maximumf %475, %476 : vector<8x8xf32>
    %478 = arith.addf %206, %477 : vector<8x8xf32>
    %479 = vector.extract_strided_slice %474 {offsets = [0, 8], sizes = [8, 8], strides = [1, 1]} : vector<8x16xf32> to vector<8x8xf32>
    %480 = arith.truncf %479 : vector<8x8xf32> to vector<8x8xbf16>
    %c1_160 = arith.constant 1 : index
    %c0_161 = arith.constant 0 : index
    %c0_162 = arith.constant 0 : index
    %481 = vector.load %arg2[%c1_160, %c0_161, %c0_162] : memref<2x8x16xbf16, #tpu.memory_space<vmem>>, vector<1x8x16xbf16>
    %482 = vector.shape_cast %481 : vector<1x8x16xbf16> to vector<8x16xbf16>
    %cst_163 = arith.constant dense<0.000000e+00> : vector<8x16xf32>
    %483 = tpu.matmul %480, %482, %cst_163 {dimension_numbers = #tpu.dot_dimension_numbers<[1], [0], [0], [1], [0, 0, 1, 1], [], []>} : vector<8x8xbf16>, vector<8x16xbf16>, vector<8x16xf32> -> vector<8x16xf32>
    %c35 = arith.constant 35 : index
    %c0_164 = arith.constant 0 : index
    %484 = vector.load %arg4[%c35, %c0_164] : memref<41x32xf32, #tpu.memory_space<vmem>>, vector<1x32xf32>
    %485 = vector.extract_strided_slice %484 {offsets = [0, 0], sizes = [1, 16], strides = [1, 1]} : vector<1x32xf32> to vector<1x16xf32>
    %486 = vector.broadcast %485 : vector<1x16xf32> to vector<8x16xf32>
    %487 = arith.addf %483, %486 : vector<8x16xf32>
    %c37 = arith.constant 37 : index
    %c0_165 = arith.constant 0 : index
    %488 = vector.load %arg4[%c37, %c0_165] : memref<41x32xf32, #tpu.memory_space<vmem>>, vector<1x32xf32>
    %489 = vector.extract_strided_slice %488 {offsets = [0, 0], sizes = [1, 16], strides = [1, 1]} : vector<1x32xf32> to vector<1x16xf32>
    %c39 = arith.constant 39 : index
    %c0_166 = arith.constant 0 : index
    %490 = vector.load %arg4[%c39, %c0_166] : memref<41x32xf32, #tpu.memory_space<vmem>>, vector<1x32xf32>
    %491 = vector.extract_strided_slice %490 {offsets = [0, 0], sizes = [1, 16], strides = [1, 1]} : vector<1x32xf32> to vector<1x16xf32>
    %cst_167 = arith.constant dense<0.000000e+00> : vector<16xf32>
    %492 = vector.multi_reduction <add>, %487, %cst_167 [0] : vector<8x16xf32> to vector<16xf32>
    %493 = vector.shape_cast %492 : vector<16xf32> to vector<1x16xf32>
    %cst_168 = arith.constant 8.000000e+00 : f32
    %494 = vector.broadcast %cst_168 : f32 to vector<1x16xf32>
    %495 = arith.divf %493, %494 : vector<1x16xf32>
    %496 = arith.mulf %487, %487 : vector<8x16xf32>
    %cst_169 = arith.constant dense<0.000000e+00> : vector<16xf32>
    %497 = vector.multi_reduction <add>, %496, %cst_169 [0] : vector<8x16xf32> to vector<16xf32>
    %498 = vector.shape_cast %497 : vector<16xf32> to vector<1x16xf32>
    %cst_170 = arith.constant 8.000000e+00 : f32
    %499 = vector.broadcast %cst_170 : f32 to vector<1x16xf32>
    %500 = arith.divf %498, %499 : vector<1x16xf32>
    %501 = arith.mulf %495, %495 : vector<1x16xf32>
    %502 = arith.subf %500, %501 : vector<1x16xf32>
    %cst_171 = arith.constant 0.000000e+00 : f32
    %503 = vector.broadcast %cst_171 : f32 to vector<1x16xf32>
    %504 = arith.maximumf %502, %503 : vector<1x16xf32>
    %505 = vector.broadcast %495 : vector<1x16xf32> to vector<8x16xf32>
    %506 = arith.subf %487, %505 : vector<8x16xf32>
    %cst_172 = arith.constant 9.99999974E-6 : f32
    %507 = vector.broadcast %cst_172 : f32 to vector<1x16xf32>
    %508 = arith.addf %504, %507 : vector<1x16xf32>
    %509 = math.rsqrt %508 : vector<1x16xf32>
    %510 = vector.broadcast %509 : vector<1x16xf32> to vector<8x16xf32>
    %511 = arith.mulf %506, %510 : vector<8x16xf32>
    %512 = vector.broadcast %489 : vector<1x16xf32> to vector<8x16xf32>
    %513 = arith.mulf %511, %512 : vector<8x16xf32>
    %514 = vector.broadcast %491 : vector<1x16xf32> to vector<8x16xf32>
    %515 = arith.addf %513, %514 : vector<8x16xf32>
    %516 = arith.mulf %515, %300 : vector<8x16xf32>
    %cst_173 = arith.constant dense<0xFF800000> : vector<8xf32>
    %517 = vector.multi_reduction <maximumf>, %516, %cst_173 [1] : vector<8x16xf32> to vector<8xf32>
    %518 = vector.shape_cast %517 : vector<8xf32> to vector<8x1xf32>
    %519 = vector.broadcast %518 : vector<8x1xf32> to vector<8x16xf32>
    %520 = arith.subf %516, %519 : vector<8x16xf32>
    %521 = vector.shape_cast %520 : vector<8x16xf32> to vector<8x16x1xf32>
    %522 = vector.shape_cast %520 : vector<8x16xf32> to vector<8x1x16xf32>
    %523 = vector.broadcast %522 : vector<8x1x16xf32> to vector<8x16x16xf32>
    %524 = vector.broadcast %521 : vector<8x16x1xf32> to vector<8x16x16xf32>
    %525 = arith.cmpf ogt, %523, %524 : vector<8x16x16xf32>
    %526 = vector.broadcast %522 : vector<8x1x16xf32> to vector<8x16x16xf32>
    %527 = vector.broadcast %521 : vector<8x16x1xf32> to vector<8x16x16xf32>
    %528 = arith.cmpf oeq, %526, %527 : vector<8x16x16xf32>
    %529 = arith.andi %528, %31 : vector<8x16x16xi1>
    %530 = arith.ori %525, %529 : vector<8x16x16xi1>
    %531 = arith.extui %530 : vector<8x16x16xi1> to vector<8x16x16xi32>
    %532 = arith.sitofp %531 : vector<8x16x16xi32> to vector<8x16x16xf32>
    %cst_174 = arith.constant dense<0.000000e+00> : vector<8x16xf32>
    %533 = vector.multi_reduction <add>, %532, %cst_174 [2] : vector<8x16x16xf32> to vector<8x16xf32>
    %534 = vector.broadcast %522 : vector<8x1x16xf32> to vector<8x16x16xf32>
    %535 = arith.mulf %532, %534 : vector<8x16x16xf32>
    %cst_175 = arith.constant dense<0.000000e+00> : vector<8x16xf32>
    %536 = vector.multi_reduction <add>, %535, %cst_175 [2] : vector<8x16x16xf32> to vector<8x16xf32>
    %537 = arith.mulf %533, %520 : vector<8x16xf32>
    %cst_176 = arith.constant 1.000000e+00 : f32
    %538 = vector.broadcast %cst_176 : f32 to vector<8x16xf32>
    %539 = arith.addf %538, %537 : vector<8x16xf32>
    %540 = arith.cmpf ogt, %539, %536 : vector<8x16xf32>
    %541 = arith.extui %540 : vector<8x16xi1> to vector<8x16xi32>
    %542 = arith.sitofp %541 : vector<8x16xi32> to vector<8x16xf32>
    %543 = arith.mulf %542, %533 : vector<8x16xf32>
    %cst_177 = arith.constant dense<0xFF800000> : vector<8xf32>
    %544 = vector.multi_reduction <maximumf>, %543, %cst_177 [1] : vector<8x16xf32> to vector<8xf32>
    %545 = vector.shape_cast %544 : vector<8xf32> to vector<8x1xf32>
    %546 = arith.mulf %542, %520 : vector<8x16xf32>
    %cst_178 = arith.constant dense<0.000000e+00> : vector<8xf32>
    %547 = vector.multi_reduction <add>, %546, %cst_178 [1] : vector<8x16xf32> to vector<8xf32>
    %548 = vector.shape_cast %547 : vector<8xf32> to vector<8x1xf32>
    %cst_179 = arith.constant 1.000000e+00 : f32
    %549 = vector.broadcast %cst_179 : f32 to vector<8x1xf32>
    %550 = arith.subf %548, %549 : vector<8x1xf32>
    %551 = arith.divf %550, %545 : vector<8x1xf32>
    %552 = vector.broadcast %551 : vector<8x1xf32> to vector<8x16xf32>
    %553 = arith.subf %520, %552 : vector<8x16xf32>
    %cst_180 = arith.constant 0.000000e+00 : f32
    %554 = vector.broadcast %cst_180 : f32 to vector<8x16xf32>
    %555 = arith.maximumf %553, %554 : vector<8x16xf32>
    %cst_181 = arith.constant 0.000000e+00 : f32
    %556 = vector.broadcast %cst_181 : f32 to vector<8x16xf32>
    %557 = arith.subf %556, %555 : vector<8x16xf32>
    %cst_182 = arith.constant 1.000000e-10 : f32
    %558 = vector.broadcast %cst_182 : f32 to vector<8x16xf32>
    %559 = arith.addf %555, %558 : vector<8x16xf32>
    %560 = math.log %559 : vector<8x16xf32>
    %561 = arith.mulf %557, %560 : vector<8x16xf32>
    %cst_183 = arith.constant dense<0.000000e+00> : vector<8xf32>
    %562 = vector.multi_reduction <add>, %561, %cst_183 [1] : vector<8x16xf32> to vector<8xf32>
    %563 = vector.shape_cast %562 : vector<8xf32> to vector<8x1xf32>
    %cst_184 = arith.constant dense<0.000000e+00> : vector<1xf32>
    %564 = vector.multi_reduction <add>, %563, %cst_184 [0] : vector<8x1xf32> to vector<1xf32>
    %565 = vector.shape_cast %564 : vector<1xf32> to vector<1x1xf32>
    %cst_185 = arith.constant 7.812500e-03 : f32
    %566 = vector.broadcast %cst_185 : f32 to vector<1x1xf32>
    %567 = arith.mulf %565, %566 : vector<1x1xf32>
    %568 = arith.addf %297, %567 : vector<1x1xf32>
    %569 = arith.mulf %28, %555 : vector<8x16xf32>
    %c2_186 = arith.constant 2 : index
    %c0_187 = arith.constant 0 : index
    %570 = vector.load %arg4[%c2_186, %c0_187] : memref<41x32xf32, #tpu.memory_space<vmem>>, vector<1x32xf32>
    %c18 = arith.constant 18 : index
    %c0_188 = arith.constant 0 : index
    %571 = vector.load %arg4[%c18, %c0_188] : memref<41x32xf32, #tpu.memory_space<vmem>>, vector<1x32xf32>
    %c30 = arith.constant 30 : index
    %c0_189 = arith.constant 0 : index
    %572 = vector.load %arg4[%c30, %c0_189] : memref<41x32xf32, #tpu.memory_space<vmem>>, vector<1x32xf32>
    %c0_190 = arith.constant 0 : index
    %c0_191 = arith.constant 0 : index
    %c0_192 = arith.constant 0 : index
    %573 = vector.load %arg1[%c0_190, %c0_191, %c0_192] : memref<8x16x32xbf16, #tpu.memory_space<vmem>>, vector<1x16x32xbf16>
    %574 = vector.shape_cast %573 : vector<1x16x32xbf16> to vector<16x32xbf16>
    %575 = arith.truncf %569 : vector<8x16xf32> to vector<8x16xbf16>
    %cst_193 = arith.constant dense<0.000000e+00> : vector<8x32xf32>
    %576 = tpu.matmul %575, %574, %cst_193 {dimension_numbers = #tpu.dot_dimension_numbers<[1], [0], [0], [1], [0, 0, 1, 1], [], []>} : vector<8x16xbf16>, vector<16x32xbf16>, vector<8x32xf32> -> vector<8x32xf32>
    %577 = vector.broadcast %570 : vector<1x32xf32> to vector<8x32xf32>
    %578 = arith.addf %576, %577 : vector<8x32xf32>
    %cst_194 = arith.constant dense<0.000000e+00> : vector<32xf32>
    %579 = vector.multi_reduction <add>, %578, %cst_194 [0] : vector<8x32xf32> to vector<32xf32>
    %580 = vector.shape_cast %579 : vector<32xf32> to vector<1x32xf32>
    %cst_195 = arith.constant 8.000000e+00 : f32
    %581 = vector.broadcast %cst_195 : f32 to vector<1x32xf32>
    %582 = arith.divf %580, %581 : vector<1x32xf32>
    %583 = arith.mulf %578, %578 : vector<8x32xf32>
    %cst_196 = arith.constant dense<0.000000e+00> : vector<32xf32>
    %584 = vector.multi_reduction <add>, %583, %cst_196 [0] : vector<8x32xf32> to vector<32xf32>
    %585 = vector.shape_cast %584 : vector<32xf32> to vector<1x32xf32>
    %cst_197 = arith.constant 8.000000e+00 : f32
    %586 = vector.broadcast %cst_197 : f32 to vector<1x32xf32>
    %587 = arith.divf %585, %586 : vector<1x32xf32>
    %588 = arith.mulf %582, %582 : vector<1x32xf32>
    %589 = arith.subf %587, %588 : vector<1x32xf32>
    %cst_198 = arith.constant 0.000000e+00 : f32
    %590 = vector.broadcast %cst_198 : f32 to vector<1x32xf32>
    %591 = arith.maximumf %589, %590 : vector<1x32xf32>
    %592 = vector.broadcast %582 : vector<1x32xf32> to vector<8x32xf32>
    %593 = arith.subf %578, %592 : vector<8x32xf32>
    %cst_199 = arith.constant 9.99999974E-6 : f32
    %594 = vector.broadcast %cst_199 : f32 to vector<1x32xf32>
    %595 = arith.addf %591, %594 : vector<1x32xf32>
    %596 = math.rsqrt %595 : vector<1x32xf32>
    %597 = vector.broadcast %596 : vector<1x32xf32> to vector<8x32xf32>
    %598 = arith.mulf %593, %597 : vector<8x32xf32>
    %599 = vector.broadcast %571 : vector<1x32xf32> to vector<8x32xf32>
    %600 = arith.mulf %598, %599 : vector<8x32xf32>
    %601 = vector.broadcast %572 : vector<1x32xf32> to vector<8x32xf32>
    %602 = arith.addf %600, %601 : vector<8x32xf32>
    %603 = vector.extract_strided_slice %602 {offsets = [0, 0], sizes = [8, 16], strides = [1, 1]} : vector<8x32xf32> to vector<8x16xf32>
    %604 = vector.extract_strided_slice %602 {offsets = [0, 16], sizes = [8, 16], strides = [1, 1]} : vector<8x32xf32> to vector<8x16xf32>
    %605 = arith.negf %604 : vector<8x16xf32>
    %606 = math.exp %605 : vector<8x16xf32>
    %cst_200 = arith.constant 1.000000e+00 : f32
    %607 = vector.broadcast %cst_200 : f32 to vector<8x16xf32>
    %608 = arith.addf %607, %606 : vector<8x16xf32>
    %609 = arith.divf %607, %608 : vector<8x16xf32>
    %610 = arith.mulf %603, %609 : vector<8x16xf32>
    %c3_201 = arith.constant 3 : index
    %c0_202 = arith.constant 0 : index
    %611 = vector.load %arg4[%c3_201, %c0_202] : memref<41x32xf32, #tpu.memory_space<vmem>>, vector<1x32xf32>
    %c19 = arith.constant 19 : index
    %c0_203 = arith.constant 0 : index
    %612 = vector.load %arg4[%c19, %c0_203] : memref<41x32xf32, #tpu.memory_space<vmem>>, vector<1x32xf32>
    %c31 = arith.constant 31 : index
    %c0_204 = arith.constant 0 : index
    %613 = vector.load %arg4[%c31, %c0_204] : memref<41x32xf32, #tpu.memory_space<vmem>>, vector<1x32xf32>
    %c1_205 = arith.constant 1 : index
    %c0_206 = arith.constant 0 : index
    %c0_207 = arith.constant 0 : index
    %614 = vector.load %arg1[%c1_205, %c0_206, %c0_207] : memref<8x16x32xbf16, #tpu.memory_space<vmem>>, vector<1x16x32xbf16>
    %615 = vector.shape_cast %614 : vector<1x16x32xbf16> to vector<16x32xbf16>
    %616 = arith.truncf %610 : vector<8x16xf32> to vector<8x16xbf16>
    %cst_208 = arith.constant dense<0.000000e+00> : vector<8x32xf32>
    %617 = tpu.matmul %616, %615, %cst_208 {dimension_numbers = #tpu.dot_dimension_numbers<[1], [0], [0], [1], [0, 0, 1, 1], [], []>} : vector<8x16xbf16>, vector<16x32xbf16>, vector<8x32xf32> -> vector<8x32xf32>
    %618 = vector.broadcast %611 : vector<1x32xf32> to vector<8x32xf32>
    %619 = arith.addf %617, %618 : vector<8x32xf32>
    %cst_209 = arith.constant dense<0.000000e+00> : vector<32xf32>
    %620 = vector.multi_reduction <add>, %619, %cst_209 [0] : vector<8x32xf32> to vector<32xf32>
    %621 = vector.shape_cast %620 : vector<32xf32> to vector<1x32xf32>
    %cst_210 = arith.constant 8.000000e+00 : f32
    %622 = vector.broadcast %cst_210 : f32 to vector<1x32xf32>
    %623 = arith.divf %621, %622 : vector<1x32xf32>
    %624 = arith.mulf %619, %619 : vector<8x32xf32>
    %cst_211 = arith.constant dense<0.000000e+00> : vector<32xf32>
    %625 = vector.multi_reduction <add>, %624, %cst_211 [0] : vector<8x32xf32> to vector<32xf32>
    %626 = vector.shape_cast %625 : vector<32xf32> to vector<1x32xf32>
    %cst_212 = arith.constant 8.000000e+00 : f32
    %627 = vector.broadcast %cst_212 : f32 to vector<1x32xf32>
    %628 = arith.divf %626, %627 : vector<1x32xf32>
    %629 = arith.mulf %623, %623 : vector<1x32xf32>
    %630 = arith.subf %628, %629 : vector<1x32xf32>
    %cst_213 = arith.constant 0.000000e+00 : f32
    %631 = vector.broadcast %cst_213 : f32 to vector<1x32xf32>
    %632 = arith.maximumf %630, %631 : vector<1x32xf32>
    %633 = vector.broadcast %623 : vector<1x32xf32> to vector<8x32xf32>
    %634 = arith.subf %619, %633 : vector<8x32xf32>
    %cst_214 = arith.constant 9.99999974E-6 : f32
    %635 = vector.broadcast %cst_214 : f32 to vector<1x32xf32>
    %636 = arith.addf %632, %635 : vector<1x32xf32>
    %637 = math.rsqrt %636 : vector<1x32xf32>
    %638 = vector.broadcast %637 : vector<1x32xf32> to vector<8x32xf32>
    %639 = arith.mulf %634, %638 : vector<8x32xf32>
    %640 = vector.broadcast %612 : vector<1x32xf32> to vector<8x32xf32>
    %641 = arith.mulf %639, %640 : vector<8x32xf32>
    %642 = vector.broadcast %613 : vector<1x32xf32> to vector<8x32xf32>
    %643 = arith.addf %641, %642 : vector<8x32xf32>
    %644 = vector.extract_strided_slice %643 {offsets = [0, 0], sizes = [8, 16], strides = [1, 1]} : vector<8x32xf32> to vector<8x16xf32>
    %645 = vector.extract_strided_slice %643 {offsets = [0, 16], sizes = [8, 16], strides = [1, 1]} : vector<8x32xf32> to vector<8x16xf32>
    %646 = arith.negf %645 : vector<8x16xf32>
    %647 = math.exp %646 : vector<8x16xf32>
    %cst_215 = arith.constant 1.000000e+00 : f32
    %648 = vector.broadcast %cst_215 : f32 to vector<8x16xf32>
    %649 = arith.addf %648, %647 : vector<8x16xf32>
    %650 = arith.divf %648, %649 : vector<8x16xf32>
    %651 = arith.mulf %644, %650 : vector<8x16xf32>
    %652 = arith.addf %610, %651 : vector<8x16xf32>
    %cst_216 = arith.constant 0.707106769 : f32
    %653 = vector.broadcast %cst_216 : f32 to vector<8x16xf32>
    %654 = arith.mulf %652, %653 : vector<8x16xf32>
    %c8 = arith.constant 8 : index
    %c0_217 = arith.constant 0 : index
    %655 = vector.load %arg4[%c8, %c0_217] : memref<41x32xf32, #tpu.memory_space<vmem>>, vector<1x32xf32>
    %c20 = arith.constant 20 : index
    %c0_218 = arith.constant 0 : index
    %656 = vector.load %arg4[%c20, %c0_218] : memref<41x32xf32, #tpu.memory_space<vmem>>, vector<1x32xf32>
    %c32 = arith.constant 32 : index
    %c0_219 = arith.constant 0 : index
    %657 = vector.load %arg4[%c32, %c0_219] : memref<41x32xf32, #tpu.memory_space<vmem>>, vector<1x32xf32>
    %c6_220 = arith.constant 6 : index
    %c0_221 = arith.constant 0 : index
    %c0_222 = arith.constant 0 : index
    %658 = vector.load %arg1[%c6_220, %c0_221, %c0_222] : memref<8x16x32xbf16, #tpu.memory_space<vmem>>, vector<1x16x32xbf16>
    %659 = vector.shape_cast %658 : vector<1x16x32xbf16> to vector<16x32xbf16>
    %660 = arith.truncf %654 : vector<8x16xf32> to vector<8x16xbf16>
    %cst_223 = arith.constant dense<0.000000e+00> : vector<8x32xf32>
    %661 = tpu.matmul %660, %659, %cst_223 {dimension_numbers = #tpu.dot_dimension_numbers<[1], [0], [0], [1], [0, 0, 1, 1], [], []>} : vector<8x16xbf16>, vector<16x32xbf16>, vector<8x32xf32> -> vector<8x32xf32>
    %662 = vector.broadcast %655 : vector<1x32xf32> to vector<8x32xf32>
    %663 = arith.addf %661, %662 : vector<8x32xf32>
    %cst_224 = arith.constant dense<0.000000e+00> : vector<32xf32>
    %664 = vector.multi_reduction <add>, %663, %cst_224 [0] : vector<8x32xf32> to vector<32xf32>
    %665 = vector.shape_cast %664 : vector<32xf32> to vector<1x32xf32>
    %cst_225 = arith.constant 8.000000e+00 : f32
    %666 = vector.broadcast %cst_225 : f32 to vector<1x32xf32>
    %667 = arith.divf %665, %666 : vector<1x32xf32>
    %668 = arith.mulf %663, %663 : vector<8x32xf32>
    %cst_226 = arith.constant dense<0.000000e+00> : vector<32xf32>
    %669 = vector.multi_reduction <add>, %668, %cst_226 [0] : vector<8x32xf32> to vector<32xf32>
    %670 = vector.shape_cast %669 : vector<32xf32> to vector<1x32xf32>
    %cst_227 = arith.constant 8.000000e+00 : f32
    %671 = vector.broadcast %cst_227 : f32 to vector<1x32xf32>
    %672 = arith.divf %670, %671 : vector<1x32xf32>
    %673 = arith.mulf %667, %667 : vector<1x32xf32>
    %674 = arith.subf %672, %673 : vector<1x32xf32>
    %cst_228 = arith.constant 0.000000e+00 : f32
    %675 = vector.broadcast %cst_228 : f32 to vector<1x32xf32>
    %676 = arith.maximumf %674, %675 : vector<1x32xf32>
    %677 = vector.broadcast %667 : vector<1x32xf32> to vector<8x32xf32>
    %678 = arith.subf %663, %677 : vector<8x32xf32>
    %cst_229 = arith.constant 9.99999974E-6 : f32
    %679 = vector.broadcast %cst_229 : f32 to vector<1x32xf32>
    %680 = arith.addf %676, %679 : vector<1x32xf32>
    %681 = math.rsqrt %680 : vector<1x32xf32>
    %682 = vector.broadcast %681 : vector<1x32xf32> to vector<8x32xf32>
    %683 = arith.mulf %678, %682 : vector<8x32xf32>
    %684 = vector.broadcast %656 : vector<1x32xf32> to vector<8x32xf32>
    %685 = arith.mulf %683, %684 : vector<8x32xf32>
    %686 = vector.broadcast %657 : vector<1x32xf32> to vector<8x32xf32>
    %687 = arith.addf %685, %686 : vector<8x32xf32>
    %688 = vector.extract_strided_slice %687 {offsets = [0, 0], sizes = [8, 16], strides = [1, 1]} : vector<8x32xf32> to vector<8x16xf32>
    %689 = vector.extract_strided_slice %687 {offsets = [0, 16], sizes = [8, 16], strides = [1, 1]} : vector<8x32xf32> to vector<8x16xf32>
    %690 = arith.negf %689 : vector<8x16xf32>
    %691 = math.exp %690 : vector<8x16xf32>
    %cst_230 = arith.constant 1.000000e+00 : f32
    %692 = vector.broadcast %cst_230 : f32 to vector<8x16xf32>
    %693 = arith.addf %692, %691 : vector<8x16xf32>
    %694 = arith.divf %692, %693 : vector<8x16xf32>
    %695 = arith.mulf %688, %694 : vector<8x16xf32>
    %696 = arith.addf %654, %695 : vector<8x16xf32>
    %cst_231 = arith.constant 0.707106769 : f32
    %697 = vector.broadcast %cst_231 : f32 to vector<8x16xf32>
    %698 = arith.mulf %696, %697 : vector<8x16xf32>
    %c9 = arith.constant 9 : index
    %c0_232 = arith.constant 0 : index
    %699 = vector.load %arg4[%c9, %c0_232] : memref<41x32xf32, #tpu.memory_space<vmem>>, vector<1x32xf32>
    %c21 = arith.constant 21 : index
    %c0_233 = arith.constant 0 : index
    %700 = vector.load %arg4[%c21, %c0_233] : memref<41x32xf32, #tpu.memory_space<vmem>>, vector<1x32xf32>
    %c33 = arith.constant 33 : index
    %c0_234 = arith.constant 0 : index
    %701 = vector.load %arg4[%c33, %c0_234] : memref<41x32xf32, #tpu.memory_space<vmem>>, vector<1x32xf32>
    %c7_235 = arith.constant 7 : index
    %c0_236 = arith.constant 0 : index
    %c0_237 = arith.constant 0 : index
    %702 = vector.load %arg1[%c7_235, %c0_236, %c0_237] : memref<8x16x32xbf16, #tpu.memory_space<vmem>>, vector<1x16x32xbf16>
    %703 = vector.shape_cast %702 : vector<1x16x32xbf16> to vector<16x32xbf16>
    %704 = arith.truncf %698 : vector<8x16xf32> to vector<8x16xbf16>
    %cst_238 = arith.constant dense<0.000000e+00> : vector<8x32xf32>
    %705 = tpu.matmul %704, %703, %cst_238 {dimension_numbers = #tpu.dot_dimension_numbers<[1], [0], [0], [1], [0, 0, 1, 1], [], []>} : vector<8x16xbf16>, vector<16x32xbf16>, vector<8x32xf32> -> vector<8x32xf32>
    %706 = vector.broadcast %699 : vector<1x32xf32> to vector<8x32xf32>
    %707 = arith.addf %705, %706 : vector<8x32xf32>
    %cst_239 = arith.constant dense<0.000000e+00> : vector<32xf32>
    %708 = vector.multi_reduction <add>, %707, %cst_239 [0] : vector<8x32xf32> to vector<32xf32>
    %709 = vector.shape_cast %708 : vector<32xf32> to vector<1x32xf32>
    %cst_240 = arith.constant 8.000000e+00 : f32
    %710 = vector.broadcast %cst_240 : f32 to vector<1x32xf32>
    %711 = arith.divf %709, %710 : vector<1x32xf32>
    %712 = arith.mulf %707, %707 : vector<8x32xf32>
    %cst_241 = arith.constant dense<0.000000e+00> : vector<32xf32>
    %713 = vector.multi_reduction <add>, %712, %cst_241 [0] : vector<8x32xf32> to vector<32xf32>
    %714 = vector.shape_cast %713 : vector<32xf32> to vector<1x32xf32>
    %cst_242 = arith.constant 8.000000e+00 : f32
    %715 = vector.broadcast %cst_242 : f32 to vector<1x32xf32>
    %716 = arith.divf %714, %715 : vector<1x32xf32>
    %717 = arith.mulf %711, %711 : vector<1x32xf32>
    %718 = arith.subf %716, %717 : vector<1x32xf32>
    %cst_243 = arith.constant 0.000000e+00 : f32
    %719 = vector.broadcast %cst_243 : f32 to vector<1x32xf32>
    %720 = arith.maximumf %718, %719 : vector<1x32xf32>
    %721 = vector.broadcast %711 : vector<1x32xf32> to vector<8x32xf32>
    %722 = arith.subf %707, %721 : vector<8x32xf32>
    %cst_244 = arith.constant 9.99999974E-6 : f32
    %723 = vector.broadcast %cst_244 : f32 to vector<1x32xf32>
    %724 = arith.addf %720, %723 : vector<1x32xf32>
    %725 = math.rsqrt %724 : vector<1x32xf32>
    %726 = vector.broadcast %725 : vector<1x32xf32> to vector<8x32xf32>
    %727 = arith.mulf %722, %726 : vector<8x32xf32>
    %728 = vector.broadcast %700 : vector<1x32xf32> to vector<8x32xf32>
    %729 = arith.mulf %727, %728 : vector<8x32xf32>
    %730 = vector.broadcast %701 : vector<1x32xf32> to vector<8x32xf32>
    %731 = arith.addf %729, %730 : vector<8x32xf32>
    %732 = vector.extract_strided_slice %731 {offsets = [0, 0], sizes = [8, 16], strides = [1, 1]} : vector<8x32xf32> to vector<8x16xf32>
    %733 = vector.extract_strided_slice %731 {offsets = [0, 16], sizes = [8, 16], strides = [1, 1]} : vector<8x32xf32> to vector<8x16xf32>
    %734 = arith.negf %733 : vector<8x16xf32>
    %735 = math.exp %734 : vector<8x16xf32>
    %cst_245 = arith.constant 1.000000e+00 : f32
    %736 = vector.broadcast %cst_245 : f32 to vector<8x16xf32>
    %737 = arith.addf %736, %735 : vector<8x16xf32>
    %738 = arith.divf %736, %737 : vector<8x16xf32>
    %739 = arith.mulf %732, %738 : vector<8x16xf32>
    %740 = arith.addf %698, %739 : vector<8x16xf32>
    %cst_246 = arith.constant 0.707106769 : f32
    %741 = vector.broadcast %cst_246 : f32 to vector<8x16xf32>
    %742 = arith.mulf %740, %741 : vector<8x16xf32>
    %743 = vector.extract_strided_slice %742 {offsets = [0, 0], sizes = [8, 8], strides = [1, 1]} : vector<8x16xf32> to vector<8x8xf32>
    %cst_247 = arith.constant 0.000000e+00 : f32
    %744 = vector.broadcast %cst_247 : f32 to vector<8x8xf32>
    %745 = arith.maximumf %743, %744 : vector<8x8xf32>
    %746 = arith.addf %478, %745 : vector<8x8xf32>
    %747 = arith.truncf %746 : vector<8x8xf32> to vector<8x8xbf16>
    %c0_248 = arith.constant 0 : index
    %c0_249 = arith.constant 0 : index
    %748 = vector.load %arg3[%c0_248, %c0_249] : memref<8x4xbf16, #tpu.memory_space<vmem>>, vector<8x4xbf16>
    %cst_250 = arith.constant dense<0.000000e+00> : vector<8x4xf32>
    %749 = tpu.matmul %747, %748, %cst_250 {dimension_numbers = #tpu.dot_dimension_numbers<[1], [0], [0], [1], [0, 0, 1, 1], [], []>} : vector<8x8xbf16>, vector<8x4xbf16>, vector<8x4xf32> -> vector<8x4xf32>
    %c40 = arith.constant 40 : index
    %c0_251 = arith.constant 0 : index
    %750 = vector.load %arg4[%c40, %c0_251] : memref<41x32xf32, #tpu.memory_space<vmem>>, vector<1x32xf32>
    %751 = vector.extract_strided_slice %750 {offsets = [0, 0], sizes = [1, 4], strides = [1, 1]} : vector<1x32xf32> to vector<1x4xf32>
    %752 = vector.broadcast %751 : vector<1x4xf32> to vector<8x4xf32>
    %753 = arith.addf %749, %752 : vector<8x4xf32>
    %c0_252 = arith.constant 0 : index
    %c0_253 = arith.constant 0 : index
    %754 = vector.load %arg5[%c0_252, %c0_253] : memref<8x4xf32, #tpu.memory_space<vmem>>, vector<8x4xf32>
    tpu.vector_store %arg5[%c0_252, %c0_253], %753 {strides = array<i32>} : memref<8x4xf32, #tpu.memory_space<vmem>>, vector<8x4xf32>,
    %c0_254 = arith.constant 0 : index
    %c0_255 = arith.constant 0 : index
    %755 = vector.load %arg6[%c0_254, %c0_255] : memref<1x1xf32, #tpu.memory_space<vmem>>, vector<1x1xf32>
    tpu.vector_store %arg6[%c0_254, %c0_255], %568 {strides = array<i32>} : memref<1x1xf32, #tpu.memory_space<vmem>>, vector<1x1xf32>,
    return
  }
}

</mosaic_0001>

<llo_original>
// kernel: tabnet_forward.1
$region0: #{tabnet_forward.1}
  #allocation0 [shape = 'u32[]', space=smem, size = 0x4, offset = 0x4, fixed_abs, tag = 'smem constant byte address 0x4 - core index']
  #allocation1 [shape = 'u32[144,128]{1,0:T(1,128)}', space=vmem, size = 0x12000, scoped, tag = 'internal scratch']
  %s0 = inlined_call_operand.vmem [shape: f32[8,16], index: 0, kind: input, shape index: {}]
  %s1 = inlined_call_operand.vmem [shape: bf16[8,16,32], index: 1, kind: input, shape index: {}]
  %s2 = inlined_call_operand.vmem [shape: bf16[2,8,16], index: 2, kind: input, shape index: {}]
  %s3 = inlined_call_operand.vmem [shape: bf16[8,4], index: 3, kind: input, shape index: {}]
  %s4 = inlined_call_operand.vmem [shape: f32[41,32], index: 4, kind: input, shape index: {}]
  %s5 = inlined_call_operand.vmem [shape: f32[8,4], index: 5, kind: output, shape index: {0}]
  %s6 = inlined_call_operand.hbm [shape: f32[1,1], index: 6, kind: output, shape index: {1}]
  %7 = xla_tuple %s5, %s6
  %s8 = sld [smem:[#allocation0]]
  $region38: #{tabnet_forward.1} parent=0
    _
  %s10 = ssub.s32 1, %s8
  %s11 = scalar_select 0, %s10, %s8
  $region1: #{tabnet_forward.1} parent=0
    #allocation2 [shape = 'u8[512]{0}', space=vmem, size = 0x400, scoped, tag = 'output window, operand 1, single buffered']
    #allocation3 [shape = 's32[1]{0}', space=sflag, size = 0x4, scoped, tag = 'scoped memory for tabnet_forward.1']
    %12 = vsyncpa [#allocation3], 0
    // Predicated region
    $region2: #{tabnet_forward.1} parent=1 // pred_check
      _
    $region3: #{tabnet_forward.1} parent=1 // pred_check_branch
      %14 = sbr.rel (0) target = $region5
    $region4: #{tabnet_forward.1} parent=1 // pred_region
      _
    $region5: #{tabnet_forward.1} parent=1 // pred_fallthru
      _
    // Predicated region
    $region6: #{tabnet_forward.1} parent=1 // pred_check
      _
    $region7: #{tabnet_forward.1} parent=1 // pred_check_branch
      %16 = sbr.rel (0) target = $region9
    $region8: #{tabnet_forward.1} parent=1 // pred_region
      _
    $region9: #{tabnet_forward.1} parent=1 // pred_fallthru
      _
    // Predicated region
    $region10: #{tabnet_forward.1} parent=1 // pred_check
      _
    $region11: #{tabnet_forward.1} parent=1 // pred_check_branch
      %18 = sbr.rel (0) target = $region13
    $region12: #{tabnet_forward.1} parent=1 // pred_region
      _
    $region13: #{tabnet_forward.1} parent=1 // pred_fallthru
      _
    // Predicated region
    $region14: #{tabnet_forward.1} parent=1 // pred_check
      _
    $region15: #{tabnet_forward.1} parent=1 // pred_check_branch
      %20 = sbr.rel (0) target = $region17
    $region16: #{tabnet_forward.1} parent=1 // pred_region
      _
    $region17: #{tabnet_forward.1} parent=1 // pred_fallthru
      _
    // Predicated region
    $region18: #{tabnet_forward.1} parent=1 // pred_check
      _
    $region19: #{tabnet_forward.1} parent=1 // pred_check_branch
      %22 = sbr.rel (0) target = $region21
    $region20: #{tabnet_forward.1} parent=1 // pred_region
      _
    $region21: #{tabnet_forward.1} parent=1 // pred_fallthru
      _
    %v24 = vld [vmem:[%s0] sm:$0xff]
    %v25 = vld [vmem:[%s4] sm:$0x1]
    %v26 = vld [vmem:[%s4 + $0x1] sm:$0x1]
    %vm27 = vcmask 130048
    %v28 = vsel %vm27, %v24, 0.0
    %v29 = vrot.slane %v28, 4
    %v30 = vadd.f32 %v28, %v29
    %v31 = vrot.slane %v30, 2
    %v32 = vadd.f32 %v30, %v31
    %v33 = vrot.slane %v32, 1
    %v34 = vadd.f32 %v32, %v33
    %v35 = vrcp.pop 8.0
    %v36 = vmul.f32 %v34, %v35
    %v37 = vmul.f32 %v24, %v24
    %v38 = vsel %vm27, %v37, 0.0
    %v39 = vrot.slane %v38, 4
    %v40 = vadd.f32 %v38, %v39
    %v41 = vrot.slane %v40, 2
    %v42 = vadd.f32 %v40, %v41
    %v43 = vrot.slane %v42, 1
    %v44 = vadd.f32 %v42, %v43
    %v45 = vmul.f32 %v44, %v35
    %v46 = vmul.f32 %v36, %v36
    %v47 = vsub.f32 %v45, %v46
    %v48 = vmax.f32 %v47, 0.0
    %v49 = vsub.f32 %v24, %v36
    %v50 = vadd.f32 %v48, 1e-05
    %v51 = vrsqrt.pop %v50
    %v52 = vmul.f32 %v49, %v51
    %v53 = vlaneseq
    %v54 = vshrl.u32 %v53, 7
    %v55 = vsub.s32 0, %v54
    %v56 = vrot.slane %v25, %v55
    %v57 = vmul.f32 %v52, %v56
    %v58 = vlaneseq
    %v59 = vshrl.u32 %v58, 7
    %v60 = vsub.s32 0, %v59
    %v61 = vrot.slane %v26, %v60
    %v62 = vadd.f32 %v57, %v61
    %v63 = vlaneseq
    %v64 = vshrl.u32 %v63, 7
    %v65 = vadd.s32 %v64, 8
    %v66 = vlaneseq
    %v67 = vand.u32 %v66, 127
    %vm68 = vcmp.le.s32.totalorder %v67, %v64
    %vm69 = vcmp.le.s32.totalorder %v67, %v65
    %v70 = vld [vmem:[%s4 + $0x2] sm:$0x1]
    %v71 = vld [vmem:[%s4 + $0xa] sm:$0x1]
    %v72 = vld [vmem:[%s4 + $0x16] sm:$0x1]
    %v73 = vld [vmem:[%s1] sm:$0xf]
    %v74 = vld [vmem:[%s1 + $0x4] sm:$0xf]
    %v75 = vpack.c.bf16 %v62, %v62
    %v76 = vlaneseq
    %v77 = vshrl.u32 %v76, 7
    %v78 = vsub.s32 0, %v77
    %v79 = vrot.slane %v70, %v78
    %v82 = vunpack.c.l.b16 %v73
    %v83 = vunpack.c.l.b16 %v74
    %v84 = vpack.c.b16 %v83, %v82
    %v87 = vsel %vm27, %v75, 0
    %89 = vmatprep.subr.bf16.mxu0 0
    %90 = vmatpush1.bf16.msra.mxu0 %v84
    %91 = vmatprep.subr.bf16.mxu0 0
    %92 = vmatpush1.bf16.msra.mxu0 0
    %93 = vmatprep.subr.bf16.mxu0 0
    %94 = vmatpush1.bf16.msra.mxu0 0
    %95 = vmatprep.subr.bf16.mxu0 0
    %96 = vmatpush1.bf16.msra.mxu0 0
    %97 = vmatprep.subr.bf16.mxu0 0
    %98 = vmatpush1.bf16.msra.mxu0 0
    %99 = vmatprep.subr.bf16.mxu0 0
    %100 = vmatpush1.bf16.msra.mxu0 0
    %101 = vmatprep.subr.bf16.mxu0 0
    %102 = vmatpush1.bf16.msra.mxu0 0
    %103 = vmatprep.subr.bf16.mxu0 0
    %104 = vmatpush1.bf16.msra.mxu0 0
    %105 = vmatprep.subr.bf16.mxu0 0
    %106 = vmatpush1.bf16.msra.mxu0 0
    %107 = vmatprep.subr.bf16.mxu0 0
    %108 = vmatpush1.bf16.msra.mxu0 0
    %109 = vmatprep.subr.bf16.mxu0 0
    %110 = vmatpush1.bf16.msra.mxu0 0
    %111 = vmatprep.subr.bf16.mxu0 0
    %112 = vmatpush1.bf16.msra.mxu0 0
    %113 = vmatprep.subr.bf16.mxu0 0
    %114 = vmatpush1.bf16.msra.mxu0 0
    %115 = vmatprep.subr.bf16.mxu0 0
    %116 = vmatpush1.bf16.msra.mxu0 0
    %117 = vmatprep.subr.bf16.mxu0 0
    %118 = vmatpush1.bf16.msra.mxu0 0
    %119 = vmatprep.subr.bf16.mxu0 0
    %120 = vmatpush1.bf16.msra.mxu0 0
    %121 = vmatprep.mubr.bf16.mxu0 0
    %122 = vmatmul.mubr.bf16.gmra.mrb[0].mxu0 %v87
    %v123 = vpop.f32.mrb[0].mxu0
    %v124 = vadd.f32 %v79, %v123
    %v125 = vpop.f32.mrb[0].mxu0
    %v126 = vpop.f32.mrb[0].mxu0
    %v127 = vpop.f32.mrb[0].mxu0
    %128 = vdwg.mxu0
    %vm129 = vcmask 261120
    %v130 = vsel %vm129, %v124, 0.0
    %v131 = vrot.slane %v130, 4
    %v132 = vadd.f32 %v130, %v131
    %v133 = vrot.slane %v132, 2
    %v134 = vadd.f32 %v132, %v133
    %v135 = vrot.slane %v134, 1
    %v136 = vadd.f32 %v134, %v135
    %v137 = vmul.f32 %v136, %v35
    %v138 = vmul.f32 %v124, %v124
    %v139 = vsel %vm129, %v138, 0.0
    %v140 = vrot.slane %v139, 4
    %v141 = vadd.f32 %v139, %v140
    %v142 = vrot.slane %v141, 2
    %v143 = vadd.f32 %v141, %v142
    %v144 = vrot.slane %v143, 1
    %v145 = vadd.f32 %v143, %v144
    %v146 = vmul.f32 %v145, %v35
    %v147 = vmul.f32 %v137, %v137
    %v148 = vsub.f32 %v146, %v147
    %v149 = vmax.f32 %v148, 0.0
    %v150 = vsub.f32 %v124, %v137
    %v151 = vadd.f32 %v149, 1e-05
    %v152 = vrsqrt.pop %v151
    %v153 = vmul.f32 %v150, %v152
    %v154 = vlaneseq
    %v155 = vshrl.u32 %v154, 7
    %v156 = vsub.s32 0, %v155
    %v157 = vrot.slane %v71, %v156
    %v158 = vmul.f32 %v153, %v157
    %v159 = vlaneseq
    %v160 = vshrl.u32 %v159, 7
    %v161 = vsub.s32 0, %v160
    %v162 = vrot.slane %v72, %v161
    %v163 = vadd.f32 %v158, %v162
    %v164 = vxor.u32 %v163, 2147483648
    %v165 = vmul.f32 %v164, 1.442695
    %v166 = vpow.pop %v165
    %v167 = vadd.f32 %v166, 1.0
    %v168 = vrcp.pop %v167
    %v169 = vmul.f32 1.0, %v168
    %171 = vrot.lane.b32.xlu0 %v169, 112
    %v172 = vpop.permute.xlu0 %171
    %v174 = vmul.f32 %v163, %v172
    %v175 = vld [vmem:[%s4 + $0x3] sm:$0x1]
    %v176 = vld [vmem:[%s4 + $0xb] sm:$0x1]
    %v177 = vld [vmem:[%s4 + $0x17] sm:$0x1]
    %s178 = scalar_lea.vmem %s1, 8
    %v179 = vld [vmem:[%s178] sm:$0xf]
    %v180 = vld [vmem:[%s178 + $0x4] sm:$0xf]
    %v181 = vpack.c.bf16 %v174, %v174
    %v182 = vlaneseq
    %v183 = vshrl.u32 %v182, 7
    %v184 = vsub.s32 0, %v183
    %v185 = vrot.slane %v175, %v184
    %v188 = vunpack.c.l.b16 %v179
    %v189 = vunpack.c.l.b16 %v180
    %v190 = vpack.c.b16 %v189, %v188
    %v193 = vsel %vm27, %v181, 0
    %195 = vmatprep.subr.bf16.mxu0 0
    %196 = vmatpush1.bf16.msra.mxu0 %v190
    %197 = vmatprep.subr.bf16.mxu0 0
    %198 = vmatpush1.bf16.msra.mxu0 0
    %199 = vmatprep.subr.bf16.mxu0 0
    %200 = vmatpush1.bf16.msra.mxu0 0
    %201 = vmatprep.subr.bf16.mxu0 0
    %202 = vmatpush1.bf16.msra.mxu0 0
    %203 = vmatprep.subr.bf16.mxu0 0
    %204 = vmatpush1.bf16.msra.mxu0 0
    %205 = vmatprep.subr.bf16.mxu0 0
    %206 = vmatpush1.bf16.msra.mxu0 0
    %207 = vmatprep.subr.bf16.mxu0 0
    %208 = vmatpush1.bf16.msra.mxu0 0
    %209 = vmatprep.subr.bf16.mxu0 0
    %210 = vmatpush1.bf16.msra.mxu0 0
    %211 = vmatprep.subr.bf16.mxu0 0
    %212 = vmatpush1.bf16.msra.mxu0 0
    %213 = vmatprep.subr.bf16.mxu0 0
    %214 = vmatpush1.bf16.msra.mxu0 0
    %215 = vmatprep.subr.bf16.mxu0 0
    %216 = vmatpush1.bf16.msra.mxu0 0
    %217 = vmatprep.subr.bf16.mxu0 0
    %218 = vmatpush1.bf16.msra.mxu0 0
    %219 = vmatprep.subr.bf16.mxu0 0
    %220 = vmatpush1.bf16.msra.mxu0 0
    %221 = vmatprep.subr.bf16.mxu0 0
    %222 = vmatpush1.bf16.msra.mxu0 0
    %223 = vmatprep.subr.bf16.mxu0 0
    %224 = vmatpush1.bf16.msra.mxu0 0
    %225 = vmatprep.subr.bf16.mxu0 0
    %226 = vmatpush1.bf16.msra.mxu0 0
    %227 = vmatprep.mubr.bf16.mxu0 0
    %228 = vmatmul.mubr.bf16.gmra.mrb[0].mxu0 %v193
    %v229 = vpop.f32.mrb[0].mxu0
    %v230 = vadd.f32 %v185, %v229
    %v231 = vpop.f32.mrb[0].mxu0
    %v232 = vpop.f32.mrb[0].mxu0
    %v233 = vpop.f32.mrb[0].mxu0
    %234 = vdwg.mxu0
    %v235 = vsel %vm129, %v230, 0.0
    %v236 = vrot.slane %v235, 4
    %v237 = vadd.f32 %v235, %v236
    %v238 = vrot.slane %v237, 2
    %v239 = vadd.f32 %v237, %v238
    %v240 = vrot.slane %v239, 1
    %v241 = vadd.f32 %v239, %v240
    %v242 = vmul.f32 %v241, %v35
    %v243 = vmul.f32 %v230, %v230
    %v244 = vsel %vm129, %v243, 0.0
    %v245 = vrot.slane %v244, 4
    %v246 = vadd.f32 %v244, %v245
    %v247 = vrot.slane %v246, 2
    %v248 = vadd.f32 %v246, %v247
    %v249 = vrot.slane %v248, 1
    %v250 = vadd.f32 %v248, %v249
    %v251 = vmul.f32 %v250, %v35
    %v252 = vmul.f32 %v242, %v242
    %v253 = vsub.f32 %v251, %v252
    %v254 = vmax.f32 %v253, 0.0
    %v255 = vsub.f32 %v230, %v242
    %v256 = vadd.f32 %v254, 1e-05
    %v257 = vrsqrt.pop %v256
    %v258 = vmul.f32 %v255, %v257
    %v259 = vlaneseq
    %v260 = vshrl.u32 %v259, 7
    %v261 = vsub.s32 0, %v260
    %v262 = vrot.slane %v176, %v261
    %v263 = vmul.f32 %v258, %v262
    %v264 = vlaneseq
    %v265 = vshrl.u32 %v264, 7
    %v266 = vsub.s32 0, %v265
    %v267 = vrot.slane %v177, %v266
    %v268 = vadd.f32 %v263, %v267
    %v269 = vxor.u32 %v268, 2147483648
    %v270 = vmul.f32 %v269, 1.442695
    %v271 = vpow.pop %v270
    %v272 = vadd.f32 %v271, 1.0
    %v273 = vrcp.pop %v272
    %v274 = vmul.f32 1.0, %v273
    %276 = vrot.lane.b32.xlu0 %v274, 112
    %v277 = vpop.permute.xlu0 %276
    %v279 = vmul.f32 %v268, %v277
    %v280 = vadd.f32 %v174, %v279
    %v281 = vmul.f32 %v280, 0.70710677
    %v282 = vld [vmem:[%s4 + $0x4] sm:$0x1]
    %v283 = vld [vmem:[%s4 + $0xc] sm:$0x1]
    %v284 = vld [vmem:[%s4 + $0x18] sm:$0x1]
    %s285 = scalar_lea.vmem %s1, 16
    %v286 = vld [vmem:[%s285] sm:$0xf]
    %v287 = vld [vmem:[%s285 + $0x4] sm:$0xf]
    %v288 = vpack.c.bf16 %v281, %v281
    %v289 = vlaneseq
    %v290 = vshrl.u32 %v289, 7
    %v291 = vsub.s32 0, %v290
    %v292 = vrot.slane %v282, %v291
    %v295 = vunpack.c.l.b16 %v286
    %v296 = vunpack.c.l.b16 %v287
    %v297 = vpack.c.b16 %v296, %v295
    %v300 = vsel %vm27, %v288, 0
    %302 = vmatprep.subr.bf16.mxu0 0
    %303 = vmatpush1.bf16.msra.mxu0 %v297
    %304 = vmatprep.subr.bf16.mxu0 0
    %305 = vmatpush1.bf16.msra.mxu0 0
    %306 = vmatprep.subr.bf16.mxu0 0
    %307 = vmatpush1.bf16.msra.mxu0 0
    %308 = vmatprep.subr.bf16.mxu0 0
    %309 = vmatpush1.bf16.msra.mxu0 0
    %310 = vmatprep.subr.bf16.mxu0 0
    %311 = vmatpush1.bf16.msra.mxu0 0
    %312 = vmatprep.subr.bf16.mxu0 0
    %313 = vmatpush1.bf16.msra.mxu0 0
    %314 = vmatprep.subr.bf16.mxu0 0
    %315 = vmatpush1.bf16.msra.mxu0 0
    %316 = vmatprep.subr.bf16.mxu0 0
    %317 = vmatpush1.bf16.msra.mxu0 0
    %318 = vmatprep.subr.bf16.mxu0 0
    %319 = vmatpush1.bf16.msra.mxu0 0
    %320 = vmatprep.subr.bf16.mxu0 0
    %321 = vmatpush1.bf16.msra.mxu0 0
    %322 = vmatprep.subr.bf16.mxu0 0
    %323 = vmatpush1.bf16.msra.mxu0 0
    %324 = vmatprep.subr.bf16.mxu0 0
    %325 = vmatpush1.bf16.msra.mxu0 0
    %326 = vmatprep.subr.bf16.mxu0 0
    %327 = vmatpush1.bf16.msra.mxu0 0
    %328 = vmatprep.subr.bf16.mxu0 0
    %329 = vmatpush1.bf16.msra.mxu0 0
    %330 = vmatprep.subr.bf16.mxu0 0
    %331 = vmatpush1.bf16.msra.mxu0 0
    %332 = vmatprep.subr.bf16.mxu0 0
    %333 = vmatpush1.bf16.msra.mxu0 0
    %334 = vmatprep.mubr.bf16.mxu0 0
    %335 = vmatmul.mubr.bf16.gmra.mrb[0].mxu0 %v300
    %v336 = vpop.f32.mrb[0].mxu0
    %v337 = vadd.f32 %v292, %v336
    %v338 = vpop.f32.mrb[0].mxu0
    %v339 = vpop.f32.mrb[0].mxu0
    %v340 = vpop.f32.mrb[0].mxu0
    %341 = vdwg.mxu0
    %v342 = vsel %vm129, %v337, 0.0
    %v343 = vrot.slane %v342, 4
    %v344 = vadd.f32 %v342, %v343
    %v345 = vrot.slane %v344, 2
    %v346 = vadd.f32 %v344, %v345
    %v347 = vrot.slane %v346, 1
    %v348 = vadd.f32 %v346, %v347
    %v349 = vmul.f32 %v348, %v35
    %v350 = vmul.f32 %v337, %v337
    %v351 = vsel %vm129, %v350, 0.0
    %v352 = vrot.slane %v351, 4
    %v353 = vadd.f32 %v351, %v352
    %v354 = vrot.slane %v353, 2
    %v355 = vadd.f32 %v353, %v354
    %v356 = vrot.slane %v355, 1
    %v357 = vadd.f32 %v355, %v356
    %v358 = vmul.f32 %v357, %v35
    %v359 = vmul.f32 %v349, %v349
    %v360 = vsub.f32 %v358, %v359
    %v361 = vmax.f32 %v360, 0.0
    %v362 = vsub.f32 %v337, %v349
    %v363 = vadd.f32 %v361, 1e-05
    %v364 = vrsqrt.pop %v363
    %v365 = vmul.f32 %v362, %v364
    %v366 = vlaneseq
    %v367 = vshrl.u32 %v366, 7
    %v368 = vsub.s32 0, %v367
    %v369 = vrot.slane %v283, %v368
    %v370 = vmul.f32 %v365, %v369
    %v371 = vlaneseq
    %v372 = vshrl.u32 %v371, 7
    %v373 = vsub.s32 0, %v372
    %v374 = vrot.slane %v284, %v373
    %v375 = vadd.f32 %v370, %v374
    %v376 = vxor.u32 %v375, 2147483648
    %v377 = vmul.f32 %v376, 1.442695
    %v378 = vpow.pop %v377
    %v379 = vadd.f32 %v378, 1.0
    %v380 = vrcp.pop %v379
    %v381 = vmul.f32 1.0, %v380
    %383 = vrot.lane.b32.xlu0 %v381, 112
    %v384 = vpop.permute.xlu0 %383
    %v386 = vmul.f32 %v375, %v384
    %v387 = vadd.f32 %v281, %v386
    %v388 = vmul.f32 %v387, 0.70710677
    %v389 = vld [vmem:[%s4 + $0x5] sm:$0x1]
    %v390 = vld [vmem:[%s4 + $0xd] sm:$0x1]
    %v391 = vld [vmem:[%s4 + $0x19] sm:$0x1]
    %s392 = scalar_lea.vmem %s1, 24
    %v393 = vld [vmem:[%s392] sm:$0xf]
    %v394 = vld [vmem:[%s392 + $0x4] sm:$0xf]
    %v395 = vpack.c.bf16 %v388, %v388
    %v396 = vlaneseq
    %v397 = vshrl.u32 %v396, 7
    %v398 = vsub.s32 0, %v397
    %v399 = vrot.slane %v389, %v398
    %v402 = vunpack.c.l.b16 %v393
    %v403 = vunpack.c.l.b16 %v394
    %v404 = vpack.c.b16 %v403, %v402
    %v407 = vsel %vm27, %v395, 0
    %409 = vmatprep.subr.bf16.mxu0 0
    %410 = vmatpush1.bf16.msra.mxu0 %v404
    %411 = vmatprep.subr.bf16.mxu0 0
    %412 = vmatpush1.bf16.msra.mxu0 0
    %413 = vmatprep.subr.bf16.mxu0 0
    %414 = vmatpush1.bf16.msra.mxu0 0
    %415 = vmatprep.subr.bf16.mxu0 0
    %416 = vmatpush1.bf16.msra.mxu0 0
    %417 = vmatprep.subr.bf16.mxu0 0
    %418 = vmatpush1.bf16.msra.mxu0 0
    %419 = vmatprep.subr.bf16.mxu0 0
    %420 = vmatpush1.bf16.msra.mxu0 0
    %421 = vmatprep.subr.bf16.mxu0 0
    %422 = vmatpush1.bf16.msra.mxu0 0
    %423 = vmatprep.subr.bf16.mxu0 0
    %424 = vmatpush1.bf16.msra.mxu0 0
    %425 = vmatprep.subr.bf16.mxu0 0
    %426 = vmatpush1.bf16.msra.mxu0 0
    %427 = vmatprep.subr.bf16.mxu0 0
    %428 = vmatpush1.bf16.msra.mxu0 0
    %429 = vmatprep.subr.bf16.mxu0 0
    %430 = vmatpush1.bf16.msra.mxu0 0
    %431 = vmatprep.subr.bf16.mxu0 0
    %432 = vmatpush1.bf16.msra.mxu0 0
    %433 = vmatprep.subr.bf16.mxu0 0
    %434 = vmatpush1.bf16.msra.mxu0 0
    %435 = vmatprep.subr.bf16.mxu0 0
    %436 = vmatpush1.bf16.msra.mxu0 0
    %437 = vmatprep.subr.bf16.mxu0 0
    %438 = vmatpush1.bf16.msra.mxu0 0
    %439 = vmatprep.subr.bf16.mxu0 0
    %440 = vmatpush1.bf16.msra.mxu0 0
    %441 = vmatprep.mubr.bf16.mxu0 0
    %442 = vmatmul.mubr.bf16.gmra.mrb[0].mxu0 %v407
    %v443 = vpop.f32.mrb[0].mxu0
    %v444 = vadd.f32 %v399, %v443
    %v445 = vpop.f32.mrb[0].mxu0
    %v446 = vpop.f32.mrb[0].mxu0
    %v447 = vpop.f32.mrb[0].mxu0
    %448 = vdwg.mxu0
    %v449 = vsel %vm129, %v444, 0.0
    %v450 = vrot.slane %v449, 4
    %v451 = vadd.f32 %v449, %v450
    %v452 = vrot.slane %v451, 2
    %v453 = vadd.f32 %v451, %v452
    %v454 = vrot.slane %v453, 1
    %v455 = vadd.f32 %v453, %v454
    %v456 = vmul.f32 %v455, %v35
    %v457 = vmul.f32 %v444, %v444
    %v458 = vsel %vm129, %v457, 0.0
    %v459 = vrot.slane %v458, 4
    %v460 = vadd.f32 %v458, %v459
    %v461 = vrot.slane %v460, 2
    %v462 = vadd.f32 %v460, %v461
    %v463 = vrot.slane %v462, 1
    %v464 = vadd.f32 %v462, %v463
    %v465 = vmul.f32 %v464, %v35
    %v466 = vmul.f32 %v456, %v456
    %v467 = vsub.f32 %v465, %v466
    %v468 = vmax.f32 %v467, 0.0
    %v469 = vsub.f32 %v444, %v456
    %v470 = vadd.f32 %v468, 1e-05
    %v471 = vrsqrt.pop %v470
    %v472 = vmul.f32 %v469, %v471
    %v473 = vlaneseq
    %v474 = vshrl.u32 %v473, 7
    %v475 = vsub.s32 0, %v474
    %v476 = vrot.slane %v390, %v475
    %v477 = vmul.f32 %v472, %v476
    %v478 = vlaneseq
    %v479 = vshrl.u32 %v478, 7
    %v480 = vsub.s32 0, %v479
    %v481 = vrot.slane %v391, %v480
    %v482 = vadd.f32 %v477, %v481
    %v483 = vxor.u32 %v482, 2147483648
    %v484 = vmul.f32 %v483, 1.442695
    %v485 = vpow.pop %v484
    %v486 = vadd.f32 %v485, 1.0
    %v487 = vrcp.pop %v486
    %v488 = vmul.f32 1.0, %v487
    %490 = vrot.lane.b32.xlu0 %v488, 112
    %v491 = vpop.permute.xlu0 %490
    %v493 = vmul.f32 %v482, %v491
    %v494 = vadd.f32 %v388, %v493
    %v495 = vmul.f32 %v494, 0.70710677
    %v496 = vpack.c.bf16 %v495, %v495
    %v497 = vld [vmem:[%s2] sm:$0xf]
    %v498 = vld [vmem:[%s4 + $0x22] sm:$0x1]
    %v499 = vlaneseq
    %v500 = vshrl.u32 %v499, 7
    %v501 = vsub.s32 0, %v500
    %v502 = vrot.slane %v498, %v501
    %504 = vrot.lane.b32.xlu0 %v496, 120
    %v505 = vpop.permute.xlu0 %504
    %vm506 = vcmask 64512
    %v508 = vsel %vm506, %v505, 0
    %vm510 = vcmask 1043456
    %v512 = vsel %vm510, %v497, 0
    %514 = vmatprep.subr.bf16.mxu0 0
    %515 = vmatpush1.bf16.msra.mxu0 %v512
    %516 = vmatprep.subr.bf16.mxu0 0
    %517 = vmatpush1.bf16.msra.mxu0 0
    %518 = vmatprep.subr.bf16.mxu0 0
    %519 = vmatpush1.bf16.msra.mxu0 0
    %520 = vmatprep.subr.bf16.mxu0 0
    %521 = vmatpush1.bf16.msra.mxu0 0
    %522 = vmatprep.subr.bf16.mxu0 0
    %523 = vmatpush1.bf16.msra.mxu0 0
    %524 = vmatprep.subr.bf16.mxu0 0
    %525 = vmatpush1.bf16.msra.mxu0 0
    %526 = vmatprep.subr.bf16.mxu0 0
    %527 = vmatpush1.bf16.msra.mxu0 0
    %528 = vmatprep.subr.bf16.mxu0 0
    %529 = vmatpush1.bf16.msra.mxu0 0
    %530 = vmatprep.subr.bf16.mxu0 0
    %531 = vmatpush1.bf16.msra.mxu0 0
    %532 = vmatprep.subr.bf16.mxu0 0
    %533 = vmatpush1.bf16.msra.mxu0 0
    %534 = vmatprep.subr.bf16.mxu0 0
    %535 = vmatpush1.bf16.msra.mxu0 0
    %536 = vmatprep.subr.bf16.mxu0 0
    %537 = vmatpush1.bf16.msra.mxu0 0
    %538 = vmatprep.subr.bf16.mxu0 0
    %539 = vmatpush1.bf16.msra.mxu0 0
    %540 = vmatprep.subr.bf16.mxu0 0
    %541 = vmatpush1.bf16.msra.mxu0 0
    %542 = vmatprep.subr.bf16.mxu0 0
    %543 = vmatpush1.bf16.msra.mxu0 0
    %544 = vmatprep.subr.bf16.mxu0 0
    %545 = vmatpush1.bf16.msra.mxu0 0
    %546 = vmatprep.mubr.bf16.mxu0 0
    %547 = vmatmul.mubr.bf16.gmra.mrb[0].mxu0 %v508
    %v548 = vpop.f32.mrb[0].mxu0
    %v549 = vadd.f32 %v502, %v548
    %v550 = vpop.f32.mrb[0].mxu0
    %v551 = vpop.f32.mrb[0].mxu0
    %v552 = vpop.f32.mrb[0].mxu0
    %553 = vdwg.mxu0
    %v554 = vld [vmem:[%s4 + $0x24] sm:$0x1]
    %v555 = vld [vmem:[%s4 + $0x26] sm:$0x1]
    %v556 = vsel %vm27, %v549, 0.0
    %v557 = vrot.slane %v556, 4
    %v558 = vadd.f32 %v556, %v557
    %v559 = vrot.slane %v558, 2
    %v560 = vadd.f32 %v558, %v559
    %v561 = vrot.slane %v560, 1
    %v562 = vadd.f32 %v560, %v561
    %v563 = vmul.f32 %v562, %v35
    %v564 = vmul.f32 %v549, %v549
    %v565 = vsel %vm27, %v564, 0.0
    %v566 = vrot.slane %v565, 4
    %v567 = vadd.f32 %v565, %v566
    %v568 = vrot.slane %v567, 2
    %v569 = vadd.f32 %v567, %v568
    %v570 = vrot.slane %v569, 1
    %v571 = vadd.f32 %v569, %v570
    %v572 = vmul.f32 %v571, %v35
    %v573 = vmul.f32 %v563, %v563
    %v574 = vsub.f32 %v572, %v573
    %v575 = vmax.f32 %v574, 0.0
    %v576 = vsub.f32 %v549, %v563
    %v577 = vadd.f32 %v575, 1e-05
    %v578 = vrsqrt.pop %v577
    %v579 = vmul.f32 %v576, %v578
    %v580 = vlaneseq
    %v581 = vshrl.u32 %v580, 7
    %v582 = vsub.s32 0, %v581
    %v583 = vrot.slane %v554, %v582
    %v584 = vmul.f32 %v579, %v583
    %v585 = vlaneseq
    %v586 = vshrl.u32 %v585, 7
    %v587 = vsub.s32 0, %v586
    %v588 = vrot.slane %v555, %v587
    %v589 = vadd.f32 %v584, %v588
    %v590 = vsel %vm27, %v589, -inf
    %591 = vmax.xlane.f32.xlu0 %v590
    %v592 = vpop.xlane.xlu0 %591
    %v593 = vsub.f32 %v589, %v592
    %v594 = vlaneseq
    %v595 = vshrl.u32 %v594, 7
    %v596 = vsub.s32 0, %v595
    %v597 = vrot.slane %v593, %v596
    %599 = vbcast.lane.b32.xlu0 %v597, 256
    %v600 = vpop.permute.xlu0 %599
    %s602 = sor.u32 256, 8
    %603 = vbcast.lane.b32.xlu0 %v597, %s602
    %v604 = vpop.permute.xlu0 %603
    %v605 = vlaneseq
    %v606 = vshrl.u32 %v605, 7
    %v607 = vsub.s32 1, %v606
    %v608 = vrot.slane %v593, %v607
    %610 = vbcast.lane.b32.xlu0 %v608, 256
    %v611 = vpop.permute.xlu0 %610
    %s613 = sor.u32 256, 8
    %614 = vbcast.lane.b32.xlu0 %v608, %s613
    %v615 = vpop.permute.xlu0 %614
    %v616 = vlaneseq
    %v617 = vshrl.u32 %v616, 7
    %v618 = vsub.s32 2, %v617
    %v619 = vrot.slane %v593, %v618
    %621 = vbcast.lane.b32.xlu0 %v619, 256
    %v622 = vpop.permute.xlu0 %621
    %s624 = sor.u32 256, 8
    %625 = vbcast.lane.b32.xlu0 %v619, %s624
    %v626 = vpop.permute.xlu0 %625
    %v627 = vlaneseq
    %v628 = vshrl.u32 %v627, 7
    %v629 = vsub.s32 3, %v628
    %v630 = vrot.slane %v593, %v629
    %632 = vbcast.lane.b32.xlu0 %v630, 256
    %v633 = vpop.permute.xlu0 %632
    %s635 = sor.u32 256, 8
    %636 = vbcast.lane.b32.xlu0 %v630, %s635
    %v637 = vpop.permute.xlu0 %636
    %v638 = vlaneseq
    %v639 = vshrl.u32 %v638, 7
    %v640 = vsub.s32 4, %v639
    %v641 = vrot.slane %v593, %v640
    %643 = vbcast.lane.b32.xlu0 %v641, 256
    %v644 = vpop.permute.xlu0 %643
    %s646 = sor.u32 256, 8
    %647 = vbcast.lane.b32.xlu0 %v641, %s646
    %v648 = vpop.permute.xlu0 %647
    %v649 = vlaneseq
    %v650 = vshrl.u32 %v649, 7
    %v651 = vsub.s32 5, %v650
    %v652 = vrot.slane %v593, %v651
    %654 = vbcast.lane.b32.xlu0 %v652, 256
    %v655 = vpop.permute.xlu0 %654
    %s657 = sor.u32 256, 8
    %658 = vbcast.lane.b32.xlu0 %v652, %s657
    %v659 = vpop.permute.xlu0 %658
    %v660 = vlaneseq
    %v661 = vshrl.u32 %v660, 7
    %v662 = vsub.s32 6, %v661
    %v663 = vrot.slane %v593, %v662
    %665 = vbcast.lane.b32.xlu0 %v663, 256
    %v666 = vpop.permute.xlu0 %665
    %s668 = sor.u32 256, 8
    %669 = vbcast.lane.b32.xlu0 %v663, %s668
    %v670 = vpop.permute.xlu0 %669
    %v671 = vlaneseq
    %v672 = vshrl.u32 %v671, 7
    %v673 = vsub.s32 7, %v672
    %v674 = vrot.slane %v593, %v673
    %676 = vbcast.lane.b32.xlu0 %v674, 256
    %v677 = vpop.permute.xlu0 %676
    %s679 = sor.u32 256, 8
    %680 = vbcast.lane.b32.xlu0 %v674, %s679
    %v681 = vpop.permute.xlu0 %680
    %v683 = vcombine.high %v593, %v593
    %v685 = vunpack.c.l.s4 1966171168
    %v686 = vunpack.c.0.s8 %v685
    %v687 = vlaneseq
    %v688 = vshrl.u32 %v687, 7
    %v689 = vsub.s32 %v686, %v688
    %v690 = vrot.slane %v593, %v689
    %v692 = vunpack.c.l.s4 1966171168
    %v693 = vunpack.c.0.s8 %v692
    %v694 = vlaneseq
    %v695 = vshrl.u32 %v694, 7
    %v696 = vsub.s32 %v693, %v695
    %v697 = vrot.slane %v683, %v696
    %v698 = vcombine.high %v690, %v690
    %v699 = vcombine.high %v697, %v697
    %v701 = vunpack.c.l.s4 1966171168
    %v702 = vunpack.c.0.s8 %v701
    %v703 = vlaneseq
    %v704 = vshrl.u32 %v703, 7
    %v705 = vsub.s32 %v702, %v704
    %v706 = vrot.slane %v690, %v705
    %v708 = vunpack.c.l.s4 1966171168
    %v709 = vunpack.c.0.s8 %v708
    %v710 = vlaneseq
    %v711 = vshrl.u32 %v710, 7
    %v712 = vsub.s32 %v709, %v711
    %v713 = vrot.slane %v697, %v712
    %v715 = vunpack.c.l.s4 1966171168
    %v716 = vunpack.c.0.s8 %v715
    %v717 = vlaneseq
    %v718 = vshrl.u32 %v717, 7
    %v719 = vsub.s32 %v716, %v718
    %v720 = vrot.slane %v698, %v719
    %v722 = vunpack.c.l.s4 1966171168
    %v723 = vunpack.c.0.s8 %v722
    %v724 = vlaneseq
    %v725 = vshrl.u32 %v724, 7
    %v726 = vsub.s32 %v723, %v725
    %v727 = vrot.slane %v699, %v726
    %v728 = vcombine.high %v706, %v706
    %v729 = vcombine.high %v713, %v713
    %v730 = vcombine.high %v720, %v720
    %v731 = vcombine.high %v727, %v727
    %v732 = vlaneseq
    %v733 = vshrl.u32 %v732, 7
    %v734 = vsub.s32 0, %v733
    %v735 = vrot.slane %v706, %v734
    %v736 = vlaneseq
    %v737 = vshrl.u32 %v736, 7
    %v738 = vsub.s32 0, %v737
    %v739 = vrot.slane %v720, %v738
    %v740 = vlaneseq
    %v741 = vshrl.u32 %v740, 7
    %v742 = vsub.s32 0, %v741
    %v743 = vrot.slane %v728, %v742
    %v744 = vlaneseq
    %v745 = vshrl.u32 %v744, 7
    %v746 = vsub.s32 0, %v745
    %v747 = vrot.slane %v730, %v746
    %v748 = vlaneseq
    %v749 = vshrl.u32 %v748, 7
    %v750 = vsub.s32 0, %v749
    %v751 = vrot.slane %v713, %v750
    %v752 = vlaneseq
    %v753 = vshrl.u32 %v752, 7
    %v754 = vsub.s32 0, %v753
    %v755 = vrot.slane %v727, %v754
    %v756 = vlaneseq
    %v757 = vshrl.u32 %v756, 7
    %v758 = vsub.s32 0, %v757
    %v759 = vrot.slane %v729, %v758
    %v760 = vlaneseq
    %v761 = vshrl.u32 %v760, 7
    %v762 = vsub.s32 0, %v761
    %v763 = vrot.slane %v731, %v762
    %vm772 = vcmp.gt.f32.partialorder %v735, %v600
    %vm773 = vcmp.gt.f32.partialorder %v735, %v604
    %vm774 = vcmp.gt.f32.partialorder %v739, %v611
    %vm775 = vcmp.gt.f32.partialorder %v739, %v615
    %vm776 = vcmp.gt.f32.partialorder %v743, %v622
    %vm777 = vcmp.gt.f32.partialorder %v743, %v626
    %vm778 = vcmp.gt.f32.partialorder %v747, %v633
    %vm779 = vcmp.gt.f32.partialorder %v747, %v637
    %vm780 = vcmp.gt.f32.partialorder %v751, %v644
    %vm781 = vcmp.gt.f32.partialorder %v751, %v648
    %vm782 = vcmp.gt.f32.partialorder %v755, %v655
    %vm783 = vcmp.gt.f32.partialorder %v755, %v659
    %vm784 = vcmp.gt.f32.partialorder %v759, %v666
    %vm785 = vcmp.gt.f32.partialorder %v759, %v670
    %vm786 = vcmp.gt.f32.partialorder %v763, %v677
    %vm787 = vcmp.gt.f32.partialorder %v763, %v681
    %vm788 = vcmp.eq.f32.partialorder %v735, %v600
    %vm789 = vcmp.eq.f32.partialorder %v735, %v604
    %vm790 = vcmp.eq.f32.partialorder %v739, %v611
    %vm791 = vcmp.eq.f32.partialorder %v739, %v615
    %vm792 = vcmp.eq.f32.partialorder %v743, %v622
    %vm793 = vcmp.eq.f32.partialorder %v743, %v626
    %vm794 = vcmp.eq.f32.partialorder %v747, %v633
    %vm795 = vcmp.eq.f32.partialorder %v747, %v637
    %vm796 = vcmp.eq.f32.partialorder %v751, %v644
    %vm797 = vcmp.eq.f32.partialorder %v751, %v648
    %vm798 = vcmp.eq.f32.partialorder %v755, %v655
    %vm799 = vcmp.eq.f32.partialorder %v755, %v659
    %vm800 = vcmp.eq.f32.partialorder %v759, %v666
    %vm801 = vcmp.eq.f32.partialorder %v759, %v670
    %vm802 = vcmp.eq.f32.partialorder %v763, %v677
    %vm803 = vcmp.eq.f32.partialorder %v763, %v681
    %vm804 = vmand %vm788, %vm68
    %vm805 = vmand %vm789, %vm69
    %vm806 = vmand %vm790, %vm68
    %vm807 = vmand %vm791, %vm69
    %vm808 = vmand %vm792, %vm68
    %vm809 = vmand %vm793, %vm69
    %vm810 = vmand %vm794, %vm68
    %vm811 = vmand %vm795, %vm69
    %vm812 = vmand %vm796, %vm68
    %vm813 = vmand %vm797, %vm69
    %vm814 = vmand %vm798, %vm68
    %vm815 = vmand %vm799, %vm69
    %vm816 = vmand %vm800, %vm68
    %vm817 = vmand %vm801, %vm69
    %vm818 = vmand %vm802, %vm68
    %vm819 = vmand %vm803, %vm69
    %vm820 = vmor %vm772, %vm804
    %vm821 = vmor %vm773, %vm805
    %vm822 = vmor %vm774, %vm806
    %vm823 = vmor %vm775, %vm807
    %vm824 = vmor %vm776, %vm808
    %vm825 = vmor %vm777, %vm809
    %vm826 = vmor %vm778, %vm810
    %vm827 = vmor %vm779, %vm811
    %vm828 = vmor %vm780, %vm812
    %vm829 = vmor %vm781, %vm813
    %vm830 = vmor %vm782, %vm814
    %vm831 = vmor %vm783, %vm815
    %vm832 = vmor %vm784, %vm816
    %vm833 = vmor %vm785, %vm817
    %vm834 = vmor %vm786, %vm818
    %vm835 = vmor %vm787, %vm819
    %v836 = vsel %vm820, 1, 0
    %v837 = vsel %vm821, 1, 0
    %v838 = vsel %vm822, 1, 0
    %v839 = vsel %vm823, 1, 0
    %v840 = vsel %vm824, 1, 0
    %v841 = vsel %vm825, 1, 0
    %v842 = vsel %vm826, 1, 0
    %v843 = vsel %vm827, 1, 0
    %v844 = vsel %vm828, 1, 0
    %v845 = vsel %vm829, 1, 0
    %v846 = vsel %vm830, 1, 0
    %v847 = vsel %vm831, 1, 0
    %v848 = vsel %vm832, 1, 0
    %v849 = vsel %vm833, 1, 0
    %v850 = vsel %vm834, 1, 0
    %v851 = vsel %vm835, 1, 0
    %v852 = vcvt.s32.f32 %v836
    %v853 = vcvt.s32.f32 %v837
    %v854 = vcvt.s32.f32 %v838
    %v855 = vcvt.s32.f32 %v839
    %v856 = vcvt.s32.f32 %v840
    %v857 = vcvt.s32.f32 %v841
    %v858 = vcvt.s32.f32 %v842
    %v859 = vcvt.s32.f32 %v843
    %v860 = vcvt.s32.f32 %v844
    %v861 = vcvt.s32.f32 %v845
    %v862 = vcvt.s32.f32 %v846
    %v863 = vcvt.s32.f32 %v847
    %v864 = vcvt.s32.f32 %v848
    %v865 = vcvt.s32.f32 %v849
    %v866 = vcvt.s32.f32 %v850
    %v867 = vcvt.s32.f32 %v851
    %v868 = vsel %vm27, %v852, 0.0
    %869 = vadd.xlane.f32.xlu0 %v868
    %v870 = vpop.xlane.xlu0 %869
    %v871 = vsel %vm27, %v853, 0.0
    %872 = vadd.xlane.f32.xlu0 %v871
    %v873 = vpop.xlane.xlu0 %872
    %v874 = vsel %vm27, %v854, 0.0
    %875 = vadd.xlane.f32.xlu0 %v874
    %v876 = vpop.xlane.xlu0 %875
    %v877 = vsel %vm27, %v855, 0.0
    %878 = vadd.xlane.f32.xlu0 %v877
    %v879 = vpop.xlane.xlu0 %878
    %v880 = vsel %vm27, %v856, 0.0
    %881 = vadd.xlane.f32.xlu0 %v880
    %v882 = vpop.xlane.xlu0 %881
    %v883 = vsel %vm27, %v857, 0.0
    %884 = vadd.xlane.f32.xlu0 %v883
    %v885 = vpop.xlane.xlu0 %884
    %v886 = vsel %vm27, %v858, 0.0
    %887 = vadd.xlane.f32.xlu0 %v886
    %v888 = vpop.xlane.xlu0 %887
    %v889 = vsel %vm27, %v859, 0.0
    %890 = vadd.xlane.f32.xlu0 %v889
    %v891 = vpop.xlane.xlu0 %890
    %v892 = vsel %vm27, %v860, 0.0
    %893 = vadd.xlane.f32.xlu0 %v892
    %v894 = vpop.xlane.xlu0 %893
    %v895 = vsel %vm27, %v861, 0.0
    %896 = vadd.xlane.f32.xlu0 %v895
    %v897 = vpop.xlane.xlu0 %896
    %v898 = vsel %vm27, %v862, 0.0
    %899 = vadd.xlane.f32.xlu0 %v898
    %v900 = vpop.xlane.xlu0 %899
    %v901 = vsel %vm27, %v863, 0.0
    %902 = vadd.xlane.f32.xlu0 %v901
    %v903 = vpop.xlane.xlu0 %902
    %v904 = vsel %vm27, %v864, 0.0
    %905 = vadd.xlane.f32.xlu0 %v904
    %v906 = vpop.xlane.xlu0 %905
    %v907 = vsel %vm27, %v865, 0.0
    %908 = vadd.xlane.f32.xlu0 %v907
    %v909 = vpop.xlane.xlu0 %908
    %v910 = vsel %vm27, %v866, 0.0
    %911 = vadd.xlane.f32.xlu0 %v910
    %v912 = vpop.xlane.xlu0 %911
    %v913 = vsel %vm27, %v867, 0.0
    %914 = vadd.xlane.f32.xlu0 %v913
    %v915 = vpop.xlane.xlu0 %914
    %v916 = vmul.f32 %v852, %v735
    %v917 = vmul.f32 %v853, %v735
    %v918 = vmul.f32 %v854, %v739
    %v919 = vmul.f32 %v855, %v739
    %v920 = vmul.f32 %v856, %v743
    %v921 = vmul.f32 %v857, %v743
    %v922 = vmul.f32 %v858, %v747
    %v923 = vmul.f32 %v859, %v747
    %v924 = vmul.f32 %v860, %v751
    %v925 = vmul.f32 %v861, %v751
    %v926 = vmul.f32 %v862, %v755
    %v927 = vmul.f32 %v863, %v755
    %v928 = vmul.f32 %v864, %v759
    %v929 = vmul.f32 %v865, %v759
    %v930 = vmul.f32 %v866, %v763
    %v931 = vmul.f32 %v867, %v763
    %v932 = vsel %vm27, %v916, 0.0
    %933 = vadd.xlane.f32.xlu0 %v932
    %v934 = vpop.xlane.xlu0 %933
    %v935 = vsel %vm27, %v917, 0.0
    %936 = vadd.xlane.f32.xlu0 %v935
    %v937 = vpop.xlane.xlu0 %936
    %v938 = vsel %vm27, %v918, 0.0
    %939 = vadd.xlane.f32.xlu0 %v938
    %v940 = vpop.xlane.xlu0 %939
    %v941 = vsel %vm27, %v919, 0.0
    %942 = vadd.xlane.f32.xlu0 %v941
    %v943 = vpop.xlane.xlu0 %942
    %v944 = vsel %vm27, %v920, 0.0
    %945 = vadd.xlane.f32.xlu0 %v944
    %v946 = vpop.xlane.xlu0 %945
    %v947 = vsel %vm27, %v921, 0.0
    %948 = vadd.xlane.f32.xlu0 %v947
    %v949 = vpop.xlane.xlu0 %948
    %v950 = vsel %vm27, %v922, 0.0
    %951 = vadd.xlane.f32.xlu0 %v950
    %v952 = vpop.xlane.xlu0 %951
    %v953 = vsel %vm27, %v923, 0.0
    %954 = vadd.xlane.f32.xlu0 %v953
    %v955 = vpop.xlane.xlu0 %954
    %v956 = vsel %vm27, %v924, 0.0
    %957 = vadd.xlane.f32.xlu0 %v956
    %v958 = vpop.xlane.xlu0 %957
    %v959 = vsel %vm27, %v925, 0.0
    %960 = vadd.xlane.f32.xlu0 %v959
    %v961 = vpop.xlane.xlu0 %960
    %v962 = vsel %vm27, %v926, 0.0
    %963 = vadd.xlane.f32.xlu0 %v962
    %v964 = vpop.xlane.xlu0 %963
    %v965 = vsel %vm27, %v927, 0.0
    %966 = vadd.xlane.f32.xlu0 %v965
    %v967 = vpop.xlane.xlu0 %966
    %v968 = vsel %vm27, %v928, 0.0
    %969 = vadd.xlane.f32.xlu0 %v968
    %v970 = vpop.xlane.xlu0 %969
    %v971 = vsel %vm27, %v929, 0.0
    %972 = vadd.xlane.f32.xlu0 %v971
    %v973 = vpop.xlane.xlu0 %972
    %v974 = vsel %vm27, %v930, 0.0
    %975 = vadd.xlane.f32.xlu0 %v974
    %v976 = vpop.xlane.xlu0 %975
    %v977 = vsel %vm27, %v931, 0.0
    %978 = vadd.xlane.f32.xlu0 %v977
    %v979 = vpop.xlane.xlu0 %978
    %v980 = vlaneseq
    %v981 = vshrl.u32 %v980, 7
    %v982 = vsub.s32 0, %v981
    %v983 = vrot.slane %v593, %v982
    %985 = vbcast.lane.b32.xlu0 %v983, 256
    %v986 = vpop.permute.xlu0 %985
    %s988 = sor.u32 256, 8
    %989 = vbcast.lane.b32.xlu0 %v983, %s988
    %v990 = vpop.permute.xlu0 %989
    %v991 = vlaneseq
    %v992 = vshrl.u32 %v991, 7
    %v993 = vsub.s32 1, %v992
    %v994 = vrot.slane %v593, %v993
    %996 = vbcast.lane.b32.xlu0 %v994, 256
    %v997 = vpop.permute.xlu0 %996
    %s999 = sor.u32 256, 8
    %1000 = vbcast.lane.b32.xlu0 %v994, %s999
    %v1001 = vpop.permute.xlu0 %1000
    %v1002 = vlaneseq
    %v1003 = vshrl.u32 %v1002, 7
    %v1004 = vsub.s32 2, %v1003
    %v1005 = vrot.slane %v593, %v1004
    %1007 = vbcast.lane.b32.xlu0 %v1005, 256
    %v1008 = vpop.permute.xlu0 %1007
    %s1010 = sor.u32 256, 8
    %1011 = vbcast.lane.b32.xlu0 %v1005, %s1010
    %v1012 = vpop.permute.xlu0 %1011
    %v1013 = vlaneseq
    %v1014 = vshrl.u32 %v1013, 7
    %v1015 = vsub.s32 3, %v1014
    %v1016 = vrot.slane %v593, %v1015
    %1018 = vbcast.lane.b32.xlu0 %v1016, 256
    %v1019 = vpop.permute.xlu0 %1018
    %s1021 = sor.u32 256, 8
    %1022 = vbcast.lane.b32.xlu0 %v1016, %s1021
    %v1023 = vpop.permute.xlu0 %1022
    %v1024 = vlaneseq
    %v1025 = vshrl.u32 %v1024, 7
    %v1026 = vsub.s32 4, %v1025
    %v1027 = vrot.slane %v593, %v1026
    %1029 = vbcast.lane.b32.xlu0 %v1027, 256
    %v1030 = vpop.permute.xlu0 %1029
    %s1032 = sor.u32 256, 8
    %1033 = vbcast.lane.b32.xlu0 %v1027, %s1032
    %v1034 = vpop.permute.xlu0 %1033
    %v1035 = vlaneseq
    %v1036 = vshrl.u32 %v1035, 7
    %v1037 = vsub.s32 5, %v1036
    %v1038 = vrot.slane %v593, %v1037
    %1040 = vbcast.lane.b32.xlu0 %v1038, 256
    %v1041 = vpop.permute.xlu0 %1040
    %s1043 = sor.u32 256, 8
    %1044 = vbcast.lane.b32.xlu0 %v1038, %s1043
    %v1045 = vpop.permute.xlu0 %1044
    %v1046 = vlaneseq
    %v1047 = vshrl.u32 %v1046, 7
    %v1048 = vsub.s32 6, %v1047
    %v1049 = vrot.slane %v593, %v1048
    %1051 = vbcast.lane.b32.xlu0 %v1049, 256
    %v1052 = vpop.permute.xlu0 %1051
    %s1054 = sor.u32 256, 8
    %1055 = vbcast.lane.b32.xlu0 %v1049, %s1054
    %v1056 = vpop.permute.xlu0 %1055
    %v1057 = vlaneseq
    %v1058 = vshrl.u32 %v1057, 7
    %v1059 = vsub.s32 7, %v1058
    %v1060 = vrot.slane %v593, %v1059
    %1062 = vbcast.lane.b32.xlu0 %v1060, 256
    %v1063 = vpop.permute.xlu0 %1062
    %s1065 = sor.u32 256, 8
    %1066 = vbcast.lane.b32.xlu0 %v1060, %s1065
    %v1067 = vpop.permute.xlu0 %1066
    %v1084 = vmul.f32 %v870, %v986
    %v1085 = vmul.f32 %v873, %v990
    %v1086 = vmul.f32 %v876, %v997
    %v1087 = vmul.f32 %v879, %v1001
    %v1088 = vmul.f32 %v882, %v1008
    %v1089 = vmul.f32 %v885, %v1012
    %v1090 = vmul.f32 %v888, %v1019
    %v1091 = vmul.f32 %v891, %v1023
    %v1092 = vmul.f32 %v894, %v1030
    %v1093 = vmul.f32 %v897, %v1034
    %v1094 = vmul.f32 %v900, %v1041
    %v1095 = vmul.f32 %v903, %v1045
    %v1096 = vmul.f32 %v906, %v1052
    %v1097 = vmul.f32 %v909, %v1056
    %v1098 = vmul.f32 %v912, %v1063
    %v1099 = vmul.f32 %v915, %v1067
    %v1100 = vadd.f32 %v1084, 1.0
    %v1101 = vadd.f32 %v1085, 1.0
    %v1102 = vadd.f32 %v1086, 1.0
    %v1103 = vadd.f32 %v1087, 1.0
    %v1104 = vadd.f32 %v1088, 1.0
    %v1105 = vadd.f32 %v1089, 1.0
    %v1106 = vadd.f32 %v1090, 1.0
    %v1107 = vadd.f32 %v1091, 1.0
    %v1108 = vadd.f32 %v1092, 1.0
    %v1109 = vadd.f32 %v1093, 1.0
    %v1110 = vadd.f32 %v1094, 1.0
    %v1111 = vadd.f32 %v1095, 1.0
    %v1112 = vadd.f32 %v1096, 1.0
    %v1113 = vadd.f32 %v1097, 1.0
    %v1114 = vadd.f32 %v1098, 1.0
    %v1115 = vadd.f32 %v1099, 1.0
    %vm1116 = vcmp.gt.f32.partialorder %v1100, %v934
    %vm1117 = vcmp.gt.f32.partialorder %v1101, %v937
    %vm1118 = vcmp.gt.f32.partialorder %v1102, %v940
    %vm1119 = vcmp.gt.f32.partialorder %v1103, %v943
    %vm1120 = vcmp.gt.f32.partialorder %v1104, %v946
    %vm1121 = vcmp.gt.f32.partialorder %v1105, %v949
    %vm1122 = vcmp.gt.f32.partialorder %v1106, %v952
    %vm1123 = vcmp.gt.f32.partialorder %v1107, %v955
    %vm1124 = vcmp.gt.f32.partialorder %v1108, %v958
    %vm1125 = vcmp.gt.f32.partialorder %v1109, %v961
    %vm1126 = vcmp.gt.f32.partialorder %v1110, %v964
    %vm1127 = vcmp.gt.f32.partialorder %v1111, %v967
    %vm1128 = vcmp.gt.f32.partialorder %v1112, %v970
    %vm1129 = vcmp.gt.f32.partialorder %v1113, %v973
    %vm1130 = vcmp.gt.f32.partialorder %v1114, %v976
    %vm1131 = vcmp.gt.f32.partialorder %v1115, %v979
    %v1132 = vsel %vm1116, 1, 0
    %v1133 = vsel %vm1117, 1, 0
    %v1134 = vsel %vm1118, 1, 0
    %v1135 = vsel %vm1119, 1, 0
    %v1136 = vsel %vm1120, 1, 0
    %v1137 = vsel %vm1121, 1, 0
    %v1138 = vsel %vm1122, 1, 0
    %v1139 = vsel %vm1123, 1, 0
    %v1140 = vsel %vm1124, 1, 0
    %v1141 = vsel %vm1125, 1, 0
    %v1142 = vsel %vm1126, 1, 0
    %v1143 = vsel %vm1127, 1, 0
    %v1144 = vsel %vm1128, 1, 0
    %v1145 = vsel %vm1129, 1, 0
    %v1146 = vsel %vm1130, 1, 0
    %v1147 = vsel %vm1131, 1, 0
    %v1148 = vcvt.s32.f32 %v1132
    %v1149 = vcvt.s32.f32 %v1133
    %v1150 = vcvt.s32.f32 %v1134
    %v1151 = vcvt.s32.f32 %v1135
    %v1152 = vcvt.s32.f32 %v1136
    %v1153 = vcvt.s32.f32 %v1137
    %v1154 = vcvt.s32.f32 %v1138
    %v1155 = vcvt.s32.f32 %v1139
    %v1156 = vcvt.s32.f32 %v1140
    %v1157 = vcvt.s32.f32 %v1141
    %v1158 = vcvt.s32.f32 %v1142
    %v1159 = vcvt.s32.f32 %v1143
    %v1160 = vcvt.s32.f32 %v1144
    %v1161 = vcvt.s32.f32 %v1145
    %v1162 = vcvt.s32.f32 %v1146
    %v1163 = vcvt.s32.f32 %v1147
    %v1164 = vmul.f32 %v1148, %v870
    %v1165 = vmul.f32 %v1149, %v873
    %v1166 = vmul.f32 %v1150, %v876
    %v1167 = vmul.f32 %v1151, %v879
    %v1168 = vmul.f32 %v1152, %v882
    %v1169 = vmul.f32 %v1153, %v885
    %v1170 = vmul.f32 %v1154, %v888
    %v1171 = vmul.f32 %v1155, %v891
    %v1172 = vmul.f32 %v1156, %v894
    %v1173 = vmul.f32 %v1157, %v897
    %v1174 = vmul.f32 %v1158, %v900
    %v1175 = vmul.f32 %v1159, %v903
    %v1176 = vmul.f32 %v1160, %v906
    %v1177 = vmul.f32 %v1161, %v909
    %v1178 = vmul.f32 %v1162, %v912
    %v1179 = vmul.f32 %v1163, %v915
    %1196 = vset.pattern.permute.xlu0 0
    %1197 = vperm.xlu0 %1196, %v1164
    %v1198 = vpop.permute.xlu0 %1197
    %1199 = vset.pattern.permute.xlu0 0
    %1200 = vperm.xlu0 %1199, %v1165
    %v1201 = vpop.permute.xlu0 %1200
    %1202 = vset.pattern.permute.xlu0 0
    %1203 = vperm.xlu0 %1202, %v1166
    %v1204 = vpop.permute.xlu0 %1203
    %1205 = vset.pattern.permute.xlu0 0
    %1206 = vperm.xlu0 %1205, %v1167
    %v1207 = vpop.permute.xlu0 %1206
    %1208 = vset.pattern.permute.xlu0 0
    %1209 = vperm.xlu0 %1208, %v1168
    %v1210 = vpop.permute.xlu0 %1209
    %1211 = vset.pattern.permute.xlu0 0
    %1212 = vperm.xlu0 %1211, %v1169
    %v1213 = vpop.permute.xlu0 %1212
    %1214 = vset.pattern.permute.xlu0 0
    %1215 = vperm.xlu0 %1214, %v1170
    %v1216 = vpop.permute.xlu0 %1215
    %1217 = vset.pattern.permute.xlu0 0
    %1218 = vperm.xlu0 %1217, %v1171
    %v1219 = vpop.permute.xlu0 %1218
    %1220 = vset.pattern.permute.xlu0 0
    %1221 = vperm.xlu0 %1220, %v1172
    %v1222 = vpop.permute.xlu0 %1221
    %1223 = vset.pattern.permute.xlu0 0
    %1224 = vperm.xlu0 %1223, %v1173
    %v1225 = vpop.permute.xlu0 %1224
    %1226 = vset.pattern.permute.xlu0 0
    %1227 = vperm.xlu0 %1226, %v1174
    %v1228 = vpop.permute.xlu0 %1227
    %1229 = vset.pattern.permute.xlu0 0
    %1230 = vperm.xlu0 %1229, %v1175
    %v1231 = vpop.permute.xlu0 %1230
    %1232 = vset.pattern.permute.xlu0 0
    %1233 = vperm.xlu0 %1232, %v1176
    %v1234 = vpop.permute.xlu0 %1233
    %1235 = vset.pattern.permute.xlu0 0
    %1236 = vperm.xlu0 %1235, %v1177
    %v1237 = vpop.permute.xlu0 %1236
    %1238 = vset.pattern.permute.xlu0 0
    %1239 = vperm.xlu0 %1238, %v1178
    %v1240 = vpop.permute.xlu0 %1239
    %1241 = vset.pattern.permute.xlu0 0
    %1242 = vperm.xlu0 %1241, %v1179
    %v1243 = vpop.permute.xlu0 %1242
    %v1244 = vlaneseq
    %v1245 = vshrl.u32 %v1244, 7
    %v1246 = vsub.s32 %v67, %v1245
    %v1247 = vrot.slane %v1198, %v1246
    %v1248 = vadd.s32 %v67, 4294967288
    %v1249 = vlaneseq
    %v1250 = vshrl.u32 %v1249, 7
    %v1251 = vsub.s32 %v1248, %v1250
    %v1252 = vrot.slane %v1201, %v1251
    %vm1253 = vcmask 130112
    %v1254 = vsel %vm1253, %v1252, %v1247
    %v1255 = vlaneseq
    %v1256 = vshrl.u32 %v1255, 7
    %v1257 = vsub.s32 %v67, %v1256
    %v1258 = vrot.slane %v1204, %v1257
    %v1259 = vlaneseq
    %v1260 = vshrl.u32 %v1259, 7
    %v1261 = vsub.s32 %v1248, %v1260
    %v1262 = vrot.slane %v1207, %v1261
    %v1263 = vsel %vm1253, %v1262, %v1258
    %v1264 = vlaneseq
    %v1265 = vshrl.u32 %v1264, 7
    %v1266 = vsub.s32 %v67, %v1265
    %v1267 = vrot.slane %v1210, %v1266
    %v1268 = vlaneseq
    %v1269 = vshrl.u32 %v1268, 7
    %v1270 = vsub.s32 %v1248, %v1269
    %v1271 = vrot.slane %v1213, %v1270
    %v1272 = vsel %vm1253, %v1271, %v1267
    %v1273 = vlaneseq
    %v1274 = vshrl.u32 %v1273, 7
    %v1275 = vsub.s32 %v67, %v1274
    %v1276 = vrot.slane %v1216, %v1275
    %v1277 = vlaneseq
    %v1278 = vshrl.u32 %v1277, 7
    %v1279 = vsub.s32 %v1248, %v1278
    %v1280 = vrot.slane %v1219, %v1279
    %v1281 = vsel %vm1253, %v1280, %v1276
    %v1282 = vlaneseq
    %v1283 = vshrl.u32 %v1282, 7
    %v1284 = vsub.s32 %v67, %v1283
    %v1285 = vrot.slane %v1222, %v1284
    %v1286 = vlaneseq
    %v1287 = vshrl.u32 %v1286, 7
    %v1288 = vsub.s32 %v1248, %v1287
    %v1289 = vrot.slane %v1225, %v1288
    %v1290 = vsel %vm1253, %v1289, %v1285
    %v1291 = vlaneseq
    %v1292 = vshrl.u32 %v1291, 7
    %v1293 = vsub.s32 %v67, %v1292
    %v1294 = vrot.slane %v1228, %v1293
    %v1295 = vlaneseq
    %v1296 = vshrl.u32 %v1295, 7
    %v1297 = vsub.s32 %v1248, %v1296
    %v1298 = vrot.slane %v1231, %v1297
    %v1299 = vsel %vm1253, %v1298, %v1294
    %v1300 = vlaneseq
    %v1301 = vshrl.u32 %v1300, 7
    %v1302 = vsub.s32 %v67, %v1301
    %v1303 = vrot.slane %v1234, %v1302
    %v1304 = vlaneseq
    %v1305 = vshrl.u32 %v1304, 7
    %v1306 = vsub.s32 %v1248, %v1305
    %v1307 = vrot.slane %v1237, %v1306
    %v1308 = vsel %vm1253, %v1307, %v1303
    %v1309 = vlaneseq
    %v1310 = vshrl.u32 %v1309, 7
    %v1311 = vsub.s32 %v67, %v1310
    %v1312 = vrot.slane %v1240, %v1311
    %v1313 = vlaneseq
    %v1314 = vshrl.u32 %v1313, 7
    %v1315 = vsub.s32 %v1248, %v1314
    %v1316 = vrot.slane %v1243, %v1315
    %v1317 = vsel %vm1253, %v1316, %v1312
    %vm1318 = vcmask 1041409
    %v1319 = vsel %vm1318, %v1263, %v1254
    %vm1320 = vcmask 1042434
    %v1321 = vsel %vm1320, %v1272, %v1319
    %vm1322 = vcmask 1043459
    %v1323 = vsel %vm1322, %v1281, %v1321
    %vm1324 = vcmask 1044484
    %v1325 = vsel %vm1324, %v1290, %v1323
    %vm1326 = vcmask 1045509
    %v1327 = vsel %vm1326, %v1299, %v1325
    %vm1328 = vcmask 1046534
    %v1329 = vsel %vm1328, %v1308, %v1327
    %vm1330 = vcmask 1047559
    %v1331 = vsel %vm1330, %v1317, %v1329
    %v1333 = vsel %vm27, %v1331, -inf
    %1334 = vmax.xlane.f32.xlu0 %v1333
    %v1335 = vpop.xlane.xlu0 %1334
    %v1336 = vmul.f32 %v1148, %v986
    %v1337 = vmul.f32 %v1149, %v990
    %v1338 = vmul.f32 %v1150, %v997
    %v1339 = vmul.f32 %v1151, %v1001
    %v1340 = vmul.f32 %v1152, %v1008
    %v1341 = vmul.f32 %v1153, %v1012
    %v1342 = vmul.f32 %v1154, %v1019
    %v1343 = vmul.f32 %v1155, %v1023
    %v1344 = vmul.f32 %v1156, %v1030
    %v1345 = vmul.f32 %v1157, %v1034
    %v1346 = vmul.f32 %v1158, %v1041
    %v1347 = vmul.f32 %v1159, %v1045
    %v1348 = vmul.f32 %v1160, %v1052
    %v1349 = vmul.f32 %v1161, %v1056
    %v1350 = vmul.f32 %v1162, %v1063
    %v1351 = vmul.f32 %v1163, %v1067
    %1368 = vset.pattern.permute.xlu0 0
    %1369 = vperm.xlu0 %1368, %v1336
    %v1370 = vpop.permute.xlu0 %1369
    %1371 = vset.pattern.permute.xlu0 0
    %1372 = vperm.xlu0 %1371, %v1337
    %v1373 = vpop.permute.xlu0 %1372
    %1374 = vset.pattern.permute.xlu0 0
    %1375 = vperm.xlu0 %1374, %v1338
    %v1376 = vpop.permute.xlu0 %1375
    %1377 = vset.pattern.permute.xlu0 0
    %1378 = vperm.xlu0 %1377, %v1339
    %v1379 = vpop.permute.xlu0 %1378
    %1380 = vset.pattern.permute.xlu0 0
    %1381 = vperm.xlu0 %1380, %v1340
    %v1382 = vpop.permute.xlu0 %1381
    %1383 = vset.pattern.permute.xlu0 0
    %1384 = vperm.xlu0 %1383, %v1341
    %v1385 = vpop.permute.xlu0 %1384
    %1386 = vset.pattern.permute.xlu0 0
    %1387 = vperm.xlu0 %1386, %v1342
    %v1388 = vpop.permute.xlu0 %1387
    %1389 = vset.pattern.permute.xlu0 0
    %1390 = vperm.xlu0 %1389, %v1343
    %v1391 = vpop.permute.xlu0 %1390
    %1392 = vset.pattern.permute.xlu0 0
    %1393 = vperm.xlu0 %1392, %v1344
    %v1394 = vpop.permute.xlu0 %1393
    %1395 = vset.pattern.permute.xlu0 0
    %1396 = vperm.xlu0 %1395, %v1345
    %v1397 = vpop.permute.xlu0 %1396
    %1398 = vset.pattern.permute.xlu0 0
    %1399 = vperm.xlu0 %1398, %v1346
    %v1400 = vpop.permute.xlu0 %1399
    %1401 = vset.pattern.permute.xlu0 0
    %1402 = vperm.xlu0 %1401, %v1347
    %v1403 = vpop.permute.xlu0 %1402
    %1404 = vset.pattern.permute.xlu0 0
    %1405 = vperm.xlu0 %1404, %v1348
    %v1406 = vpop.permute.xlu0 %1405
    %1407 = vset.pattern.permute.xlu0 0
    %1408 = vperm.xlu0 %1407, %v1349
    %v1409 = vpop.permute.xlu0 %1408
    %1410 = vset.pattern.permute.xlu0 0
    %1411 = vperm.xlu0 %1410, %v1350
    %v1412 = vpop.permute.xlu0 %1411
    %1413 = vset.pattern.permute.xlu0 0
    %1414 = vperm.xlu0 %1413, %v1351
    %v1415 = vpop.permute.xlu0 %1414
    %v1416 = vlaneseq
    %v1417 = vshrl.u32 %v1416, 7
    %v1418 = vsub.s32 %v67, %v1417
    %v1419 = vrot.slane %v1370, %v1418
    %v1420 = vlaneseq
    %v1421 = vshrl.u32 %v1420, 7
    %v1422 = vsub.s32 %v1248, %v1421
    %v1423 = vrot.slane %v1373, %v1422
    %v1424 = vsel %vm1253, %v1423, %v1419
    %v1425 = vlaneseq
    %v1426 = vshrl.u32 %v1425, 7
    %v1427 = vsub.s32 %v67, %v1426
    %v1428 = vrot.slane %v1376, %v1427
    %v1429 = vlaneseq
    %v1430 = vshrl.u32 %v1429, 7
    %v1431 = vsub.s32 %v1248, %v1430
    %v1432 = vrot.slane %v1379, %v1431
    %v1433 = vsel %vm1253, %v1432, %v1428
    %v1434 = vlaneseq
    %v1435 = vshrl.u32 %v1434, 7
    %v1436 = vsub.s32 %v67, %v1435
    %v1437 = vrot.slane %v1382, %v1436
    %v1438 = vlaneseq
    %v1439 = vshrl.u32 %v1438, 7
    %v1440 = vsub.s32 %v1248, %v1439
    %v1441 = vrot.slane %v1385, %v1440
    %v1442 = vsel %vm1253, %v1441, %v1437
    %v1443 = vlaneseq
    %v1444 = vshrl.u32 %v1443, 7
    %v1445 = vsub.s32 %v67, %v1444
    %v1446 = vrot.slane %v1388, %v1445
    %v1447 = vlaneseq
    %v1448 = vshrl.u32 %v1447, 7
    %v1449 = vsub.s32 %v1248, %v1448
    %v1450 = vrot.slane %v1391, %v1449
    %v1451 = vsel %vm1253, %v1450, %v1446
    %v1452 = vlaneseq
    %v1453 = vshrl.u32 %v1452, 7
    %v1454 = vsub.s32 %v67, %v1453
    %v1455 = vrot.slane %v1394, %v1454
    %v1456 = vlaneseq
    %v1457 = vshrl.u32 %v1456, 7
    %v1458 = vsub.s32 %v1248, %v1457
    %v1459 = vrot.slane %v1397, %v1458
    %v1460 = vsel %vm1253, %v1459, %v1455
    %v1461 = vlaneseq
    %v1462 = vshrl.u32 %v1461, 7
    %v1463 = vsub.s32 %v67, %v1462
    %v1464 = vrot.slane %v1400, %v1463
    %v1465 = vlaneseq
    %v1466 = vshrl.u32 %v1465, 7
    %v1467 = vsub.s32 %v1248, %v1466
    %v1468 = vrot.slane %v1403, %v1467
    %v1469 = vsel %vm1253, %v1468, %v1464
    %v1470 = vlaneseq
    %v1471 = vshrl.u32 %v1470, 7
    %v1472 = vsub.s32 %v67, %v1471
    %v1473 = vrot.slane %v1406, %v1472
    %v1474 = vlaneseq
    %v1475 = vshrl.u32 %v1474, 7
    %v1476 = vsub.s32 %v1248, %v1475
    %v1477 = vrot.slane %v1409, %v1476
    %v1478 = vsel %vm1253, %v1477, %v1473
    %v1479 = vlaneseq
    %v1480 = vshrl.u32 %v1479, 7
    %v1481 = vsub.s32 %v67, %v1480
    %v1482 = vrot.slane %v1412, %v1481
    %v1483 = vlaneseq
    %v1484 = vshrl.u32 %v1483, 7
    %v1485 = vsub.s32 %v1248, %v1484
    %v1486 = vrot.slane %v1415, %v1485
    %v1487 = vsel %vm1253, %v1486, %v1482
    %v1488 = vsel %vm1318, %v1433, %v1424
    %v1489 = vsel %vm1320, %v1442, %v1488
    %v1490 = vsel %vm1322, %v1451, %v1489
    %v1491 = vsel %vm1324, %v1460, %v1490
    %v1492 = vsel %vm1326, %v1469, %v1491
    %v1493 = vsel %vm1328, %v1478, %v1492
    %v1494 = vsel %vm1330, %v1487, %v1493
    %v1496 = vsel %vm27, %v1494, 0.0
    %1497 = vadd.xlane.f32.xlu0 %v1496
    %v1498 = vpop.xlane.xlu0 %1497
    %v1499 = vsub.f32 %v1498, 1.0
    %v1500 = vrcp.pop %v1335
    %v1501 = vmul.f32 %v1499, %v1500
    %v1502 = vsub.f32 %v593, %v1501
    %v1503 = vmax.f32 %v1502, 0.0
    %v1504 = vsub.f32 0.0, %v1503
    %v1505 = vadd.f32 %v1503, 1e-10
    %v1506 = vlog2.pop %v1505
    %v1507 = vmul.f32 %v1506, 0.6931472
    %v1508 = vmul.f32 %v1504, %v1507
    %v1509 = vsel %vm27, %v1508, 0.0
    %1510 = vadd.xlane.f32.xlu0 %v1509
    %v1511 = vpop.xlane.xlu0 %1510
    %v1512 = vrot.slane %v1511, 4
    %v1513 = vadd.f32 %v1511, %v1512
    %v1514 = vrot.slane %v1513, 2
    %v1515 = vadd.f32 %v1513, %v1514
    %v1516 = vrot.slane %v1515, 1
    %v1517 = vadd.f32 %v1515, %v1516
    %v1518 = vmul.f32 %v1517, 0.0078125
    %v1519 = vadd.f32 %v1518, 0.0
    %v1520 = vsub.f32 1.2, %v1503
    %v1521 = vmul.f32 %v62, %v1503
    %v1522 = vld [vmem:[%s4 + $0xe] sm:$0x1]
    %v1523 = vld [vmem:[%s4 + $0x1a] sm:$0x1]
    %v1524 = vpack.c.bf16 %v1521, %v1521
    %v1526 = vsel %vm27, %v1524, 0
    %1528 = vmatprep.subr.bf16.mxu0 0
    %1529 = vmatpush1.bf16.msra.mxu0 %v84
    %1530 = vmatprep.subr.bf16.mxu0 0
    %1531 = vmatpush1.bf16.msra.mxu0 0
    %1532 = vmatprep.subr.bf16.mxu0 0
    %1533 = vmatpush1.bf16.msra.mxu0 0
    %1534 = vmatprep.subr.bf16.mxu0 0
    %1535 = vmatpush1.bf16.msra.mxu0 0
    %1536 = vmatprep.subr.bf16.mxu0 0
    %1537 = vmatpush1.bf16.msra.mxu0 0
    %1538 = vmatprep.subr.bf16.mxu0 0
    %1539 = vmatpush1.bf16.msra.mxu0 0
    %1540 = vmatprep.subr.bf16.mxu0 0
    %1541 = vmatpush1.bf16.msra.mxu0 0
    %1542 = vmatprep.subr.bf16.mxu0 0
    %1543 = vmatpush1.bf16.msra.mxu0 0
    %1544 = vmatprep.subr.bf16.mxu0 0
    %1545 = vmatpush1.bf16.msra.mxu0 0
    %1546 = vmatprep.subr.bf16.mxu0 0
    %1547 = vmatpush1.bf16.msra.mxu0 0
    %1548 = vmatprep.subr.bf16.mxu0 0
    %1549 = vmatpush1.bf16.msra.mxu0 0
    %1550 = vmatprep.subr.bf16.mxu0 0
    %1551 = vmatpush1.bf16.msra.mxu0 0
    %1552 = vmatprep.subr.bf16.mxu0 0
    %1553 = vmatpush1.bf16.msra.mxu0 0
    %1554 = vmatprep.subr.bf16.mxu0 0
    %1555 = vmatpush1.bf16.msra.mxu0 0
    %1556 = vmatprep.subr.bf16.mxu0 0
    %1557 = vmatpush1.bf16.msra.mxu0 0
    %1558 = vmatprep.subr.bf16.mxu0 0
    %1559 = vmatpush1.bf16.msra.mxu0 0
    %1560 = vmatprep.mubr.bf16.mxu0 0
    %1561 = vmatmul.mubr.bf16.gmra.mrb[0].mxu0 %v1526
    %v1562 = vpop.f32.mrb[0].mxu0
    %v1563 = vadd.f32 %v79, %v1562
    %v1564 = vpop.f32.mrb[0].mxu0
    %v1565 = vpop.f32.mrb[0].mxu0
    %v1566 = vpop.f32.mrb[0].mxu0
    %1567 = vdwg.mxu0
    %v1568 = vsel %vm129, %v1563, 0.0
    %v1569 = vrot.slane %v1568, 4
    %v1570 = vadd.f32 %v1568, %v1569
    %v1571 = vrot.slane %v1570, 2
    %v1572 = vadd.f32 %v1570, %v1571
    %v1573 = vrot.slane %v1572, 1
    %v1574 = vadd.f32 %v1572, %v1573
    %v1575 = vmul.f32 %v1574, %v35
    %v1576 = vmul.f32 %v1563, %v1563
    %v1577 = vsel %vm129, %v1576, 0.0
    %v1578 = vrot.slane %v1577, 4
    %v1579 = vadd.f32 %v1577, %v1578
    %v1580 = vrot.slane %v1579, 2
    %v1581 = vadd.f32 %v1579, %v1580
    %v1582 = vrot.slane %v1581, 1
    %v1583 = vadd.f32 %v1581, %v1582
    %v1584 = vmul.f32 %v1583, %v35
    %v1585 = vmul.f32 %v1575, %v1575
    %v1586 = vsub.f32 %v1584, %v1585
    %v1587 = vmax.f32 %v1586, 0.0
    %v1588 = vsub.f32 %v1563, %v1575
    %v1589 = vadd.f32 %v1587, 1e-05
    %v1590 = vrsqrt.pop %v1589
    %v1591 = vmul.f32 %v1588, %v1590
    %v1592 = vlaneseq
    %v1593 = vshrl.u32 %v1592, 7
    %v1594 = vsub.s32 0, %v1593
    %v1595 = vrot.slane %v1522, %v1594
    %v1596 = vmul.f32 %v1591, %v1595
    %v1597 = vlaneseq
    %v1598 = vshrl.u32 %v1597, 7
    %v1599 = vsub.s32 0, %v1598
    %v1600 = vrot.slane %v1523, %v1599
    %v1601 = vadd.f32 %v1596, %v1600
    %v1602 = vxor.u32 %v1601, 2147483648
    %v1603 = vmul.f32 %v1602, 1.442695
    %v1604 = vpow.pop %v1603
    %v1605 = vadd.f32 %v1604, 1.0
    %v1606 = vrcp.pop %v1605
    %v1607 = vmul.f32 1.0, %v1606
    %1609 = vrot.lane.b32.xlu0 %v1607, 112
    %v1610 = vpop.permute.xlu0 %1609
    %v1612 = vmul.f32 %v1601, %v1610
    %v1613 = vld [vmem:[%s4 + $0xf] sm:$0x1]
    %v1614 = vld [vmem:[%s4 + $0x1b] sm:$0x1]
    %v1615 = vpack.c.bf16 %v1612, %v1612
    %v1617 = vsel %vm27, %v1615, 0
    %1619 = vmatprep.subr.bf16.mxu0 0
    %1620 = vmatpush1.bf16.msra.mxu0 %v190
    %1621 = vmatprep.subr.bf16.mxu0 0
    %1622 = vmatpush1.bf16.msra.mxu0 0
    %1623 = vmatprep.subr.bf16.mxu0 0
    %1624 = vmatpush1.bf16.msra.mxu0 0
    %1625 = vmatprep.subr.bf16.mxu0 0
    %1626 = vmatpush1.bf16.msra.mxu0 0
    %1627 = vmatprep.subr.bf16.mxu0 0
    %1628 = vmatpush1.bf16.msra.mxu0 0
    %1629 = vmatprep.subr.bf16.mxu0 0
    %1630 = vmatpush1.bf16.msra.mxu0 0
    %1631 = vmatprep.subr.bf16.mxu0 0
    %1632 = vmatpush1.bf16.msra.mxu0 0
    %1633 = vmatprep.subr.bf16.mxu0 0
    %1634 = vmatpush1.bf16.msra.mxu0 0
    %1635 = vmatprep.subr.bf16.mxu0 0
    %1636 = vmatpush1.bf16.msra.mxu0 0
    %1637 = vmatprep.subr.bf16.mxu0 0
    %1638 = vmatpush1.bf16.msra.mxu0 0
    %1639 = vmatprep.subr.bf16.mxu0 0
    %1640 = vmatpush1.bf16.msra.mxu0 0
    %1641 = vmatprep.subr.bf16.mxu0 0
    %1642 = vmatpush1.bf16.msra.mxu0 0
    %1643 = vmatprep.subr.bf16.mxu0 0
    %1644 = vmatpush1.bf16.msra.mxu0 0
    %1645 = vmatprep.subr.bf16.mxu0 0
    %1646 = vmatpush1.bf16.msra.mxu0 0
    %1647 = vmatprep.subr.bf16.mxu0 0
    %1648 = vmatpush1.bf16.msra.mxu0 0
    %1649 = vmatprep.subr.bf16.mxu0 0
    %1650 = vmatpush1.bf16.msra.mxu0 0
    %1651 = vmatprep.mubr.bf16.mxu0 0
    %1652 = vmatmul.mubr.bf16.gmra.mrb[0].mxu0 %v1617
    %v1653 = vpop.f32.mrb[0].mxu0
    %v1654 = vadd.f32 %v185, %v1653
    %v1655 = vpop.f32.mrb[0].mxu0
    %v1656 = vpop.f32.mrb[0].mxu0
    %v1657 = vpop.f32.mrb[0].mxu0
    %1658 = vdwg.mxu0
    %v1659 = vsel %vm129, %v1654, 0.0
    %v1660 = vrot.slane %v1659, 4
    %v1661 = vadd.f32 %v1659, %v1660
    %v1662 = vrot.slane %v1661, 2
    %v1663 = vadd.f32 %v1661, %v1662
    %v1664 = vrot.slane %v1663, 1
    %v1665 = vadd.f32 %v1663, %v1664
    %v1666 = vmul.f32 %v1665, %v35
    %v1667 = vmul.f32 %v1654, %v1654
    %v1668 = vsel %vm129, %v1667, 0.0
    %v1669 = vrot.slane %v1668, 4
    %v1670 = vadd.f32 %v1668, %v1669
    %v1671 = vrot.slane %v1670, 2
    %v1672 = vadd.f32 %v1670, %v1671
    %v1673 = vrot.slane %v1672, 1
    %v1674 = vadd.f32 %v1672, %v1673
    %v1675 = vmul.f32 %v1674, %v35
    %v1676 = vmul.f32 %v1666, %v1666
    %v1677 = vsub.f32 %v1675, %v1676
    %v1678 = vmax.f32 %v1677, 0.0
    %v1679 = vsub.f32 %v1654, %v1666
    %v1680 = vadd.f32 %v1678, 1e-05
    %v1681 = vrsqrt.pop %v1680
    %v1682 = vmul.f32 %v1679, %v1681
    %v1683 = vlaneseq
    %v1684 = vshrl.u32 %v1683, 7
    %v1685 = vsub.s32 0, %v1684
    %v1686 = vrot.slane %v1613, %v1685
    %v1687 = vmul.f32 %v1682, %v1686
    %v1688 = vlaneseq
    %v1689 = vshrl.u32 %v1688, 7
    %v1690 = vsub.s32 0, %v1689
    %v1691 = vrot.slane %v1614, %v1690
    %v1692 = vadd.f32 %v1687, %v1691
    %v1693 = vxor.u32 %v1692, 2147483648
    %v1694 = vmul.f32 %v1693, 1.442695
    %v1695 = vpow.pop %v1694
    %v1696 = vadd.f32 %v1695, 1.0
    %v1697 = vrcp.pop %v1696
    %v1698 = vmul.f32 1.0, %v1697
    %1700 = vrot.lane.b32.xlu0 %v1698, 112
    %v1701 = vpop.permute.xlu0 %1700
    %v1703 = vmul.f32 %v1692, %v1701
    %v1704 = vadd.f32 %v1612, %v1703
    %v1705 = vmul.f32 %v1704, 0.70710677
    %v1706 = vld [vmem:[%s4 + $0x6] sm:$0x1]
    %v1707 = vld [vmem:[%s4 + $0x10] sm:$0x1]
    %v1708 = vld [vmem:[%s4 + $0x1c] sm:$0x1]
    %s1709 = scalar_lea.vmem %s1, 32
    %v1710 = vld [vmem:[%s1709] sm:$0xf]
    %v1711 = vld [vmem:[%s1709 + $0x4] sm:$0xf]
    %v1712 = vpack.c.bf16 %v1705, %v1705
    %v1713 = vlaneseq
    %v1714 = vshrl.u32 %v1713, 7
    %v1715 = vsub.s32 0, %v1714
    %v1716 = vrot.slane %v1706, %v1715
    %v1719 = vunpack.c.l.b16 %v1710
    %v1720 = vunpack.c.l.b16 %v1711
    %v1721 = vpack.c.b16 %v1720, %v1719
    %v1724 = vsel %vm27, %v1712, 0
    %1726 = vmatprep.subr.bf16.mxu0 0
    %1727 = vmatpush1.bf16.msra.mxu0 %v1721
    %1728 = vmatprep.subr.bf16.mxu0 0
    %1729 = vmatpush1.bf16.msra.mxu0 0
    %1730 = vmatprep.subr.bf16.mxu0 0
    %1731 = vmatpush1.bf16.msra.mxu0 0
    %1732 = vmatprep.subr.bf16.mxu0 0
    %1733 = vmatpush1.bf16.msra.mxu0 0
    %1734 = vmatprep.subr.bf16.mxu0 0
    %1735 = vmatpush1.bf16.msra.mxu0 0
    %1736 = vmatprep.subr.bf16.mxu0 0
    %1737 = vmatpush1.bf16.msra.mxu0 0
    %1738 = vmatprep.subr.bf16.mxu0 0
    %1739 = vmatpush1.bf16.msra.mxu0 0
    %1740 = vmatprep.subr.bf16.mxu0 0
    %1741 = vmatpush1.bf16.msra.mxu0 0
    %1742 = vmatprep.subr.bf16.mxu0 0
    %1743 = vmatpush1.bf16.msra.mxu0 0
    %1744 = vmatprep.subr.bf16.mxu0 0
    %1745 = vmatpush1.bf16.msra.mxu0 0
    %1746 = vmatprep.subr.bf16.mxu0 0
    %1747 = vmatpush1.bf16.msra.mxu0 0
    %1748 = vmatprep.subr.bf16.mxu0 0
    %1749 = vmatpush1.bf16.msra.mxu0 0
    %1750 = vmatprep.subr.bf16.mxu0 0
    %1751 = vmatpush1.bf16.msra.mxu0 0
    %1752 = vmatprep.subr.bf16.mxu0 0
    %1753 = vmatpush1.bf16.msra.mxu0 0
    %1754 = vmatprep.subr.bf16.mxu0 0
    %1755 = vmatpush1.bf16.msra.mxu0 0
    %1756 = vmatprep.subr.bf16.mxu0 0
    %1757 = vmatpush1.bf16.msra.mxu0 0
    %1758 = vmatprep.mubr.bf16.mxu0 0
    %1759 = vmatmul.mubr.bf16.gmra.mrb[0].mxu0 %v1724
    %v1760 = vpop.f32.mrb[0].mxu0
    %v1761 = vadd.f32 %v1716, %v1760
    %v1762 = vpop.f32.mrb[0].mxu0
    %v1763 = vpop.f32.mrb[0].mxu0
    %v1764 = vpop.f32.mrb[0].mxu0
    %1765 = vdwg.mxu0
    %v1766 = vsel %vm129, %v1761, 0.0
    %v1767 = vrot.slane %v1766, 4
    %v1768 = vadd.f32 %v1766, %v1767
    %v1769 = vrot.slane %v1768, 2
    %v1770 = vadd.f32 %v1768, %v1769
    %v1771 = vrot.slane %v1770, 1
    %v1772 = vadd.f32 %v1770, %v1771
    %v1773 = vmul.f32 %v1772, %v35
    %v1774 = vmul.f32 %v1761, %v1761
    %v1775 = vsel %vm129, %v1774, 0.0
    %v1776 = vrot.slane %v1775, 4
    %v1777 = vadd.f32 %v1775, %v1776
    %v1778 = vrot.slane %v1777, 2
    %v1779 = vadd.f32 %v1777, %v1778
    %v1780 = vrot.slane %v1779, 1
    %v1781 = vadd.f32 %v1779, %v1780
    %v1782 = vmul.f32 %v1781, %v35
    %v1783 = vmul.f32 %v1773, %v1773
    %v1784 = vsub.f32 %v1782, %v1783
    %v1785 = vmax.f32 %v1784, 0.0
    %v1786 = vsub.f32 %v1761, %v1773
    %v1787 = vadd.f32 %v1785, 1e-05
    %v1788 = vrsqrt.pop %v1787
    %v1789 = vmul.f32 %v1786, %v1788
    %v1790 = vlaneseq
    %v1791 = vshrl.u32 %v1790, 7
    %v1792 = vsub.s32 0, %v1791
    %v1793 = vrot.slane %v1707, %v1792
    %v1794 = vmul.f32 %v1789, %v1793
    %v1795 = vlaneseq
    %v1796 = vshrl.u32 %v1795, 7
    %v1797 = vsub.s32 0, %v1796
    %v1798 = vrot.slane %v1708, %v1797
    %v1799 = vadd.f32 %v1794, %v1798
    %v1800 = vxor.u32 %v1799, 2147483648
    %v1801 = vmul.f32 %v1800, 1.442695
    %v1802 = vpow.pop %v1801
    %v1803 = vadd.f32 %v1802, 1.0
    %v1804 = vrcp.pop %v1803
    %v1805 = vmul.f32 1.0, %v1804
    %1807 = vrot.lane.b32.xlu0 %v1805, 112
    %v1808 = vpop.permute.xlu0 %1807
    %v1810 = vmul.f32 %v1799, %v1808
    %v1811 = vadd.f32 %v1705, %v1810
    %v1812 = vmul.f32 %v1811, 0.70710677
    %v1813 = vld [vmem:[%s4 + $0x7] sm:$0x1]
    %v1814 = vld [vmem:[%s4 + $0x11] sm:$0x1]
    %v1815 = vld [vmem:[%s4 + $0x1d] sm:$0x1]
    %s1816 = scalar_lea.vmem %s1, 40
    %v1817 = vld [vmem:[%s1816] sm:$0xf]
    %v1818 = vld [vmem:[%s1816 + $0x4] sm:$0xf]
    %v1819 = vpack.c.bf16 %v1812, %v1812
    %v1820 = vlaneseq
    %v1821 = vshrl.u32 %v1820, 7
    %v1822 = vsub.s32 0, %v1821
    %v1823 = vrot.slane %v1813, %v1822
    %v1826 = vunpack.c.l.b16 %v1817
    %v1827 = vunpack.c.l.b16 %v1818
    %v1828 = vpack.c.b16 %v1827, %v1826
    %v1831 = vsel %vm27, %v1819, 0
    %1833 = vmatprep.subr.bf16.mxu0 0
    %1834 = vmatpush1.bf16.msra.mxu0 %v1828
    %1835 = vmatprep.subr.bf16.mxu0 0
    %1836 = vmatpush1.bf16.msra.mxu0 0
    %1837 = vmatprep.subr.bf16.mxu0 0
    %1838 = vmatpush1.bf16.msra.mxu0 0
    %1839 = vmatprep.subr.bf16.mxu0 0
    %1840 = vmatpush1.bf16.msra.mxu0 0
    %1841 = vmatprep.subr.bf16.mxu0 0
    %1842 = vmatpush1.bf16.msra.mxu0 0
    %1843 = vmatprep.subr.bf16.mxu0 0
    %1844 = vmatpush1.bf16.msra.mxu0 0
    %1845 = vmatprep.subr.bf16.mxu0 0
    %1846 = vmatpush1.bf16.msra.mxu0 0
    %1847 = vmatprep.subr.bf16.mxu0 0
    %1848 = vmatpush1.bf16.msra.mxu0 0
    %1849 = vmatprep.subr.bf16.mxu0 0
    %1850 = vmatpush1.bf16.msra.mxu0 0
    %1851 = vmatprep.subr.bf16.mxu0 0
    %1852 = vmatpush1.bf16.msra.mxu0 0
    %1853 = vmatprep.subr.bf16.mxu0 0
    %1854 = vmatpush1.bf16.msra.mxu0 0
    %1855 = vmatprep.subr.bf16.mxu0 0
    %1856 = vmatpush1.bf16.msra.mxu0 0
    %1857 = vmatprep.subr.bf16.mxu0 0
    %1858 = vmatpush1.bf16.msra.mxu0 0
    %1859 = vmatprep.subr.bf16.mxu0 0
    %1860 = vmatpush1.bf16.msra.mxu0 0
    %1861 = vmatprep.subr.bf16.mxu0 0
    %1862 = vmatpush1.bf16.msra.mxu0 0
    %1863 = vmatprep.subr.bf16.mxu0 0
    %1864 = vmatpush1.bf16.msra.mxu0 0
    %1865 = vmatprep.mubr.bf16.mxu0 0
    %1866 = vmatmul.mubr.bf16.gmra.mrb[0].mxu0 %v1831
    %v1867 = vpop.f32.mrb[0].mxu0
    %v1868 = vadd.f32 %v1823, %v1867
    %v1869 = vpop.f32.mrb[0].mxu0
    %v1870 = vpop.f32.mrb[0].mxu0
    %v1871 = vpop.f32.mrb[0].mxu0
    %1872 = vdwg.mxu0
    %v1873 = vsel %vm129, %v1868, 0.0
    %v1874 = vrot.slane %v1873, 4
    %v1875 = vadd.f32 %v1873, %v1874
    %v1876 = vrot.slane %v1875, 2
    %v1877 = vadd.f32 %v1875, %v1876
    %v1878 = vrot.slane %v1877, 1
    %v1879 = vadd.f32 %v1877, %v1878
    %v1880 = vmul.f32 %v1879, %v35
    %v1881 = vmul.f32 %v1868, %v1868
    %v1882 = vsel %vm129, %v1881, 0.0
    %v1883 = vrot.slane %v1882, 4
    %v1884 = vadd.f32 %v1882, %v1883
    %v1885 = vrot.slane %v1884, 2
    %v1886 = vadd.f32 %v1884, %v1885
    %v1887 = vrot.slane %v1886, 1
    %v1888 = vadd.f32 %v1886, %v1887
    %v1889 = vmul.f32 %v1888, %v35
    %v1890 = vmul.f32 %v1880, %v1880
    %v1891 = vsub.f32 %v1889, %v1890
    %v1892 = vmax.f32 %v1891, 0.0
    %v1893 = vsub.f32 %v1868, %v1880
    %v1894 = vadd.f32 %v1892, 1e-05
    %v1895 = vrsqrt.pop %v1894
    %v1896 = vmul.f32 %v1893, %v1895
    %v1897 = vlaneseq
    %v1898 = vshrl.u32 %v1897, 7
    %v1899 = vsub.s32 0, %v1898
    %v1900 = vrot.slane %v1814, %v1899
    %v1901 = vmul.f32 %v1896, %v1900
    %v1902 = vlaneseq
    %v1903 = vshrl.u32 %v1902, 7
    %v1904 = vsub.s32 0, %v1903
    %v1905 = vrot.slane %v1815, %v1904
    %v1906 = vadd.f32 %v1901, %v1905
    %v1907 = vxor.u32 %v1906, 2147483648
    %v1908 = vmul.f32 %v1907, 1.442695
    %v1909 = vpow.pop %v1908
    %v1910 = vadd.f32 %v1909, 1.0
    %v1911 = vrcp.pop %v1910
    %v1912 = vmul.f32 1.0, %v1911
    %1914 = vrot.lane.b32.xlu0 %v1912, 112
    %v1915 = vpop.permute.xlu0 %1914
    %v1917 = vmul.f32 %v1906, %v1915
    %v1918 = vadd.f32 %v1812, %v1917
    %v1919 = vmul.f32 %v1918, 0.70710677
    %v1920 = vmax.f32 %v1919, 0.0
    %v1921 = vadd.f32 %v1920, 0.0
    %v1922 = vpack.c.bf16 %v1919, %v1919
    %s1923 = scalar_lea.vmem %s2, 4
    %v1924 = vld [vmem:[%s1923] sm:$0xf]
    %v1925 = vld [vmem:[%s4 + $0x23] sm:$0x1]
    %v1926 = vlaneseq
    %v1927 = vshrl.u32 %v1926, 7
    %v1928 = vsub.s32 0, %v1927
    %v1929 = vrot.slane %v1925, %v1928
    %1931 = vrot.lane.b32.xlu0 %v1922, 120
    %v1932 = vpop.permute.xlu0 %1931
    %v1934 = vsel %vm506, %v1932, 0
    %v1937 = vsel %vm510, %v1924, 0
    %1939 = vmatprep.subr.bf16.mxu0 0
    %1940 = vmatpush1.bf16.msra.mxu0 %v1937
    %1941 = vmatprep.subr.bf16.mxu0 0
    %1942 = vmatpush1.bf16.msra.mxu0 0
    %1943 = vmatprep.subr.bf16.mxu0 0
    %1944 = vmatpush1.bf16.msra.mxu0 0
    %1945 = vmatprep.subr.bf16.mxu0 0
    %1946 = vmatpush1.bf16.msra.mxu0 0
    %1947 = vmatprep.subr.bf16.mxu0 0
    %1948 = vmatpush1.bf16.msra.mxu0 0
    %1949 = vmatprep.subr.bf16.mxu0 0
    %1950 = vmatpush1.bf16.msra.mxu0 0
    %1951 = vmatprep.subr.bf16.mxu0 0
    %1952 = vmatpush1.bf16.msra.mxu0 0
    %1953 = vmatprep.subr.bf16.mxu0 0
    %1954 = vmatpush1.bf16.msra.mxu0 0
    %1955 = vmatprep.subr.bf16.mxu0 0
    %1956 = vmatpush1.bf16.msra.mxu0 0
    %1957 = vmatprep.subr.bf16.mxu0 0
    %1958 = vmatpush1.bf16.msra.mxu0 0
    %1959 = vmatprep.subr.bf16.mxu0 0
    %1960 = vmatpush1.bf16.msra.mxu0 0
    %1961 = vmatprep.subr.bf16.mxu0 0
    %1962 = vmatpush1.bf16.msra.mxu0 0
    %1963 = vmatprep.subr.bf16.mxu0 0
    %1964 = vmatpush1.bf16.msra.mxu0 0
    %1965 = vmatprep.subr.bf16.mxu0 0
    %1966 = vmatpush1.bf16.msra.mxu0 0
    %1967 = vmatprep.subr.bf16.mxu0 0
    %1968 = vmatpush1.bf16.msra.mxu0 0
    %1969 = vmatprep.subr.bf16.mxu0 0
    %1970 = vmatpush1.bf16.msra.mxu0 0
    %1971 = vmatprep.mubr.bf16.mxu0 0
    %1972 = vmatmul.mubr.bf16.gmra.mrb[0].mxu0 %v1934
    %v1973 = vpop.f32.mrb[0].mxu0
    %v1974 = vadd.f32 %v1929, %v1973
    %v1975 = vpop.f32.mrb[0].mxu0
    %v1976 = vpop.f32.mrb[0].mxu0
    %v1977 = vpop.f32.mrb[0].mxu0
    %1978 = vdwg.mxu0
    %v1979 = vld [vmem:[%s4 + $0x25] sm:$0x1]
    %v1980 = vld [vmem:[%s4 + $0x27] sm:$0x1]
    %v1981 = vsel %vm27, %v1974, 0.0
    %v1982 = vrot.slane %v1981, 4
    %v1983 = vadd.f32 %v1981, %v1982
    %v1984 = vrot.slane %v1983, 2
    %v1985 = vadd.f32 %v1983, %v1984
    %v1986 = vrot.slane %v1985, 1
    %v1987 = vadd.f32 %v1985, %v1986
    %v1988 = vmul.f32 %v1987, %v35
    %v1989 = vmul.f32 %v1974, %v1974
    %v1990 = vsel %vm27, %v1989, 0.0
    %v1991 = vrot.slane %v1990, 4
    %v1992 = vadd.f32 %v1990, %v1991
    %v1993 = vrot.slane %v1992, 2
    %v1994 = vadd.f32 %v1992, %v1993
    %v1995 = vrot.slane %v1994, 1
    %v1996 = vadd.f32 %v1994, %v1995
    %v1997 = vmul.f32 %v1996, %v35
    %v1998 = vmul.f32 %v1988, %v1988
    %v1999 = vsub.f32 %v1997, %v1998
    %v2000 = vmax.f32 %v1999, 0.0
    %v2001 = vsub.f32 %v1974, %v1988
    %v2002 = vadd.f32 %v2000, 1e-05
    %v2003 = vrsqrt.pop %v2002
    %v2004 = vmul.f32 %v2001, %v2003
    %v2005 = vlaneseq
    %v2006 = vshrl.u32 %v2005, 7
    %v2007 = vsub.s32 0, %v2006
    %v2008 = vrot.slane %v1979, %v2007
    %v2009 = vmul.f32 %v2004, %v2008
    %v2010 = vlaneseq
    %v2011 = vshrl.u32 %v2010, 7
    %v2012 = vsub.s32 0, %v2011
    %v2013 = vrot.slane %v1980, %v2012
    %v2014 = vadd.f32 %v2009, %v2013
    %v2015 = vmul.f32 %v2014, %v1520
    %v2016 = vsel %vm27, %v2015, -inf
    %2017 = vmax.xlane.f32.xlu0 %v2016
    %v2018 = vpop.xlane.xlu0 %2017
    %v2019 = vsub.f32 %v2015, %v2018
    %v2020 = vlaneseq
    %v2021 = vshrl.u32 %v2020, 7
    %v2022 = vsub.s32 0, %v2021
    %v2023 = vrot.slane %v2019, %v2022
    %2025 = vbcast.lane.b32.xlu0 %v2023, 256
    %v2026 = vpop.permute.xlu0 %2025
    %s2028 = sor.u32 256, 8
    %2029 = vbcast.lane.b32.xlu0 %v2023, %s2028
    %v2030 = vpop.permute.xlu0 %2029
    %v2031 = vlaneseq
    %v2032 = vshrl.u32 %v2031, 7
    %v2033 = vsub.s32 1, %v2032
    %v2034 = vrot.slane %v2019, %v2033
    %2036 = vbcast.lane.b32.xlu0 %v2034, 256
    %v2037 = vpop.permute.xlu0 %2036
    %s2039 = sor.u32 256, 8
    %2040 = vbcast.lane.b32.xlu0 %v2034, %s2039
    %v2041 = vpop.permute.xlu0 %2040
    %v2042 = vlaneseq
    %v2043 = vshrl.u32 %v2042, 7
    %v2044 = vsub.s32 2, %v2043
    %v2045 = vrot.slane %v2019, %v2044
    %2047 = vbcast.lane.b32.xlu0 %v2045, 256
    %v2048 = vpop.permute.xlu0 %2047
    %s2050 = sor.u32 256, 8
    %2051 = vbcast.lane.b32.xlu0 %v2045, %s2050
    %v2052 = vpop.permute.xlu0 %2051
    %v2053 = vlaneseq
    %v2054 = vshrl.u32 %v2053, 7
    %v2055 = vsub.s32 3, %v2054
    %v2056 = vrot.slane %v2019, %v2055
    %2058 = vbcast.lane.b32.xlu0 %v2056, 256
    %v2059 = vpop.permute.xlu0 %2058
    %s2061 = sor.u32 256, 8
    %2062 = vbcast.lane.b32.xlu0 %v2056, %s2061
    %v2063 = vpop.permute.xlu0 %2062
    %v2064 = vlaneseq
    %v2065 = vshrl.u32 %v2064, 7
    %v2066 = vsub.s32 4, %v2065
    %v2067 = vrot.slane %v2019, %v2066
    %2069 = vbcast.lane.b32.xlu0 %v2067, 256
    %v2070 = vpop.permute.xlu0 %2069
    %s2072 = sor.u32 256, 8
    %2073 = vbcast.lane.b32.xlu0 %v2067, %s2072
    %v2074 = vpop.permute.xlu0 %2073
    %v2075 = vlaneseq
    %v2076 = vshrl.u32 %v2075, 7
    %v2077 = vsub.s32 5, %v2076
    %v2078 = vrot.slane %v2019, %v2077
    %2080 = vbcast.lane.b32.xlu0 %v2078, 256
    %v2081 = vpop.permute.xlu0 %2080
    %s2083 = sor.u32 256, 8
    %2084 = vbcast.lane.b32.xlu0 %v2078, %s2083
    %v2085 = vpop.permute.xlu0 %2084
    %v2086 = vlaneseq
    %v2087 = vshrl.u32 %v2086, 7
    %v2088 = vsub.s32 6, %v2087
    %v2089 = vrot.slane %v2019, %v2088
    %2091 = vbcast.lane.b32.xlu0 %v2089, 256
    %v2092 = vpop.permute.xlu0 %2091
    %s2094 = sor.u32 256, 8
    %2095 = vbcast.lane.b32.xlu0 %v2089, %s2094
    %v2096 = vpop.permute.xlu0 %2095
    %v2097 = vlaneseq
    %v2098 = vshrl.u32 %v2097, 7
    %v2099 = vsub.s32 7, %v2098
    %v2100 = vrot.slane %v2019, %v2099
    %2102 = vbcast.lane.b32.xlu0 %v2100, 256
    %v2103 = vpop.permute.xlu0 %2102
    %s2105 = sor.u32 256, 8
    %2106 = vbcast.lane.b32.xlu0 %v2100, %s2105
    %v2107 = vpop.permute.xlu0 %2106
    %v2109 = vcombine.high %v2019, %v2019
    %v2111 = vunpack.c.l.s4 1966171168
    %v2112 = vunpack.c.0.s8 %v2111
    %v2113 = vlaneseq
    %v2114 = vshrl.u32 %v2113, 7
    %v2115 = vsub.s32 %v2112, %v2114
    %v2116 = vrot.slane %v2019, %v2115
    %v2118 = vunpack.c.l.s4 1966171168
    %v2119 = vunpack.c.0.s8 %v2118
    %v2120 = vlaneseq
    %v2121 = vshrl.u32 %v2120, 7
    %v2122 = vsub.s32 %v2119, %v2121
    %v2123 = vrot.slane %v2109, %v2122
    %v2124 = vcombine.high %v2116, %v2116
    %v2125 = vcombine.high %v2123, %v2123
    %v2127 = vunpack.c.l.s4 1966171168
    %v2128 = vunpack.c.0.s8 %v2127
    %v2129 = vlaneseq
    %v2130 = vshrl.u32 %v2129, 7
    %v2131 = vsub.s32 %v2128, %v2130
    %v2132 = vrot.slane %v2116, %v2131
    %v2134 = vunpack.c.l.s4 1966171168
    %v2135 = vunpack.c.0.s8 %v2134
    %v2136 = vlaneseq
    %v2137 = vshrl.u32 %v2136, 7
    %v2138 = vsub.s32 %v2135, %v2137
    %v2139 = vrot.slane %v2123, %v2138
    %v2141 = vunpack.c.l.s4 1966171168
    %v2142 = vunpack.c.0.s8 %v2141
    %v2143 = vlaneseq
    %v2144 = vshrl.u32 %v2143, 7
    %v2145 = vsub.s32 %v2142, %v2144
    %v2146 = vrot.slane %v2124, %v2145
    %v2148 = vunpack.c.l.s4 1966171168
    %v2149 = vunpack.c.0.s8 %v2148
    %v2150 = vlaneseq
    %v2151 = vshrl.u32 %v2150, 7
    %v2152 = vsub.s32 %v2149, %v2151
    %v2153 = vrot.slane %v2125, %v2152
    %v2154 = vcombine.high %v2132, %v2132
    %v2155 = vcombine.high %v2139, %v2139
    %v2156 = vcombine.high %v2146, %v2146
    %v2157 = vcombine.high %v2153, %v2153
    %v2158 = vlaneseq
    %v2159 = vshrl.u32 %v2158, 7
    %v2160 = vsub.s32 0, %v2159
    %v2161 = vrot.slane %v2132, %v2160
    %v2162 = vlaneseq
    %v2163 = vshrl.u32 %v2162, 7
    %v2164 = vsub.s32 0, %v2163
    %v2165 = vrot.slane %v2146, %v2164
    %v2166 = vlaneseq
    %v2167 = vshrl.u32 %v2166, 7
    %v2168 = vsub.s32 0, %v2167
    %v2169 = vrot.slane %v2154, %v2168
    %v2170 = vlaneseq
    %v2171 = vshrl.u32 %v2170, 7
    %v2172 = vsub.s32 0, %v2171
    %v2173 = vrot.slane %v2156, %v2172
    %v2174 = vlaneseq
    %v2175 = vshrl.u32 %v2174, 7
    %v2176 = vsub.s32 0, %v2175
    %v2177 = vrot.slane %v2139, %v2176
    %v2178 = vlaneseq
    %v2179 = vshrl.u32 %v2178, 7
    %v2180 = vsub.s32 0, %v2179
    %v2181 = vrot.slane %v2153, %v2180
    %v2182 = vlaneseq
    %v2183 = vshrl.u32 %v2182, 7
    %v2184 = vsub.s32 0, %v2183
    %v2185 = vrot.slane %v2155, %v2184
    %v2186 = vlaneseq
    %v2187 = vshrl.u32 %v2186, 7
    %v2188 = vsub.s32 0, %v2187
    %v2189 = vrot.slane %v2157, %v2188
    %vm2198 = vcmp.gt.f32.partialorder %v2161, %v2026
    %vm2199 = vcmp.gt.f32.partialorder %v2161, %v2030
    %vm2200 = vcmp.gt.f32.partialorder %v2165, %v2037
    %vm2201 = vcmp.gt.f32.partialorder %v2165, %v2041
    %vm2202 = vcmp.gt.f32.partialorder %v2169, %v2048
    %vm2203 = vcmp.gt.f32.partialorder %v2169, %v2052
    %vm2204 = vcmp.gt.f32.partialorder %v2173, %v2059
    %vm2205 = vcmp.gt.f32.partialorder %v2173, %v2063
    %vm2206 = vcmp.gt.f32.partialorder %v2177, %v2070
    %vm2207 = vcmp.gt.f32.partialorder %v2177, %v2074
    %vm2208 = vcmp.gt.f32.partialorder %v2181, %v2081
    %vm2209 = vcmp.gt.f32.partialorder %v2181, %v2085
    %vm2210 = vcmp.gt.f32.partialorder %v2185, %v2092
    %vm2211 = vcmp.gt.f32.partialorder %v2185, %v2096
    %vm2212 = vcmp.gt.f32.partialorder %v2189, %v2103
    %vm2213 = vcmp.gt.f32.partialorder %v2189, %v2107
    %vm2214 = vcmp.eq.f32.partialorder %v2161, %v2026
    %vm2215 = vcmp.eq.f32.partialorder %v2161, %v2030
    %vm2216 = vcmp.eq.f32.partialorder %v2165, %v2037
    %vm2217 = vcmp.eq.f32.partialorder %v2165, %v2041
    %vm2218 = vcmp.eq.f32.partialorder %v2169, %v2048
    %vm2219 = vcmp.eq.f32.partialorder %v2169, %v2052
    %vm2220 = vcmp.eq.f32.partialorder %v2173, %v2059
    %vm2221 = vcmp.eq.f32.partialorder %v2173, %v2063
    %vm2222 = vcmp.eq.f32.partialorder %v2177, %v2070
    %vm2223 = vcmp.eq.f32.partialorder %v2177, %v2074
    %vm2224 = vcmp.eq.f32.partialorder %v2181, %v2081
    %vm2225 = vcmp.eq.f32.partialorder %v2181, %v2085
    %vm2226 = vcmp.eq.f32.partialorder %v2185, %v2092
    %vm2227 = vcmp.eq.f32.partialorder %v2185, %v2096
    %vm2228 = vcmp.eq.f32.partialorder %v2189, %v2103
    %vm2229 = vcmp.eq.f32.partialorder %v2189, %v2107
    %vm2230 = vmand %vm2214, %vm68
    %vm2231 = vmand %vm2215, %vm69
    %vm2232 = vmand %vm2216, %vm68
    %vm2233 = vmand %vm2217, %vm69
    %vm2234 = vmand %vm2218, %vm68
    %vm2235 = vmand %vm2219, %vm69
    %vm2236 = vmand %vm2220, %vm68
    %vm2237 = vmand %vm2221, %vm69
    %vm2238 = vmand %vm2222, %vm68
    %vm2239 = vmand %vm2223, %vm69
    %vm2240 = vmand %vm2224, %vm68
    %vm2241 = vmand %vm2225, %vm69
    %vm2242 = vmand %vm2226, %vm68
    %vm2243 = vmand %vm2227, %vm69
    %vm2244 = vmand %vm2228, %vm68
    %vm2245 = vmand %vm2229, %vm69
    %vm2246 = vmor %vm2198, %vm2230
    %vm2247 = vmor %vm2199, %vm2231
    %vm2248 = vmor %vm2200, %vm2232
    %vm2249 = vmor %vm2201, %vm2233
    %vm2250 = vmor %vm2202, %vm2234
    %vm2251 = vmor %vm2203, %vm2235
    %vm2252 = vmor %vm2204, %vm2236
    %vm2253 = vmor %vm2205, %vm2237
    %vm2254 = vmor %vm2206, %vm2238
    %vm2255 = vmor %vm2207, %vm2239
    %vm2256 = vmor %vm2208, %vm2240
    %vm2257 = vmor %vm2209, %vm2241
    %vm2258 = vmor %vm2210, %vm2242
    %vm2259 = vmor %vm2211, %vm2243
    %vm2260 = vmor %vm2212, %vm2244
    %vm2261 = vmor %vm2213, %vm2245
    %v2262 = vsel %vm2246, 1, 0
    %v2263 = vsel %vm2247, 1, 0
    %v2264 = vsel %vm2248, 1, 0
    %v2265 = vsel %vm2249, 1, 0
    %v2266 = vsel %vm2250, 1, 0
    %v2267 = vsel %vm2251, 1, 0
    %v2268 = vsel %vm2252, 1, 0
    %v2269 = vsel %vm2253, 1, 0
    %v2270 = vsel %vm2254, 1, 0
    %v2271 = vsel %vm2255, 1, 0
    %v2272 = vsel %vm2256, 1, 0
    %v2273 = vsel %vm2257, 1, 0
    %v2274 = vsel %vm2258, 1, 0
    %v2275 = vsel %vm2259, 1, 0
    %v2276 = vsel %vm2260, 1, 0
    %v2277 = vsel %vm2261, 1, 0
    %v2278 = vcvt.s32.f32 %v2262
    %v2279 = vcvt.s32.f32 %v2263
    %v2280 = vcvt.s32.f32 %v2264
    %v2281 = vcvt.s32.f32 %v2265
    %v2282 = vcvt.s32.f32 %v2266
    %v2283 = vcvt.s32.f32 %v2267
    %v2284 = vcvt.s32.f32 %v2268
    %v2285 = vcvt.s32.f32 %v2269
    %v2286 = vcvt.s32.f32 %v2270
    %v2287 = vcvt.s32.f32 %v2271
    %v2288 = vcvt.s32.f32 %v2272
    %v2289 = vcvt.s32.f32 %v2273
    %v2290 = vcvt.s32.f32 %v2274
    %v2291 = vcvt.s32.f32 %v2275
    %v2292 = vcvt.s32.f32 %v2276
    %v2293 = vcvt.s32.f32 %v2277
    %v2294 = vsel %vm27, %v2278, 0.0
    %2295 = vadd.xlane.f32.xlu0 %v2294
    %v2296 = vpop.xlane.xlu0 %2295
    %v2297 = vsel %vm27, %v2279, 0.0
    %2298 = vadd.xlane.f32.xlu0 %v2297
    %v2299 = vpop.xlane.xlu0 %2298
    %v2300 = vsel %vm27, %v2280, 0.0
    %2301 = vadd.xlane.f32.xlu0 %v2300
    %v2302 = vpop.xlane.xlu0 %2301
    %v2303 = vsel %vm27, %v2281, 0.0
    %2304 = vadd.xlane.f32.xlu0 %v2303
    %v2305 = vpop.xlane.xlu0 %2304
    %v2306 = vsel %vm27, %v2282, 0.0
    %2307 = vadd.xlane.f32.xlu0 %v2306
    %v2308 = vpop.xlane.xlu0 %2307
    %v2309 = vsel %vm27, %v2283, 0.0
    %2310 = vadd.xlane.f32.xlu0 %v2309
    %v2311 = vpop.xlane.xlu0 %2310
    %v2312 = vsel %vm27, %v2284, 0.0
    %2313 = vadd.xlane.f32.xlu0 %v2312
    %v2314 = vpop.xlane.xlu0 %2313
    %v2315 = vsel %vm27, %v2285, 0.0
    %2316 = vadd.xlane.f32.xlu0 %v2315
    %v2317 = vpop.xlane.xlu0 %2316
    %v2318 = vsel %vm27, %v2286, 0.0
    %2319 = vadd.xlane.f32.xlu0 %v2318
    %v2320 = vpop.xlane.xlu0 %2319
    %v2321 = vsel %vm27, %v2287, 0.0
    %2322 = vadd.xlane.f32.xlu0 %v2321
    %v2323 = vpop.xlane.xlu0 %2322
    %v2324 = vsel %vm27, %v2288, 0.0
    %2325 = vadd.xlane.f32.xlu0 %v2324
    %v2326 = vpop.xlane.xlu0 %2325
    %v2327 = vsel %vm27, %v2289, 0.0
    %2328 = vadd.xlane.f32.xlu0 %v2327
    %v2329 = vpop.xlane.xlu0 %2328
    %v2330 = vsel %vm27, %v2290, 0.0
    %2331 = vadd.xlane.f32.xlu0 %v2330
    %v2332 = vpop.xlane.xlu0 %2331
    %v2333 = vsel %vm27, %v2291, 0.0
    %2334 = vadd.xlane.f32.xlu0 %v2333
    %v2335 = vpop.xlane.xlu0 %2334
    %v2336 = vsel %vm27, %v2292, 0.0
    %2337 = vadd.xlane.f32.xlu0 %v2336
    %v2338 = vpop.xlane.xlu0 %2337
    %v2339 = vsel %vm27, %v2293, 0.0
    %2340 = vadd.xlane.f32.xlu0 %v2339
    %v2341 = vpop.xlane.xlu0 %2340
    %v2342 = vmul.f32 %v2278, %v2161
    %v2343 = vmul.f32 %v2279, %v2161
    %v2344 = vmul.f32 %v2280, %v2165
    %v2345 = vmul.f32 %v2281, %v2165
    %v2346 = vmul.f32 %v2282, %v2169
    %v2347 = vmul.f32 %v2283, %v2169
    %v2348 = vmul.f32 %v2284, %v2173
    %v2349 = vmul.f32 %v2285, %v2173
    %v2350 = vmul.f32 %v2286, %v2177
    %v2351 = vmul.f32 %v2287, %v2177
    %v2352 = vmul.f32 %v2288, %v2181
    %v2353 = vmul.f32 %v2289, %v2181
    %v2354 = vmul.f32 %v2290, %v2185
    %v2355 = vmul.f32 %v2291, %v2185
    %v2356 = vmul.f32 %v2292, %v2189
    %v2357 = vmul.f32 %v2293, %v2189
    %v2358 = vsel %vm27, %v2342, 0.0
    %2359 = vadd.xlane.f32.xlu0 %v2358
    %v2360 = vpop.xlane.xlu0 %2359
    %v2361 = vsel %vm27, %v2343, 0.0
    %2362 = vadd.xlane.f32.xlu0 %v2361
    %v2363 = vpop.xlane.xlu0 %2362
    %v2364 = vsel %vm27, %v2344, 0.0
    %2365 = vadd.xlane.f32.xlu0 %v2364
    %v2366 = vpop.xlane.xlu0 %2365
    %v2367 = vsel %vm27, %v2345, 0.0
    %2368 = vadd.xlane.f32.xlu0 %v2367
    %v2369 = vpop.xlane.xlu0 %2368
    %v2370 = vsel %vm27, %v2346, 0.0
    %2371 = vadd.xlane.f32.xlu0 %v2370
    %v2372 = vpop.xlane.xlu0 %2371
    %v2373 = vsel %vm27, %v2347, 0.0
    %2374 = vadd.xlane.f32.xlu0 %v2373
    %v2375 = vpop.xlane.xlu0 %2374
    %v2376 = vsel %vm27, %v2348, 0.0
    %2377 = vadd.xlane.f32.xlu0 %v2376
    %v2378 = vpop.xlane.xlu0 %2377
    %v2379 = vsel %vm27, %v2349, 0.0
    %2380 = vadd.xlane.f32.xlu0 %v2379
    %v2381 = vpop.xlane.xlu0 %2380
    %v2382 = vsel %vm27, %v2350, 0.0
    %2383 = vadd.xlane.f32.xlu0 %v2382
    %v2384 = vpop.xlane.xlu0 %2383
    %v2385 = vsel %vm27, %v2351, 0.0
    %2386 = vadd.xlane.f32.xlu0 %v2385
    %v2387 = vpop.xlane.xlu0 %2386
    %v2388 = vsel %vm27, %v2352, 0.0
    %2389 = vadd.xlane.f32.xlu0 %v2388
    %v2390 = vpop.xlane.xlu0 %2389
    %v2391 = vsel %vm27, %v2353, 0.0
    %2392 = vadd.xlane.f32.xlu0 %v2391
    %v2393 = vpop.xlane.xlu0 %2392
    %v2394 = vsel %vm27, %v2354, 0.0
    %2395 = vadd.xlane.f32.xlu0 %v2394
    %v2396 = vpop.xlane.xlu0 %2395
    %v2397 = vsel %vm27, %v2355, 0.0
    %2398 = vadd.xlane.f32.xlu0 %v2397
    %v2399 = vpop.xlane.xlu0 %2398
    %v2400 = vsel %vm27, %v2356, 0.0
    %2401 = vadd.xlane.f32.xlu0 %v2400
    %v2402 = vpop.xlane.xlu0 %2401
    %v2403 = vsel %vm27, %v2357, 0.0
    %2404 = vadd.xlane.f32.xlu0 %v2403
    %v2405 = vpop.xlane.xlu0 %2404
    %v2406 = vlaneseq
    %v2407 = vshrl.u32 %v2406, 7
    %v2408 = vsub.s32 0, %v2407
    %v2409 = vrot.slane %v2019, %v2408
    %2411 = vbcast.lane.b32.xlu0 %v2409, 256
    %v2412 = vpop.permute.xlu0 %2411
    %s2414 = sor.u32 256, 8
    %2415 = vbcast.lane.b32.xlu0 %v2409, %s2414
    %v2416 = vpop.permute.xlu0 %2415
    %v2417 = vlaneseq
    %v2418 = vshrl.u32 %v2417, 7
    %v2419 = vsub.s32 1, %v2418
    %v2420 = vrot.slane %v2019, %v2419
    %2422 = vbcast.lane.b32.xlu0 %v2420, 256
    %v2423 = vpop.permute.xlu0 %2422
    %s2425 = sor.u32 256, 8
    %2426 = vbcast.lane.b32.xlu0 %v2420, %s2425
    %v2427 = vpop.permute.xlu0 %2426
    %v2428 = vlaneseq
    %v2429 = vshrl.u32 %v2428, 7
    %v2430 = vsub.s32 2, %v2429
    %v2431 = vrot.slane %v2019, %v2430
    %2433 = vbcast.lane.b32.xlu0 %v2431, 256
    %v2434 = vpop.permute.xlu0 %2433
    %s2436 = sor.u32 256, 8
    %2437 = vbcast.lane.b32.xlu0 %v2431, %s2436
    %v2438 = vpop.permute.xlu0 %2437
    %v2439 = vlaneseq
    %v2440 = vshrl.u32 %v2439, 7
    %v2441 = vsub.s32 3, %v2440
    %v2442 = vrot.slane %v2019, %v2441
    %2444 = vbcast.lane.b32.xlu0 %v2442, 256
    %v2445 = vpop.permute.xlu0 %2444
    %s2447 = sor.u32 256, 8
    %2448 = vbcast.lane.b32.xlu0 %v2442, %s2447
    %v2449 = vpop.permute.xlu0 %2448
    %v2450 = vlaneseq
    %v2451 = vshrl.u32 %v2450, 7
    %v2452 = vsub.s32 4, %v2451
    %v2453 = vrot.slane %v2019, %v2452
    %2455 = vbcast.lane.b32.xlu0 %v2453, 256
    %v2456 = vpop.permute.xlu0 %2455
    %s2458 = sor.u32 256, 8
    %2459 = vbcast.lane.b32.xlu0 %v2453, %s2458
    %v2460 = vpop.permute.xlu0 %2459
    %v2461 = vlaneseq
    %v2462 = vshrl.u32 %v2461, 7
    %v2463 = vsub.s32 5, %v2462
    %v2464 = vrot.slane %v2019, %v2463
    %2466 = vbcast.lane.b32.xlu0 %v2464, 256
    %v2467 = vpop.permute.xlu0 %2466
    %s2469 = sor.u32 256, 8
    %2470 = vbcast.lane.b32.xlu0 %v2464, %s2469
    %v2471 = vpop.permute.xlu0 %2470
    %v2472 = vlaneseq
    %v2473 = vshrl.u32 %v2472, 7
    %v2474 = vsub.s32 6, %v2473
    %v2475 = vrot.slane %v2019, %v2474
    %2477 = vbcast.lane.b32.xlu0 %v2475, 256
    %v2478 = vpop.permute.xlu0 %2477
    %s2480 = sor.u32 256, 8
    %2481 = vbcast.lane.b32.xlu0 %v2475, %s2480
    %v2482 = vpop.permute.xlu0 %2481
    %v2483 = vlaneseq
    %v2484 = vshrl.u32 %v2483, 7
    %v2485 = vsub.s32 7, %v2484
    %v2486 = vrot.slane %v2019, %v2485
    %2488 = vbcast.lane.b32.xlu0 %v2486, 256
    %v2489 = vpop.permute.xlu0 %2488
    %s2491 = sor.u32 256, 8
    %2492 = vbcast.lane.b32.xlu0 %v2486, %s2491
    %v2493 = vpop.permute.xlu0 %2492
    %v2510 = vmul.f32 %v2296, %v2412
    %v2511 = vmul.f32 %v2299, %v2416
    %v2512 = vmul.f32 %v2302, %v2423
    %v2513 = vmul.f32 %v2305, %v2427
    %v2514 = vmul.f32 %v2308, %v2434
    %v2515 = vmul.f32 %v2311, %v2438
    %v2516 = vmul.f32 %v2314, %v2445
    %v2517 = vmul.f32 %v2317, %v2449
    %v2518 = vmul.f32 %v2320, %v2456
    %v2519 = vmul.f32 %v2323, %v2460
    %v2520 = vmul.f32 %v2326, %v2467
    %v2521 = vmul.f32 %v2329, %v2471
    %v2522 = vmul.f32 %v2332, %v2478
    %v2523 = vmul.f32 %v2335, %v2482
    %v2524 = vmul.f32 %v2338, %v2489
    %v2525 = vmul.f32 %v2341, %v2493
    %v2526 = vadd.f32 %v2510, 1.0
    %v2527 = vadd.f32 %v2511, 1.0
    %v2528 = vadd.f32 %v2512, 1.0
    %v2529 = vadd.f32 %v2513, 1.0
    %v2530 = vadd.f32 %v2514, 1.0
    %v2531 = vadd.f32 %v2515, 1.0
    %v2532 = vadd.f32 %v2516, 1.0
    %v2533 = vadd.f32 %v2517, 1.0
    %v2534 = vadd.f32 %v2518, 1.0
    %v2535 = vadd.f32 %v2519, 1.0
    %v2536 = vadd.f32 %v2520, 1.0
    %v2537 = vadd.f32 %v2521, 1.0
    %v2538 = vadd.f32 %v2522, 1.0
    %v2539 = vadd.f32 %v2523, 1.0
    %v2540 = vadd.f32 %v2524, 1.0
    %v2541 = vadd.f32 %v2525, 1.0
    %vm2542 = vcmp.gt.f32.partialorder %v2526, %v2360
    %vm2543 = vcmp.gt.f32.partialorder %v2527, %v2363
    %vm2544 = vcmp.gt.f32.partialorder %v2528, %v2366
    %vm2545 = vcmp.gt.f32.partialorder %v2529, %v2369
    %vm2546 = vcmp.gt.f32.partialorder %v2530, %v2372
    %vm2547 = vcmp.gt.f32.partialorder %v2531, %v2375
    %vm2548 = vcmp.gt.f32.partialorder %v2532, %v2378
    %vm2549 = vcmp.gt.f32.partialorder %v2533, %v2381
    %vm2550 = vcmp.gt.f32.partialorder %v2534, %v2384
    %vm2551 = vcmp.gt.f32.partialorder %v2535, %v2387
    %vm2552 = vcmp.gt.f32.partialorder %v2536, %v2390
    %vm2553 = vcmp.gt.f32.partialorder %v2537, %v2393
    %vm2554 = vcmp.gt.f32.partialorder %v2538, %v2396
    %vm2555 = vcmp.gt.f32.partialorder %v2539, %v2399
    %vm2556 = vcmp.gt.f32.partialorder %v2540, %v2402
    %vm2557 = vcmp.gt.f32.partialorder %v2541, %v2405
    %v2558 = vsel %vm2542, 1, 0
    %v2559 = vsel %vm2543, 1, 0
    %v2560 = vsel %vm2544, 1, 0
    %v2561 = vsel %vm2545, 1, 0
    %v2562 = vsel %vm2546, 1, 0
    %v2563 = vsel %vm2547, 1, 0
    %v2564 = vsel %vm2548, 1, 0
    %v2565 = vsel %vm2549, 1, 0
    %v2566 = vsel %vm2550, 1, 0
    %v2567 = vsel %vm2551, 1, 0
    %v2568 = vsel %vm2552, 1, 0
    %v2569 = vsel %vm2553, 1, 0
    %v2570 = vsel %vm2554, 1, 0
    %v2571 = vsel %vm2555, 1, 0
    %v2572 = vsel %vm2556, 1, 0
    %v2573 = vsel %vm2557, 1, 0
    %v2574 = vcvt.s32.f32 %v2558
    %v2575 = vcvt.s32.f32 %v2559
    %v2576 = vcvt.s32.f32 %v2560
    %v2577 = vcvt.s32.f32 %v2561
    %v2578 = vcvt.s32.f32 %v2562
    %v2579 = vcvt.s32.f32 %v2563
    %v2580 = vcvt.s32.f32 %v2564
    %v2581 = vcvt.s32.f32 %v2565
    %v2582 = vcvt.s32.f32 %v2566
    %v2583 = vcvt.s32.f32 %v2567
    %v2584 = vcvt.s32.f32 %v2568
    %v2585 = vcvt.s32.f32 %v2569
    %v2586 = vcvt.s32.f32 %v2570
    %v2587 = vcvt.s32.f32 %v2571
    %v2588 = vcvt.s32.f32 %v2572
    %v2589 = vcvt.s32.f32 %v2573
    %v2590 = vmul.f32 %v2574, %v2296
    %v2591 = vmul.f32 %v2575, %v2299
    %v2592 = vmul.f32 %v2576, %v2302
    %v2593 = vmul.f32 %v2577, %v2305
    %v2594 = vmul.f32 %v2578, %v2308
    %v2595 = vmul.f32 %v2579, %v2311
    %v2596 = vmul.f32 %v2580, %v2314
    %v2597 = vmul.f32 %v2581, %v2317
    %v2598 = vmul.f32 %v2582, %v2320
    %v2599 = vmul.f32 %v2583, %v2323
    %v2600 = vmul.f32 %v2584, %v2326
    %v2601 = vmul.f32 %v2585, %v2329
    %v2602 = vmul.f32 %v2586, %v2332
    %v2603 = vmul.f32 %v2587, %v2335
    %v2604 = vmul.f32 %v2588, %v2338
    %v2605 = vmul.f32 %v2589, %v2341
    %2622 = vset.pattern.permute.xlu0 0
    %2623 = vperm.xlu0 %2622, %v2590
    %v2624 = vpop.permute.xlu0 %2623
    %2625 = vset.pattern.permute.xlu0 0
    %2626 = vperm.xlu0 %2625, %v2591
    %v2627 = vpop.permute.xlu0 %2626
    %2628 = vset.pattern.permute.xlu0 0
    %2629 = vperm.xlu0 %2628, %v2592
    %v2630 = vpop.permute.xlu0 %2629
    %2631 = vset.pattern.permute.xlu0 0
    %2632 = vperm.xlu0 %2631, %v2593
    %v2633 = vpop.permute.xlu0 %2632
    %2634 = vset.pattern.permute.xlu0 0
    %2635 = vperm.xlu0 %2634, %v2594
    %v2636 = vpop.permute.xlu0 %2635
    %2637 = vset.pattern.permute.xlu0 0
    %2638 = vperm.xlu0 %2637, %v2595
    %v2639 = vpop.permute.xlu0 %2638
    %2640 = vset.pattern.permute.xlu0 0
    %2641 = vperm.xlu0 %2640, %v2596
    %v2642 = vpop.permute.xlu0 %2641
    %2643 = vset.pattern.permute.xlu0 0
    %2644 = vperm.xlu0 %2643, %v2597
    %v2645 = vpop.permute.xlu0 %2644
    %2646 = vset.pattern.permute.xlu0 0
    %2647 = vperm.xlu0 %2646, %v2598
    %v2648 = vpop.permute.xlu0 %2647
    %2649 = vset.pattern.permute.xlu0 0
    %2650 = vperm.xlu0 %2649, %v2599
    %v2651 = vpop.permute.xlu0 %2650
    %2652 = vset.pattern.permute.xlu0 0
    %2653 = vperm.xlu0 %2652, %v2600
    %v2654 = vpop.permute.xlu0 %2653
    %2655 = vset.pattern.permute.xlu0 0
    %2656 = vperm.xlu0 %2655, %v2601
    %v2657 = vpop.permute.xlu0 %2656
    %2658 = vset.pattern.permute.xlu0 0
    %2659 = vperm.xlu0 %2658, %v2602
    %v2660 = vpop.permute.xlu0 %2659
    %2661 = vset.pattern.permute.xlu0 0
    %2662 = vperm.xlu0 %2661, %v2603
    %v2663 = vpop.permute.xlu0 %2662
    %2664 = vset.pattern.permute.xlu0 0
    %2665 = vperm.xlu0 %2664, %v2604
    %v2666 = vpop.permute.xlu0 %2665
    %2667 = vset.pattern.permute.xlu0 0
    %2668 = vperm.xlu0 %2667, %v2605
    %v2669 = vpop.permute.xlu0 %2668
    %v2670 = vlaneseq
    %v2671 = vshrl.u32 %v2670, 7
    %v2672 = vsub.s32 %v67, %v2671
    %v2673 = vrot.slane %v2624, %v2672
    %v2674 = vlaneseq
    %v2675 = vshrl.u32 %v2674, 7
    %v2676 = vsub.s32 %v1248, %v2675
    %v2677 = vrot.slane %v2627, %v2676
    %v2678 = vsel %vm1253, %v2677, %v2673
    %v2679 = vlaneseq
    %v2680 = vshrl.u32 %v2679, 7
    %v2681 = vsub.s32 %v67, %v2680
    %v2682 = vrot.slane %v2630, %v2681
    %v2683 = vlaneseq
    %v2684 = vshrl.u32 %v2683, 7
    %v2685 = vsub.s32 %v1248, %v2684
    %v2686 = vrot.slane %v2633, %v2685
    %v2687 = vsel %vm1253, %v2686, %v2682
    %v2688 = vlaneseq
    %v2689 = vshrl.u32 %v2688, 7
    %v2690 = vsub.s32 %v67, %v2689
    %v2691 = vrot.slane %v2636, %v2690
    %v2692 = vlaneseq
    %v2693 = vshrl.u32 %v2692, 7
    %v2694 = vsub.s32 %v1248, %v2693
    %v2695 = vrot.slane %v2639, %v2694
    %v2696 = vsel %vm1253, %v2695, %v2691
    %v2697 = vlaneseq
    %v2698 = vshrl.u32 %v2697, 7
    %v2699 = vsub.s32 %v67, %v2698
    %v2700 = vrot.slane %v2642, %v2699
    %v2701 = vlaneseq
    %v2702 = vshrl.u32 %v2701, 7
    %v2703 = vsub.s32 %v1248, %v2702
    %v2704 = vrot.slane %v2645, %v2703
    %v2705 = vsel %vm1253, %v2704, %v2700
    %v2706 = vlaneseq
    %v2707 = vshrl.u32 %v2706, 7
    %v2708 = vsub.s32 %v67, %v2707
    %v2709 = vrot.slane %v2648, %v2708
    %v2710 = vlaneseq
    %v2711 = vshrl.u32 %v2710, 7
    %v2712 = vsub.s32 %v1248, %v2711
    %v2713 = vrot.slane %v2651, %v2712
    %v2714 = vsel %vm1253, %v2713, %v2709
    %v2715 = vlaneseq
    %v2716 = vshrl.u32 %v2715, 7
    %v2717 = vsub.s32 %v67, %v2716
    %v2718 = vrot.slane %v2654, %v2717
    %v2719 = vlaneseq
    %v2720 = vshrl.u32 %v2719, 7
    %v2721 = vsub.s32 %v1248, %v2720
    %v2722 = vrot.slane %v2657, %v2721
    %v2723 = vsel %vm1253, %v2722, %v2718
    %v2724 = vlaneseq
    %v2725 = vshrl.u32 %v2724, 7
    %v2726 = vsub.s32 %v67, %v2725
    %v2727 = vrot.slane %v2660, %v2726
    %v2728 = vlaneseq
    %v2729 = vshrl.u32 %v2728, 7
    %v2730 = vsub.s32 %v1248, %v2729
    %v2731 = vrot.slane %v2663, %v2730
    %v2732 = vsel %vm1253, %v2731, %v2727
    %v2733 = vlaneseq
    %v2734 = vshrl.u32 %v2733, 7
    %v2735 = vsub.s32 %v67, %v2734
    %v2736 = vrot.slane %v2666, %v2735
    %v2737 = vlaneseq
    %v2738 = vshrl.u32 %v2737, 7
    %v2739 = vsub.s32 %v1248, %v2738
    %v2740 = vrot.slane %v2669, %v2739
    %v2741 = vsel %vm1253, %v2740, %v2736
    %v2742 = vsel %vm1318, %v2687, %v2678
    %v2743 = vsel %vm1320, %v2696, %v2742
    %v2744 = vsel %vm1322, %v2705, %v2743
    %v2745 = vsel %vm1324, %v2714, %v2744
    %v2746 = vsel %vm1326, %v2723, %v2745
    %v2747 = vsel %vm1328, %v2732, %v2746
    %v2748 = vsel %vm1330, %v2741, %v2747
    %v2750 = vsel %vm27, %v2748, -inf
    %2751 = vmax.xlane.f32.xlu0 %v2750
    %v2752 = vpop.xlane.xlu0 %2751
    %v2753 = vmul.f32 %v2574, %v2412
    %v2754 = vmul.f32 %v2575, %v2416
    %v2755 = vmul.f32 %v2576, %v2423
    %v2756 = vmul.f32 %v2577, %v2427
    %v2757 = vmul.f32 %v2578, %v2434
    %v2758 = vmul.f32 %v2579, %v2438
    %v2759 = vmul.f32 %v2580, %v2445
    %v2760 = vmul.f32 %v2581, %v2449
    %v2761 = vmul.f32 %v2582, %v2456
    %v2762 = vmul.f32 %v2583, %v2460
    %v2763 = vmul.f32 %v2584, %v2467
    %v2764 = vmul.f32 %v2585, %v2471
    %v2765 = vmul.f32 %v2586, %v2478
    %v2766 = vmul.f32 %v2587, %v2482
    %v2767 = vmul.f32 %v2588, %v2489
    %v2768 = vmul.f32 %v2589, %v2493
    %2785 = vset.pattern.permute.xlu0 0
    %2786 = vperm.xlu0 %2785, %v2753
    %v2787 = vpop.permute.xlu0 %2786
    %2788 = vset.pattern.permute.xlu0 0
    %2789 = vperm.xlu0 %2788, %v2754
    %v2790 = vpop.permute.xlu0 %2789
    %2791 = vset.pattern.permute.xlu0 0
    %2792 = vperm.xlu0 %2791, %v2755
    %v2793 = vpop.permute.xlu0 %2792
    %2794 = vset.pattern.permute.xlu0 0
    %2795 = vperm.xlu0 %2794, %v2756
    %v2796 = vpop.permute.xlu0 %2795
    %2797 = vset.pattern.permute.xlu0 0
    %2798 = vperm.xlu0 %2797, %v2757
    %v2799 = vpop.permute.xlu0 %2798
    %2800 = vset.pattern.permute.xlu0 0
    %2801 = vperm.xlu0 %2800, %v2758
    %v2802 = vpop.permute.xlu0 %2801
    %2803 = vset.pattern.permute.xlu0 0
    %2804 = vperm.xlu0 %2803, %v2759
    %v2805 = vpop.permute.xlu0 %2804
    %2806 = vset.pattern.permute.xlu0 0
    %2807 = vperm.xlu0 %2806, %v2760
    %v2808 = vpop.permute.xlu0 %2807
    %2809 = vset.pattern.permute.xlu0 0
    %2810 = vperm.xlu0 %2809, %v2761
    %v2811 = vpop.permute.xlu0 %2810
    %2812 = vset.pattern.permute.xlu0 0
    %2813 = vperm.xlu0 %2812, %v2762
    %v2814 = vpop.permute.xlu0 %2813
    %2815 = vset.pattern.permute.xlu0 0
    %2816 = vperm.xlu0 %2815, %v2763
    %v2817 = vpop.permute.xlu0 %2816
    %2818 = vset.pattern.permute.xlu0 0
    %2819 = vperm.xlu0 %2818, %v2764
    %v2820 = vpop.permute.xlu0 %2819
    %2821 = vset.pattern.permute.xlu0 0
    %2822 = vperm.xlu0 %2821, %v2765
    %v2823 = vpop.permute.xlu0 %2822
    %2824 = vset.pattern.permute.xlu0 0
    %2825 = vperm.xlu0 %2824, %v2766
    %v2826 = vpop.permute.xlu0 %2825
    %2827 = vset.pattern.permute.xlu0 0
    %2828 = vperm.xlu0 %2827, %v2767
    %v2829 = vpop.permute.xlu0 %2828
    %2830 = vset.pattern.permute.xlu0 0
    %2831 = vperm.xlu0 %2830, %v2768
    %v2832 = vpop.permute.xlu0 %2831
    %v2833 = vlaneseq
    %v2834 = vshrl.u32 %v2833, 7
    %v2835 = vsub.s32 %v67, %v2834
    %v2836 = vrot.slane %v2787, %v2835
    %v2837 = vlaneseq
    %v2838 = vshrl.u32 %v2837, 7
    %v2839 = vsub.s32 %v1248, %v2838
    %v2840 = vrot.slane %v2790, %v2839
    %v2841 = vsel %vm1253, %v2840, %v2836
    %v2842 = vlaneseq
    %v2843 = vshrl.u32 %v2842, 7
    %v2844 = vsub.s32 %v67, %v2843
    %v2845 = vrot.slane %v2793, %v2844
    %v2846 = vlaneseq
    %v2847 = vshrl.u32 %v2846, 7
    %v2848 = vsub.s32 %v1248, %v2847
    %v2849 = vrot.slane %v2796, %v2848
    %v2850 = vsel %vm1253, %v2849, %v2845
    %v2851 = vlaneseq
    %v2852 = vshrl.u32 %v2851, 7
    %v2853 = vsub.s32 %v67, %v2852
    %v2854 = vrot.slane %v2799, %v2853
    %v2855 = vlaneseq
    %v2856 = vshrl.u32 %v2855, 7
    %v2857 = vsub.s32 %v1248, %v2856
    %v2858 = vrot.slane %v2802, %v2857
    %v2859 = vsel %vm1253, %v2858, %v2854
    %v2860 = vlaneseq
    %v2861 = vshrl.u32 %v2860, 7
    %v2862 = vsub.s32 %v67, %v2861
    %v2863 = vrot.slane %v2805, %v2862
    %v2864 = vlaneseq
    %v2865 = vshrl.u32 %v2864, 7
    %v2866 = vsub.s32 %v1248, %v2865
    %v2867 = vrot.slane %v2808, %v2866
    %v2868 = vsel %vm1253, %v2867, %v2863
    %v2869 = vlaneseq
    %v2870 = vshrl.u32 %v2869, 7
    %v2871 = vsub.s32 %v67, %v2870
    %v2872 = vrot.slane %v2811, %v2871
    %v2873 = vlaneseq
    %v2874 = vshrl.u32 %v2873, 7
    %v2875 = vsub.s32 %v1248, %v2874
    %v2876 = vrot.slane %v2814, %v2875
    %v2877 = vsel %vm1253, %v2876, %v2872
    %v2878 = vlaneseq
    %v2879 = vshrl.u32 %v2878, 7
    %v2880 = vsub.s32 %v67, %v2879
    %v2881 = vrot.slane %v2817, %v2880
    %v2882 = vlaneseq
    %v2883 = vshrl.u32 %v2882, 7
    %v2884 = vsub.s32 %v1248, %v2883
    %v2885 = vrot.slane %v2820, %v2884
    %v2886 = vsel %vm1253, %v2885, %v2881
    %v2887 = vlaneseq
    %v2888 = vshrl.u32 %v2887, 7
    %v2889 = vsub.s32 %v67, %v2888
    %v2890 = vrot.slane %v2823, %v2889
    %v2891 = vlaneseq
    %v2892 = vshrl.u32 %v2891, 7
    %v2893 = vsub.s32 %v1248, %v2892
    %v2894 = vrot.slane %v2826, %v2893
    %v2895 = vsel %vm1253, %v2894, %v2890
    %v2896 = vlaneseq
    %v2897 = vshrl.u32 %v2896, 7
    %v2898 = vsub.s32 %v67, %v2897
    %v2899 = vrot.slane %v2829, %v2898
    %v2900 = vlaneseq
    %v2901 = vshrl.u32 %v2900, 7
    %v2902 = vsub.s32 %v1248, %v2901
    %v2903 = vrot.slane %v2832, %v2902
    %v2904 = vsel %vm1253, %v2903, %v2899
    %v2905 = vsel %vm1318, %v2850, %v2841
    %v2906 = vsel %vm1320, %v2859, %v2905
    %v2907 = vsel %vm1322, %v2868, %v2906
    %v2908 = vsel %vm1324, %v2877, %v2907
    %v2909 = vsel %vm1326, %v2886, %v2908
    %v2910 = vsel %vm1328, %v2895, %v2909
    %v2911 = vsel %vm1330, %v2904, %v2910
    %v2913 = vsel %vm27, %v2911, 0.0
    %2914 = vadd.xlane.f32.xlu0 %v2913
    %v2915 = vpop.xlane.xlu0 %2914
    %v2916 = vsub.f32 %v2915, 1.0
    %v2917 = vrcp.pop %v2752
    %v2918 = vmul.f32 %v2916, %v2917
    %v2919 = vsub.f32 %v2019, %v2918
    %v2920 = vmax.f32 %v2919, 0.0
    %v2921 = vsub.f32 0.0, %v2920
    %v2922 = vadd.f32 %v2920, 1e-10
    %v2923 = vlog2.pop %v2922
    %v2924 = vmul.f32 %v2923, 0.6931472
    %v2925 = vmul.f32 %v2921, %v2924
    %v2926 = vsel %vm27, %v2925, 0.0
    %2927 = vadd.xlane.f32.xlu0 %v2926
    %v2928 = vpop.xlane.xlu0 %2927
    %v2929 = vrot.slane %v2928, 4
    %v2930 = vadd.f32 %v2928, %v2929
    %v2931 = vrot.slane %v2930, 2
    %v2932 = vadd.f32 %v2930, %v2931
    %v2933 = vrot.slane %v2932, 1
    %v2934 = vadd.f32 %v2932, %v2933
    %v2935 = vmul.f32 %v2934, 0.0078125
    %v2936 = vadd.f32 %v1519, %v2935
    %v2937 = vmul.f32 %v62, %v2920
    %v2938 = vld [vmem:[%s4 + $0x12] sm:$0x1]
    %v2939 = vld [vmem:[%s4 + $0x1e] sm:$0x1]
    %v2940 = vpack.c.bf16 %v2937, %v2937
    %v2942 = vsel %vm27, %v2940, 0
    %2944 = vmatprep.subr.bf16.mxu0 0
    %2945 = vmatpush1.bf16.msra.mxu0 %v84
    %2946 = vmatprep.subr.bf16.mxu0 0
    %2947 = vmatpush1.bf16.msra.mxu0 0
    %2948 = vmatprep.subr.bf16.mxu0 0
    %2949 = vmatpush1.bf16.msra.mxu0 0
    %2950 = vmatprep.subr.bf16.mxu0 0
    %2951 = vmatpush1.bf16.msra.mxu0 0
    %2952 = vmatprep.subr.bf16.mxu0 0
    %2953 = vmatpush1.bf16.msra.mxu0 0
    %2954 = vmatprep.subr.bf16.mxu0 0
    %2955 = vmatpush1.bf16.msra.mxu0 0
    %2956 = vmatprep.subr.bf16.mxu0 0
    %2957 = vmatpush1.bf16.msra.mxu0 0
    %2958 = vmatprep.subr.bf16.mxu0 0
    %2959 = vmatpush1.bf16.msra.mxu0 0
    %2960 = vmatprep.subr.bf16.mxu0 0
    %2961 = vmatpush1.bf16.msra.mxu0 0
    %2962 = vmatprep.subr.bf16.mxu0 0
    %2963 = vmatpush1.bf16.msra.mxu0 0
    %2964 = vmatprep.subr.bf16.mxu0 0
    %2965 = vmatpush1.bf16.msra.mxu0 0
    %2966 = vmatprep.subr.bf16.mxu0 0
    %2967 = vmatpush1.bf16.msra.mxu0 0
    %2968 = vmatprep.subr.bf16.mxu0 0
    %2969 = vmatpush1.bf16.msra.mxu0 0
    %2970 = vmatprep.subr.bf16.mxu0 0
    %2971 = vmatpush1.bf16.msra.mxu0 0
    %2972 = vmatprep.subr.bf16.mxu0 0
    %2973 = vmatpush1.bf16.msra.mxu0 0
    %2974 = vmatprep.subr.bf16.mxu0 0
    %2975 = vmatpush1.bf16.msra.mxu0 0
    %2976 = vmatprep.mubr.bf16.mxu0 0
    %2977 = vmatmul.mubr.bf16.gmra.mrb[0].mxu0 %v2942
    %v2978 = vpop.f32.mrb[0].mxu0
    %v2979 = vadd.f32 %v79, %v2978
    %v2980 = vpop.f32.mrb[0].mxu0
    %v2981 = vpop.f32.mrb[0].mxu0
    %v2982 = vpop.f32.mrb[0].mxu0
    %2983 = vdwg.mxu0
    %v2984 = vsel %vm129, %v2979, 0.0
    %v2985 = vrot.slane %v2984, 4
    %v2986 = vadd.f32 %v2984, %v2985
    %v2987 = vrot.slane %v2986, 2
    %v2988 = vadd.f32 %v2986, %v2987
    %v2989 = vrot.slane %v2988, 1
    %v2990 = vadd.f32 %v2988, %v2989
    %v2991 = vmul.f32 %v2990, %v35
    %v2992 = vmul.f32 %v2979, %v2979
    %v2993 = vsel %vm129, %v2992, 0.0
    %v2994 = vrot.slane %v2993, 4
    %v2995 = vadd.f32 %v2993, %v2994
    %v2996 = vrot.slane %v2995, 2
    %v2997 = vadd.f32 %v2995, %v2996
    %v2998 = vrot.slane %v2997, 1
    %v2999 = vadd.f32 %v2997, %v2998
    %v3000 = vmul.f32 %v2999, %v35
    %v3001 = vmul.f32 %v2991, %v2991
    %v3002 = vsub.f32 %v3000, %v3001
    %v3003 = vmax.f32 %v3002, 0.0
    %v3004 = vsub.f32 %v2979, %v2991
    %v3005 = vadd.f32 %v3003, 1e-05
    %v3006 = vrsqrt.pop %v3005
    %v3007 = vmul.f32 %v3004, %v3006
    %v3008 = vlaneseq
    %v3009 = vshrl.u32 %v3008, 7
    %v3010 = vsub.s32 0, %v3009
    %v3011 = vrot.slane %v2938, %v3010
    %v3012 = vmul.f32 %v3007, %v3011
    %v3013 = vlaneseq
    %v3014 = vshrl.u32 %v3013, 7
    %v3015 = vsub.s32 0, %v3014
    %v3016 = vrot.slane %v2939, %v3015
    %v3017 = vadd.f32 %v3012, %v3016
    %v3018 = vxor.u32 %v3017, 2147483648
    %v3019 = vmul.f32 %v3018, 1.442695
    %v3020 = vpow.pop %v3019
    %v3021 = vadd.f32 %v3020, 1.0
    %v3022 = vrcp.pop %v3021
    %v3023 = vmul.f32 1.0, %v3022
    %3025 = vrot.lane.b32.xlu0 %v3023, 112
    %v3026 = vpop.permute.xlu0 %3025
    %v3028 = vmul.f32 %v3017, %v3026
    %v3029 = vld [vmem:[%s4 + $0x13] sm:$0x1]
    %v3030 = vld [vmem:[%s4 + $0x1f] sm:$0x1]
    %v3031 = vpack.c.bf16 %v3028, %v3028
    %v3033 = vsel %vm27, %v3031, 0
    %3035 = vmatprep.subr.bf16.mxu0 0
    %3036 = vmatpush1.bf16.msra.mxu0 %v190
    %3037 = vmatprep.subr.bf16.mxu0 0
    %3038 = vmatpush1.bf16.msra.mxu0 0
    %3039 = vmatprep.subr.bf16.mxu0 0
    %3040 = vmatpush1.bf16.msra.mxu0 0
    %3041 = vmatprep.subr.bf16.mxu0 0
    %3042 = vmatpush1.bf16.msra.mxu0 0
    %3043 = vmatprep.subr.bf16.mxu0 0
    %3044 = vmatpush1.bf16.msra.mxu0 0
    %3045 = vmatprep.subr.bf16.mxu0 0
    %3046 = vmatpush1.bf16.msra.mxu0 0
    %3047 = vmatprep.subr.bf16.mxu0 0
    %3048 = vmatpush1.bf16.msra.mxu0 0
    %3049 = vmatprep.subr.bf16.mxu0 0
    %3050 = vmatpush1.bf16.msra.mxu0 0
    %3051 = vmatprep.subr.bf16.mxu0 0
    %3052 = vmatpush1.bf16.msra.mxu0 0
    %3053 = vmatprep.subr.bf16.mxu0 0
    %3054 = vmatpush1.bf16.msra.mxu0 0
    %3055 = vmatprep.subr.bf16.mxu0 0
    %3056 = vmatpush1.bf16.msra.mxu0 0
    %3057 = vmatprep.subr.bf16.mxu0 0
    %3058 = vmatpush1.bf16.msra.mxu0 0
    %3059 = vmatprep.subr.bf16.mxu0 0
    %3060 = vmatpush1.bf16.msra.mxu0 0
    %3061 = vmatprep.subr.bf16.mxu0 0
    %3062 = vmatpush1.bf16.msra.mxu0 0
    %3063 = vmatprep.subr.bf16.mxu0 0
    %3064 = vmatpush1.bf16.msra.mxu0 0
    %3065 = vmatprep.subr.bf16.mxu0 0
    %3066 = vmatpush1.bf16.msra.mxu0 0
    %3067 = vmatprep.mubr.bf16.mxu0 0
    %3068 = vmatmul.mubr.bf16.gmra.mrb[0].mxu0 %v3033
    %v3069 = vpop.f32.mrb[0].mxu0
    %v3070 = vadd.f32 %v185, %v3069
    %v3071 = vpop.f32.mrb[0].mxu0
    %v3072 = vpop.f32.mrb[0].mxu0
    %v3073 = vpop.f32.mrb[0].mxu0
    %3074 = vdwg.mxu0
    %v3075 = vsel %vm129, %v3070, 0.0
    %v3076 = vrot.slane %v3075, 4
    %v3077 = vadd.f32 %v3075, %v3076
    %v3078 = vrot.slane %v3077, 2
    %v3079 = vadd.f32 %v3077, %v3078
    %v3080 = vrot.slane %v3079, 1
    %v3081 = vadd.f32 %v3079, %v3080
    %v3082 = vmul.f32 %v3081, %v35
    %v3083 = vmul.f32 %v3070, %v3070
    %v3084 = vsel %vm129, %v3083, 0.0
    %v3085 = vrot.slane %v3084, 4
    %v3086 = vadd.f32 %v3084, %v3085
    %v3087 = vrot.slane %v3086, 2
    %v3088 = vadd.f32 %v3086, %v3087
    %v3089 = vrot.slane %v3088, 1
    %v3090 = vadd.f32 %v3088, %v3089
    %v3091 = vmul.f32 %v3090, %v35
    %v3092 = vmul.f32 %v3082, %v3082
    %v3093 = vsub.f32 %v3091, %v3092
    %v3094 = vmax.f32 %v3093, 0.0
    %v3095 = vsub.f32 %v3070, %v3082
    %v3096 = vadd.f32 %v3094, 1e-05
    %v3097 = vrsqrt.pop %v3096
    %v3098 = vmul.f32 %v3095, %v3097
    %v3099 = vlaneseq
    %v3100 = vshrl.u32 %v3099, 7
    %v3101 = vsub.s32 0, %v3100
    %v3102 = vrot.slane %v3029, %v3101
    %v3103 = vmul.f32 %v3098, %v3102
    %v3104 = vlaneseq
    %v3105 = vshrl.u32 %v3104, 7
    %v3106 = vsub.s32 0, %v3105
    %v3107 = vrot.slane %v3030, %v3106
    %v3108 = vadd.f32 %v3103, %v3107
    %v3109 = vxor.u32 %v3108, 2147483648
    %v3110 = vmul.f32 %v3109, 1.442695
    %v3111 = vpow.pop %v3110
    %v3112 = vadd.f32 %v3111, 1.0
    %v3113 = vrcp.pop %v3112
    %v3114 = vmul.f32 1.0, %v3113
    %3116 = vrot.lane.b32.xlu0 %v3114, 112
    %v3117 = vpop.permute.xlu0 %3116
    %v3119 = vmul.f32 %v3108, %v3117
    %v3120 = vadd.f32 %v3028, %v3119
    %v3121 = vmul.f32 %v3120, 0.70710677
    %v3122 = vld [vmem:[%s4 + $0x8] sm:$0x1]
    %v3123 = vld [vmem:[%s4 + $0x14] sm:$0x1]
    %v3124 = vld [vmem:[%s4 + $0x20] sm:$0x1]
    %s3125 = scalar_lea.vmem %s1, 48
    %v3126 = vld [vmem:[%s3125] sm:$0xf]
    %v3127 = vld [vmem:[%s3125 + $0x4] sm:$0xf]
    %v3128 = vpack.c.bf16 %v3121, %v3121
    %v3129 = vlaneseq
    %v3130 = vshrl.u32 %v3129, 7
    %v3131 = vsub.s32 0, %v3130
    %v3132 = vrot.slane %v3122, %v3131
    %v3135 = vunpack.c.l.b16 %v3126
    %v3136 = vunpack.c.l.b16 %v3127
    %v3137 = vpack.c.b16 %v3136, %v3135
    %v3140 = vsel %vm27, %v3128, 0
    %3142 = vmatprep.subr.bf16.mxu0 0
    %3143 = vmatpush1.bf16.msra.mxu0 %v3137
    %3144 = vmatprep.subr.bf16.mxu0 0
    %3145 = vmatpush1.bf16.msra.mxu0 0
    %3146 = vmatprep.subr.bf16.mxu0 0
    %3147 = vmatpush1.bf16.msra.mxu0 0
    %3148 = vmatprep.subr.bf16.mxu0 0
    %3149 = vmatpush1.bf16.msra.mxu0 0
    %3150 = vmatprep.subr.bf16.mxu0 0
    %3151 = vmatpush1.bf16.msra.mxu0 0
    %3152 = vmatprep.subr.bf16.mxu0 0
    %3153 = vmatpush1.bf16.msra.mxu0 0
    %3154 = vmatprep.subr.bf16.mxu0 0
    %3155 = vmatpush1.bf16.msra.mxu0 0
    %3156 = vmatprep.subr.bf16.mxu0 0
    %3157 = vmatpush1.bf16.msra.mxu0 0
    %3158 = vmatprep.subr.bf16.mxu0 0
    %3159 = vmatpush1.bf16.msra.mxu0 0
    %3160 = vmatprep.subr.bf16.mxu0 0
    %3161 = vmatpush1.bf16.msra.mxu0 0
    %3162 = vmatprep.subr.bf16.mxu0 0
    %3163 = vmatpush1.bf16.msra.mxu0 0
    %3164 = vmatprep.subr.bf16.mxu0 0
    %3165 = vmatpush1.bf16.msra.mxu0 0
    %3166 = vmatprep.subr.bf16.mxu0 0
    %3167 = vmatpush1.bf16.msra.mxu0 0
    %3168 = vmatprep.subr.bf16.mxu0 0
    %3169 = vmatpush1.bf16.msra.mxu0 0
    %3170 = vmatprep.subr.bf16.mxu0 0
    %3171 = vmatpush1.bf16.msra.mxu0 0
    %3172 = vmatprep.subr.bf16.mxu0 0
    %3173 = vmatpush1.bf16.msra.mxu0 0
    %3174 = vmatprep.mubr.bf16.mxu0 0
    %3175 = vmatmul.mubr.bf16.gmra.mrb[0].mxu0 %v3140
    %v3176 = vpop.f32.mrb[0].mxu0
    %v3177 = vadd.f32 %v3132, %v3176
    %v3178 = vpop.f32.mrb[0].mxu0
    %v3179 = vpop.f32.mrb[0].mxu0
    %v3180 = vpop.f32.mrb[0].mxu0
    %3181 = vdwg.mxu0
    %v3182 = vsel %vm129, %v3177, 0.0
    %v3183 = vrot.slane %v3182, 4
    %v3184 = vadd.f32 %v3182, %v3183
    %v3185 = vrot.slane %v3184, 2
    %v3186 = vadd.f32 %v3184, %v3185
    %v3187 = vrot.slane %v3186, 1
    %v3188 = vadd.f32 %v3186, %v3187
    %v3189 = vmul.f32 %v3188, %v35
    %v3190 = vmul.f32 %v3177, %v3177
    %v3191 = vsel %vm129, %v3190, 0.0
    %v3192 = vrot.slane %v3191, 4
    %v3193 = vadd.f32 %v3191, %v3192
    %v3194 = vrot.slane %v3193, 2
    %v3195 = vadd.f32 %v3193, %v3194
    %v3196 = vrot.slane %v3195, 1
    %v3197 = vadd.f32 %v3195, %v3196
    %v3198 = vmul.f32 %v3197, %v35
    %v3199 = vmul.f32 %v3189, %v3189
    %v3200 = vsub.f32 %v3198, %v3199
    %v3201 = vmax.f32 %v3200, 0.0
    %v3202 = vsub.f32 %v3177, %v3189
    %v3203 = vadd.f32 %v3201, 1e-05
    %v3204 = vrsqrt.pop %v3203
    %v3205 = vmul.f32 %v3202, %v3204
    %v3206 = vlaneseq
    %v3207 = vshrl.u32 %v3206, 7
    %v3208 = vsub.s32 0, %v3207
    %v3209 = vrot.slane %v3123, %v3208
    %v3210 = vmul.f32 %v3205, %v3209
    %v3211 = vlaneseq
    %v3212 = vshrl.u32 %v3211, 7
    %v3213 = vsub.s32 0, %v3212
    %v3214 = vrot.slane %v3124, %v3213
    %v3215 = vadd.f32 %v3210, %v3214
    %v3216 = vxor.u32 %v3215, 2147483648
    %v3217 = vmul.f32 %v3216, 1.442695
    %v3218 = vpow.pop %v3217
    %v3219 = vadd.f32 %v3218, 1.0
    %v3220 = vrcp.pop %v3219
    %v3221 = vmul.f32 1.0, %v3220
    %3223 = vrot.lane.b32.xlu0 %v3221, 112
    %v3224 = vpop.permute.xlu0 %3223
    %v3226 = vmul.f32 %v3215, %v3224
    %v3227 = vadd.f32 %v3121, %v3226
    %v3228 = vmul.f32 %v3227, 0.70710677
    %v3229 = vld [vmem:[%s4 + $0x9] sm:$0x1]
    %v3230 = vld [vmem:[%s4 + $0x15] sm:$0x1]
    %v3231 = vld [vmem:[%s4 + $0x21] sm:$0x1]
    %s3232 = scalar_lea.vmem %s1, 56
    %v3233 = vld [vmem:[%s3232] sm:$0xf]
    %v3234 = vld [vmem:[%s3232 + $0x4] sm:$0xf]
    %v3235 = vpack.c.bf16 %v3228, %v3228
    %v3236 = vlaneseq
    %v3237 = vshrl.u32 %v3236, 7
    %v3238 = vsub.s32 0, %v3237
    %v3239 = vrot.slane %v3229, %v3238
    %v3242 = vunpack.c.l.b16 %v3233
    %v3243 = vunpack.c.l.b16 %v3234
    %v3244 = vpack.c.b16 %v3243, %v3242
    %v3247 = vsel %vm27, %v3235, 0
    %3249 = vmatprep.subr.bf16.mxu0 0
    %3250 = vmatpush1.bf16.msra.mxu0 %v3244
    %3251 = vmatprep.subr.bf16.mxu0 0
    %3252 = vmatpush1.bf16.msra.mxu0 0
    %3253 = vmatprep.subr.bf16.mxu0 0
    %3254 = vmatpush1.bf16.msra.mxu0 0
    %3255 = vmatprep.subr.bf16.mxu0 0
    %3256 = vmatpush1.bf16.msra.mxu0 0
    %3257 = vmatprep.subr.bf16.mxu0 0
    %3258 = vmatpush1.bf16.msra.mxu0 0
    %3259 = vmatprep.subr.bf16.mxu0 0
    %3260 = vmatpush1.bf16.msra.mxu0 0
    %3261 = vmatprep.subr.bf16.mxu0 0
    %3262 = vmatpush1.bf16.msra.mxu0 0
    %3263 = vmatprep.subr.bf16.mxu0 0
    %3264 = vmatpush1.bf16.msra.mxu0 0
    %3265 = vmatprep.subr.bf16.mxu0 0
    %3266 = vmatpush1.bf16.msra.mxu0 0
    %3267 = vmatprep.subr.bf16.mxu0 0
    %3268 = vmatpush1.bf16.msra.mxu0 0
    %3269 = vmatprep.subr.bf16.mxu0 0
    %3270 = vmatpush1.bf16.msra.mxu0 0
    %3271 = vmatprep.subr.bf16.mxu0 0
    %3272 = vmatpush1.bf16.msra.mxu0 0
    %3273 = vmatprep.subr.bf16.mxu0 0
    %3274 = vmatpush1.bf16.msra.mxu0 0
    %3275 = vmatprep.subr.bf16.mxu0 0
    %3276 = vmatpush1.bf16.msra.mxu0 0
    %3277 = vmatprep.subr.bf16.mxu0 0
    %3278 = vmatpush1.bf16.msra.mxu0 0
    %3279 = vmatprep.subr.bf16.mxu0 0
    %3280 = vmatpush1.bf16.msra.mxu0 0
    %3281 = vmatprep.mubr.bf16.mxu0 0
    %3282 = vmatmul.mubr.bf16.gmra.mrb[0].mxu0 %v3247
    %v3283 = vpop.f32.mrb[0].mxu0
    %v3284 = vadd.f32 %v3239, %v3283
    %v3285 = vpop.f32.mrb[0].mxu0
    %v3286 = vpop.f32.mrb[0].mxu0
    %v3287 = vpop.f32.mrb[0].mxu0
    %3288 = vdwg.mxu0
    %v3289 = vsel %vm129, %v3284, 0.0
    %v3290 = vrot.slane %v3289, 4
    %v3291 = vadd.f32 %v3289, %v3290
    %v3292 = vrot.slane %v3291, 2
    %v3293 = vadd.f32 %v3291, %v3292
    %v3294 = vrot.slane %v3293, 1
    %v3295 = vadd.f32 %v3293, %v3294
    %v3296 = vmul.f32 %v3295, %v35
    %v3297 = vmul.f32 %v3284, %v3284
    %v3298 = vsel %vm129, %v3297, 0.0
    %v3299 = vrot.slane %v3298, 4
    %v3300 = vadd.f32 %v3298, %v3299
    %v3301 = vrot.slane %v3300, 2
    %v3302 = vadd.f32 %v3300, %v3301
    %v3303 = vrot.slane %v3302, 1
    %v3304 = vadd.f32 %v3302, %v3303
    %v3305 = vmul.f32 %v3304, %v35
    %v3306 = vmul.f32 %v3296, %v3296
    %v3307 = vsub.f32 %v3305, %v3306
    %v3308 = vmax.f32 %v3307, 0.0
    %v3309 = vsub.f32 %v3284, %v3296
    %v3310 = vadd.f32 %v3308, 1e-05
    %v3311 = vrsqrt.pop %v3310
    %v3312 = vmul.f32 %v3309, %v3311
    %v3313 = vlaneseq
    %v3314 = vshrl.u32 %v3313, 7
    %v3315 = vsub.s32 0, %v3314
    %v3316 = vrot.slane %v3230, %v3315
    %v3317 = vmul.f32 %v3312, %v3316
    %v3318 = vlaneseq
    %v3319 = vshrl.u32 %v3318, 7
    %v3320 = vsub.s32 0, %v3319
    %v3321 = vrot.slane %v3231, %v3320
    %v3322 = vadd.f32 %v3317, %v3321
    %v3323 = vxor.u32 %v3322, 2147483648
    %v3324 = vmul.f32 %v3323, 1.442695
    %v3325 = vpow.pop %v3324
    %v3326 = vadd.f32 %v3325, 1.0
    %v3327 = vrcp.pop %v3326
    %v3328 = vmul.f32 1.0, %v3327
    %3330 = vrot.lane.b32.xlu0 %v3328, 112
    %v3331 = vpop.permute.xlu0 %3330
    %v3333 = vmul.f32 %v3322, %v3331
    %v3334 = vadd.f32 %v3228, %v3333
    %v3335 = vmul.f32 %v3334, 0.70710677
    %v3336 = vmax.f32 %v3335, 0.0
    %v3337 = vadd.f32 %v1921, %v3336
    %v3338 = vpack.c.bf16 %v3337, %v3337
    %v3339 = vld [vmem:[%s3] sm:$0xf]
    %v3340 = vld [vmem:[%s4 + $0x28] sm:$0x1]
    %v3341 = vlaneseq
    %v3342 = vshrl.u32 %v3341, 7
    %v3343 = vsub.s32 0, %v3342
    %v3344 = vrot.slane %v3340, %v3343
    %v3346 = vsel %vm506, %v3338, 0
    %v3349 = vsel %vm510, %v3339, 0
    %3351 = vmatprep.subr.bf16.mxu0 0
    %3352 = vmatpush1.bf16.msra.mxu0 %v3349
    %3353 = vmatprep.subr.bf16.mxu0 0
    %3354 = vmatpush1.bf16.msra.mxu0 0
    %3355 = vmatprep.subr.bf16.mxu0 0
    %3356 = vmatpush1.bf16.msra.mxu0 0
    %3357 = vmatprep.subr.bf16.mxu0 0
    %3358 = vmatpush1.bf16.msra.mxu0 0
    %3359 = vmatprep.subr.bf16.mxu0 0
    %3360 = vmatpush1.bf16.msra.mxu0 0
    %3361 = vmatprep.subr.bf16.mxu0 0
    %3362 = vmatpush1.bf16.msra.mxu0 0
    %3363 = vmatprep.subr.bf16.mxu0 0
    %3364 = vmatpush1.bf16.msra.mxu0 0
    %3365 = vmatprep.subr.bf16.mxu0 0
    %3366 = vmatpush1.bf16.msra.mxu0 0
    %3367 = vmatprep.subr.bf16.mxu0 0
    %3368 = vmatpush1.bf16.msra.mxu0 0
    %3369 = vmatprep.subr.bf16.mxu0 0
    %3370 = vmatpush1.bf16.msra.mxu0 0
    %3371 = vmatprep.subr.bf16.mxu0 0
    %3372 = vmatpush1.bf16.msra.mxu0 0
    %3373 = vmatprep.subr.bf16.mxu0 0
    %3374 = vmatpush1.bf16.msra.mxu0 0
    %3375 = vmatprep.subr.bf16.mxu0 0
    %3376 = vmatpush1.bf16.msra.mxu0 0
    %3377 = vmatprep.subr.bf16.mxu0 0
    %3378 = vmatpush1.bf16.msra.mxu0 0
    %3379 = vmatprep.subr.bf16.mxu0 0
    %3380 = vmatpush1.bf16.msra.mxu0 0
    %3381 = vmatprep.subr.bf16.mxu0 0
    %3382 = vmatpush1.bf16.msra.mxu0 0
    %3383 = vmatprep.mubr.bf16.mxu0 0
    %3384 = vmatmul.mubr.bf16.gmra.mrb[0].mxu0 %v3346
    %v3385 = vpop.f32.mrb[0].mxu0
    %v3386 = vadd.f32 %v3344, %v3385
    %v3387 = vpop.f32.mrb[0].mxu0
    %v3388 = vpop.f32.mrb[0].mxu0
    %v3389 = vpop.f32.mrb[0].mxu0
    %3390 = vdwg.mxu0
    %vm3391 = vcmask 31744
    %3392 = vst.msk [vmem:[%s5] sm:$0xff] %vm3391, %v3386
    %vm3393 = vcmask 0
    %3394 = vst.msk [vmem:[#allocation2] sm:$0x1] %vm3393, %v2936
    // Predicated region
    $region22: #{tabnet_forward.1} parent=1 // pred_check
      _
    $region23: #{tabnet_forward.1} parent=1 // pred_check_branch
      %3396 = sbr.rel (0) target = $region25
    $region24: #{tabnet_forward.1} parent=1 // pred_region
      _
    $region25: #{tabnet_forward.1} parent=1 // pred_fallthru
      _
    // Predicated region
    $region26: #{tabnet_forward.1} parent=1 // pred_check
      _
    $region27: #{tabnet_forward.1} parent=1 // pred_check_branch
      %3398 = sbr.rel (0) target = $region29
    $region28: #{tabnet_forward.1} parent=1 // pred_region
      %s3400 = ssub.s32 16, 16
      %3401 = vsyncadd [#allocation3], %s3400
      %s3403 = sshll.u32 [#allocation2], 4
      %s3404 = int_to_ptr.vmem [resolvable:$true] %s3403
      %3406 = dma.vmem_to_hbm [thread:$0]  %s3404, 16, %s6, [#allocation3]
    $region29: #{tabnet_forward.1} parent=1 // pred_fallthru
      _
    // Predicated region
    $region30: #{tabnet_forward.1} parent=1 // pred_check
      _
    $region31: #{tabnet_forward.1} parent=1 // pred_check_branch
      %3408 = sbr.rel (0) target = $region33
    $region32: #{tabnet_forward.1} parent=1 // pred_region
      _
    $region33: #{tabnet_forward.1} parent=1 // pred_fallthru
      _
    // Predicated region
    $region34: #{tabnet_forward.1} parent=1 // pred_check
      _
    $region35: #{tabnet_forward.1} parent=1 // pred_check_branch
      %3410 = sbr.rel (0) target = $region37
    $region36: #{tabnet_forward.1} parent=1 // pred_region
      %3411 = dma.done [#allocation3], 16
    $region37: #{tabnet_forward.1} parent=1 // pred_fallthru
      _
    %3412 = vsyncpa [#allocation3], 1

</llo_original>
